<compile_context>
chip_gen: v7x
topology: tpu7x:2x2x1
jax: 0.10.0
libtpu: 0.0.40
codegen_flags: <defaults>
</compile_context>

<pallas_src>
import numpy as np
import jax
import jax.numpy as jnp
from jax import lax
from jax.experimental import pallas as pl
from jax.experimental.pallas import tpu as pltpu

INPUT = 64      # nn.RNN(input_size=64, ...)
HIDDEN = 256    # hidden_size=256
LAYERS = 3      # num_layers=3
CLASSES = 40    # nn.Linear(256, 40)


def rnn_kernel(xp_ref, whh0_ref, w12_ref, b12_ref, wfc_ref, bfc_ref,
               out_ref, hstate_ref):
    """One grid step == one chunk of TB timesteps.

    xp_ref   : (TB, BP, HIDDEN) bf16  precomputed x @ Wih0 + b0 (layer-0 input term)
    whh0_ref : (HIDDEN, HIDDEN) bf16  layer-0 recurrent weight
    w12_ref  : (2, 2*HIDDEN, HIDDEN) bf16  fused [Wih; Whh] for layers 1, 2
    b12_ref  : (2, 1, HIDDEN) f32     b_ih + b_hh for layers 1, 2
    wfc_ref  : (HIDDEN, CPAD) bf16    fc weight, lane-padded
    bfc_ref  : (1, CPAD) f32
    out_ref  : (BP, CPAD) f32
    hstate_ref: (3, BP, HIDDEN) bf16  per-layer hidden state carried across chunks
    """
    c = pl.program_id(0)
    BP = hstate_ref.shape[1]
    TB = xp_ref.shape[0]

    @pl.when(c == 0)
    def _():
        # PyTorch default h0 = zeros for every layer.
        hstate_ref[...] = jnp.zeros_like(hstate_ref)

    # Hoist bias broadcasts out of the timestep loop (JAX doesn't CSE them).
    b1 = jnp.broadcast_to(b12_ref[0], (BP, HIDDEN)).astype(jnp.float32)
    b2 = jnp.broadcast_to(b12_ref[1], (BP, HIDDEN)).astype(jnp.float32)

    # Load cross-chunk state once; inside the loop it lives in loop-carry vregs.
    h_init = (hstate_ref[0], hstate_ref[1], hstate_ref[2])

    def step(t, carry):
        h0, h1, h2 = carry                                  # (BP, H) bf16 vregs

        # --- layer 0: input term precomputed, add recurrent term only ---
        xp_t = xp_ref[t].astype(jnp.float32)                 # (BP, H)
        h0n = jnp.tanh(
            jnp.dot(h0, whh0_ref[...], preferred_element_type=jnp.float32)
            + xp_t).astype(jnp.bfloat16)

        # --- layer 1: single fused dot, K = 2*HIDDEN; register-level concat ---
        lhs1 = jnp.concatenate([h0n, h1], axis=-1)           # (BP, 2H) bf16
        h1n = jnp.tanh(
            jnp.dot(lhs1, w12_ref[0], preferred_element_type=jnp.float32)
            + b1).astype(jnp.bfloat16)

        # --- layer 2 (top layer; its state is the RNN "output") ---
        lhs2 = jnp.concatenate([h1n, h2], axis=-1)
        h2n = jnp.tanh(
            jnp.dot(lhs2, w12_ref[1], preferred_element_type=jnp.float32)
            + b2).astype(jnp.bfloat16)

        return (h0n, h1n, h2n)

    h0, h1, h2 = lax.fori_loop(0, TB, step, h_init, unroll=min(TB, 8))

    # Spill state once per chunk so the next grid step can resume the recurrence.
    hstate_ref[0] = h0
    hstate_ref[1] = h1
    hstate_ref[2] = h2

    # fc applied only to outputs[:, -1, :] == top-layer hidden at last timestep.
    @pl.when(c == pl.num_programs(0) - 1)
    def _():
        out_ref[...] = (
            jnp.dot(h2, wfc_ref[...], preferred_element_type=jnp.float32)
            + bfc_ref[...])


def _pick_time_block(T, BP):
    """Largest TB whose double-buffered bf16 xproj slab fits a VMEM budget."""
    try:
        vmem = pltpu.get_tpu_info().vmem_capacity_bytes
    except Exception:
        vmem = 64 << 20                       # v7x per-TC physical VMEM (worst case)
    budget = vmem // 4                        # headroom for weights / scratch / out
    per_t = BP * HIDDEN * 2                   # bf16 bytes per timestep
    cap = max(1, budget // (2 * per_t))       # 2 pipeline buffers
    if T <= cap:
        return T
    tb = int(cap)
    while T % tb:
        tb -= 1
    return tb


def rnn_classifier(x, params):
    wih0, b0, whh0, w12, b12, wfc, bfc = params
    B, T, D = x.shape
    assert D == INPUT

    BP = max(8, ((B + 7) // 8) * 8)                 # sublane-pad batch
    CPAD = ((CLASSES + 127) // 128) * 128           # lane-pad fc output

    x_pad = jnp.zeros((BP, T, D), jnp.float32).at[:B].set(x.astype(jnp.float32))

    # Hoisted layer-0 input projection (non-recurrent): one big matmul with
    # M = BP*T, bias folded in, streamed to the kernel as bf16 laid out
    # (T, BP, H) so the kernel indexes the leading axis per timestep.
    xproj = x_pad.reshape(BP * T, D) @ wih0.astype(jnp.float32) + b0
    xproj = xproj.reshape(BP, T, HIDDEN).transpose(1, 0, 2).astype(jnp.bfloat16)

    wfc_p = jnp.zeros((HIDDEN, CPAD), jnp.bfloat16).at[:, :CLASSES].set(wfc)
    bfc_p = jnp.zeros((1, CPAD), jnp.float32).at[:, :CLASSES].set(bfc)

    TB = _pick_time_block(T, BP)
    grid = (T // TB,)

    def full_spec(arr):
        nd = arr.ndim
        return pl.BlockSpec(arr.shape, lambda c, _nd=nd: (0,) * _nd)

    out = pl.pallas_call(
        rnn_kernel,
        out_shape=jax.ShapeDtypeStruct((BP, CPAD), jnp.float32),
        grid_spec=pltpu.PrefetchScalarGridSpec(
            num_scalar_prefetch=0,
            grid=grid,
            in_specs=[
                pl.BlockSpec((TB, BP, HIDDEN), lambda c: (c, 0, 0)),  # xproj chunk
                full_spec(whh0),    # (HIDDEN, HIDDEN) bf16
                full_spec(w12),     # (2, 2*HIDDEN, HIDDEN) bf16
                full_spec(b12),     # (2, 1, HIDDEN) f32
                full_spec(wfc_p),   # (HIDDEN, CPAD) bf16
                full_spec(bfc_p),   # (1, CPAD) f32
            ],
            out_specs=pl.BlockSpec((BP, CPAD), lambda c: (0, 0)),
            scratch_shapes=[
                pltpu.VMEM((LAYERS, BP, HIDDEN), jnp.bfloat16),  # cross-chunk state
            ],
        ),
        compiler_params=pltpu.CompilerParams(
            dimension_semantics=("arbitrary",)),   # time chunks carry state
    )(xproj, whh0, w12, b12, wfc_p, bfc_p)

    return out[:B, :CLASSES]


def init_params(key):
    """Deterministic synthetic init (PyTorch-style U(-1/sqrt(H), 1/sqrt(H))).

    Weight matrices stored pre-transposed as (in_features, out_features) and in
    bf16; layers 1/2 input+recurrent weights concatenated along K. Biases are
    the PyTorch b_ih + b_hh sums, kept in f32.
    """
    ks = jax.random.split(key, 10)
    scale = 1.0 / np.sqrt(HIDDEN)
    u = lambda k, shp: jax.random.uniform(k, shp, jnp.float32, -scale, scale)
    wih0 = u(ks[0], (INPUT, HIDDEN))
    whh0 = u(ks[1], (HIDDEN, HIDDEN))
    b0 = u(ks[2], (1, HIDDEN)) + u(ks[3], (1, HIDDEN))
    wih12 = u(ks[4], (2, HIDDEN, HIDDEN))
    whh12 = u(ks[5], (2, HIDDEN, HIDDEN))
    b12 = u(ks[6], (2, 1, HIDDEN)) + u(ks[7], (2, 1, HIDDEN))
    wfc = u(ks[8], (HIDDEN, CLASSES))
    bfc = u(ks[9], (1, CLASSES))
    w12 = jnp.concatenate([wih12, whh12], axis=1)      # (2, 2*HIDDEN, HIDDEN)
    bf16 = jnp.bfloat16
    return (wih0.astype(bf16), b0, whh0.astype(bf16), w12.astype(bf16),
            b12, wfc.astype(bf16), bfc)


def reference(x, params):
    """Pure-JAX f32 reference of the same forward pass (same bf16 weights)."""
    wih0, b0, whh0, w12, b12, wfc, bfc = params
    f32 = lambda a: a.astype(jnp.float32)
    B, T, _ = x.shape
    wih = [f32(wih0), f32(w12[0, :HIDDEN]), f32(w12[1, :HIDDEN])]
    whh = [f32(whh0), f32(w12[0, HIDDEN:]), f32(w12[1, HIDDEN:])]
    b = [b0, b12[0], b12[1]]
    h = [jnp.zeros((B, HIDDEN), jnp.float32) for _ in range(LAYERS)]
    for t in range(T):
        inp = x[:, t, :]
        for l in range(LAYERS):
            h[l] = jnp.tanh(inp @ wih[l] + h[l] @ whh[l] + b[l])
            inp = h[l]
    return h[-1] @ f32(wfc) + f32(bfc)


if __name__ == "__main__":
    key = jax.random.PRNGKey(0)
    kx, kp = jax.random.split(key)
    B, T = 2, 8
    x = jax.random.normal(kx, (B, T, INPUT), jnp.float32)
    params = init_params(kp)

    out = jax.block_until_ready(rnn_classifier(x, params))
    ref = jax.block_until_ready(reference(x, params))

    assert out.shape == (B, CLASSES), out.shape
    # bf16 weights/hidden/input-term in the kernel vs f32 reference math.
    np.testing.assert_allclose(np.asarray(out), np.asarray(ref),
                               rtol=2e-2, atol=2e-2)
    print("KERNEL_OK")
</pallas_src>

<mosaic_0001>
module attributes {stable_mosaic.version = 11 : i64} {
  func.func @rnn_kernel(%arg0: i32, %arg1: memref<8x8x256xbf16, #tpu.memory_space<vmem>>, %arg2: memref<256x256xbf16, #tpu.memory_space<vmem>>, %arg3: memref<2x512x256xbf16, #tpu.memory_space<vmem>>, %arg4: memref<2x1x256xf32, #tpu.memory_space<vmem>>, %arg5: memref<256x128xbf16, #tpu.memory_space<vmem>>, %arg6: memref<1x128xf32, #tpu.memory_space<vmem>>, %arg7: memref<8x128xf32, #tpu.memory_space<vmem>>, %arg8: memref<3x8x256xbf16, #tpu.memory_space<vmem>>) attributes {dimension_semantics = [#tpu.dimension_semantics<arbitrary>], iteration_bounds = array<i64: 1>, scalar_prefetch = 0 : i64, scratch_operands = 1 : i64, tpu.core_type = #tpu.core_type<tc>, window_params = [{transform_indices = @transform_0, window_bounds = array<i64: 8, 8, 256>}, {pipeline_mode = #tpu.pipeline_mode<synchronous>, transform_indices = @transform_1, window_bounds = array<i64: 256, 256>}, {pipeline_mode = #tpu.pipeline_mode<synchronous>, transform_indices = @transform_2, window_bounds = array<i64: 2, 512, 256>}, {pipeline_mode = #tpu.pipeline_mode<synchronous>, transform_indices = @transform_3, window_bounds = array<i64: 2, 1, 256>}, {pipeline_mode = #tpu.pipeline_mode<synchronous>, transform_indices = @transform_4, window_bounds = array<i64: 256, 128>}, {pipeline_mode = #tpu.pipeline_mode<synchronous>, transform_indices = @transform_5, window_bounds = array<i64: 1, 128>}, {pipeline_mode = #tpu.pipeline_mode<synchronous>, transform_indices = @transform_6, window_bounds = array<i64: 8, 128>}]} {
    %c0_i32 = arith.constant 0 : i32
    %0 = arith.cmpi eq, %arg0, %c0_i32 : i32
    %1 = arith.extui %0 : i1 to i32
    %c0_i32_0 = arith.constant 0 : i32
    %2 = arith.cmpi ne, %1, %c0_i32_0 : i32
    scf.if %2 {
      %cst_128 = arith.constant 0.000000e+00 : bf16
      %213 = vector.broadcast %cst_128 : bf16 to vector<3x8x256xbf16>
      %c0_129 = arith.constant 0 : index
      %c0_130 = arith.constant 0 : index
      %c0_131 = arith.constant 0 : index
      %214 = vector.load %arg8[%c0_129, %c0_130, %c0_131] : memref<3x8x256xbf16, #tpu.memory_space<vmem>>, vector<3x8x256xbf16>
      tpu.vector_store %arg8[%c0_129, %c0_130, %c0_131], %213 {strides = array<i32>} : memref<3x8x256xbf16, #tpu.memory_space<vmem>>, vector<3x8x256xbf16>,
    } else {
    }
    %c0 = arith.constant 0 : index
    %c0_1 = arith.constant 0 : index
    %c0_2 = arith.constant 0 : index
    %3 = vector.load %arg4[%c0, %c0_1, %c0_2] : memref<2x1x256xf32, #tpu.memory_space<vmem>>, vector<1x1x256xf32>
    %4 = vector.shape_cast %3 : vector<1x1x256xf32> to vector<1x256xf32>
    %5 = vector.shape_cast %4 : vector<1x256xf32> to vector<1x256xf32>
    %6 = vector.broadcast %5 : vector<1x256xf32> to vector<8x256xf32>
    %c1 = arith.constant 1 : index
    %c0_3 = arith.constant 0 : index
    %c0_4 = arith.constant 0 : index
    %7 = vector.load %arg4[%c1, %c0_3, %c0_4] : memref<2x1x256xf32, #tpu.memory_space<vmem>>, vector<1x1x256xf32>
    %8 = vector.shape_cast %7 : vector<1x1x256xf32> to vector<1x256xf32>
    %9 = vector.shape_cast %8 : vector<1x256xf32> to vector<1x256xf32>
    %10 = vector.broadcast %9 : vector<1x256xf32> to vector<8x256xf32>
    %c0_5 = arith.constant 0 : index
    %c0_6 = arith.constant 0 : index
    %c0_7 = arith.constant 0 : index
    %11 = vector.load %arg8[%c0_5, %c0_6, %c0_7] : memref<3x8x256xbf16, #tpu.memory_space<vmem>>, vector<1x8x256xbf16>
    %12 = vector.shape_cast %11 : vector<1x8x256xbf16> to vector<8x256xbf16>
    %c1_8 = arith.constant 1 : index
    %c0_9 = arith.constant 0 : index
    %c0_10 = arith.constant 0 : index
    %13 = vector.load %arg8[%c1_8, %c0_9, %c0_10] : memref<3x8x256xbf16, #tpu.memory_space<vmem>>, vector<1x8x256xbf16>
    %14 = vector.shape_cast %13 : vector<1x8x256xbf16> to vector<8x256xbf16>
    %c2 = arith.constant 2 : index
    %c0_11 = arith.constant 0 : index
    %c0_12 = arith.constant 0 : index
    %15 = vector.load %arg8[%c2, %c0_11, %c0_12] : memref<3x8x256xbf16, #tpu.memory_space<vmem>>, vector<1x8x256xbf16>
    %16 = vector.shape_cast %15 : vector<1x8x256xbf16> to vector<8x256xbf16>
    %c0_i32_13 = arith.constant 0 : i32
    %17 = arith.index_cast %c0_i32_13 : i32 to index
    %c0_14 = arith.constant 0 : index
    %c0_15 = arith.constant 0 : index
    %18 = vector.load %arg1[%17, %c0_14, %c0_15] : memref<8x8x256xbf16, #tpu.memory_space<vmem>>, vector<1x8x256xbf16>
    %19 = vector.shape_cast %18 : vector<1x8x256xbf16> to vector<8x256xbf16>
    %20 = arith.extf %19 : vector<8x256xbf16> to vector<8x256xf32>
    %c0_16 = arith.constant 0 : index
    %c0_17 = arith.constant 0 : index
    %21 = vector.load %arg2[%c0_16, %c0_17] : memref<256x256xbf16, #tpu.memory_space<vmem>>, vector<256x256xbf16>
    %cst = arith.constant dense<0.000000e+00> : vector<8x256xf32>
    %22 = tpu.matmul %12, %21, %cst {dimension_numbers = #tpu.dot_dimension_numbers<[1], [0], [0], [1], [0, 0, 1, 1], [], []>} : vector<8x256xbf16>, vector<256x256xbf16>, vector<8x256xf32> -> vector<8x256xf32>
    %23 = arith.addf %22, %20 : vector<8x256xf32>
    %24 = math.tanh %23 : vector<8x256xf32>
    %25 = arith.truncf %24 : vector<8x256xf32> to vector<8x256xbf16>
    %26 = tpu.concatenate %25, %14 in 1 : vector<8x256xbf16>, vector<8x256xbf16> -> vector<8x512xbf16>
    %c0_18 = arith.constant 0 : index
    %c0_19 = arith.constant 0 : index
    %c0_20 = arith.constant 0 : index
    %27 = vector.load %arg3[%c0_18, %c0_19, %c0_20] : memref<2x512x256xbf16, #tpu.memory_space<vmem>>, vector<1x512x256xbf16>
    %28 = vector.shape_cast %27 : vector<1x512x256xbf16> to vector<512x256xbf16>
    %cst_21 = arith.constant dense<0.000000e+00> : vector<8x256xf32>
    %29 = tpu.matmul %26, %28, %cst_21 {dimension_numbers = #tpu.dot_dimension_numbers<[1], [0], [0], [1], [0, 0, 1, 1], [], []>} : vector<8x512xbf16>, vector<512x256xbf16>, vector<8x256xf32> -> vector<8x256xf32>
    %30 = arith.addf %29, %6 : vector<8x256xf32>
    %31 = math.tanh %30 : vector<8x256xf32>
    %32 = arith.truncf %31 : vector<8x256xf32> to vector<8x256xbf16>
    %33 = tpu.concatenate %32, %16 in 1 : vector<8x256xbf16>, vector<8x256xbf16> -> vector<8x512xbf16>
    %c1_22 = arith.constant 1 : index
    %c0_23 = arith.constant 0 : index
    %c0_24 = arith.constant 0 : index
    %34 = vector.load %arg3[%c1_22, %c0_23, %c0_24] : memref<2x512x256xbf16, #tpu.memory_space<vmem>>, vector<1x512x256xbf16>
    %35 = vector.shape_cast %34 : vector<1x512x256xbf16> to vector<512x256xbf16>
    %cst_25 = arith.constant dense<0.000000e+00> : vector<8x256xf32>
    %36 = tpu.matmul %33, %35, %cst_25 {dimension_numbers = #tpu.dot_dimension_numbers<[1], [0], [0], [1], [0, 0, 1, 1], [], []>} : vector<8x512xbf16>, vector<512x256xbf16>, vector<8x256xf32> -> vector<8x256xf32>
    %37 = arith.addf %36, %10 : vector<8x256xf32>
    %38 = math.tanh %37 : vector<8x256xf32>
    %39 = arith.truncf %38 : vector<8x256xf32> to vector<8x256xbf16>
    %c1_i32 = arith.constant 1 : i32
    %40 = arith.index_cast %c1_i32 : i32 to index
    %c0_26 = arith.constant 0 : index
    %c0_27 = arith.constant 0 : index
    %41 = vector.load %arg1[%40, %c0_26, %c0_27] : memref<8x8x256xbf16, #tpu.memory_space<vmem>>, vector<1x8x256xbf16>
    %42 = vector.shape_cast %41 : vector<1x8x256xbf16> to vector<8x256xbf16>
    %43 = arith.extf %42 : vector<8x256xbf16> to vector<8x256xf32>
    %c0_28 = arith.constant 0 : index
    %c0_29 = arith.constant 0 : index
    %44 = vector.load %arg2[%c0_28, %c0_29] : memref<256x256xbf16, #tpu.memory_space<vmem>>, vector<256x256xbf16>
    %cst_30 = arith.constant dense<0.000000e+00> : vector<8x256xf32>
    %45 = tpu.matmul %25, %44, %cst_30 {dimension_numbers = #tpu.dot_dimension_numbers<[1], [0], [0], [1], [0, 0, 1, 1], [], []>} : vector<8x256xbf16>, vector<256x256xbf16>, vector<8x256xf32> -> vector<8x256xf32>
    %46 = arith.addf %45, %43 : vector<8x256xf32>
    %47 = math.tanh %46 : vector<8x256xf32>
    %48 = arith.truncf %47 : vector<8x256xf32> to vector<8x256xbf16>
    %49 = tpu.concatenate %48, %32 in 1 : vector<8x256xbf16>, vector<8x256xbf16> -> vector<8x512xbf16>
    %c0_31 = arith.constant 0 : index
    %c0_32 = arith.constant 0 : index
    %c0_33 = arith.constant 0 : index
    %50 = vector.load %arg3[%c0_31, %c0_32, %c0_33] : memref<2x512x256xbf16, #tpu.memory_space<vmem>>, vector<1x512x256xbf16>
    %51 = vector.shape_cast %50 : vector<1x512x256xbf16> to vector<512x256xbf16>
    %cst_34 = arith.constant dense<0.000000e+00> : vector<8x256xf32>
    %52 = tpu.matmul %49, %51, %cst_34 {dimension_numbers = #tpu.dot_dimension_numbers<[1], [0], [0], [1], [0, 0, 1, 1], [], []>} : vector<8x512xbf16>, vector<512x256xbf16>, vector<8x256xf32> -> vector<8x256xf32>
    %53 = arith.addf %52, %6 : vector<8x256xf32>
    %54 = math.tanh %53 : vector<8x256xf32>
    %55 = arith.truncf %54 : vector<8x256xf32> to vector<8x256xbf16>
    %56 = tpu.concatenate %55, %39 in 1 : vector<8x256xbf16>, vector<8x256xbf16> -> vector<8x512xbf16>
    %c1_35 = arith.constant 1 : index
    %c0_36 = arith.constant 0 : index
    %c0_37 = arith.constant 0 : index
    %57 = vector.load %arg3[%c1_35, %c0_36, %c0_37] : memref<2x512x256xbf16, #tpu.memory_space<vmem>>, vector<1x512x256xbf16>
    %58 = vector.shape_cast %57 : vector<1x512x256xbf16> to vector<512x256xbf16>
    %cst_38 = arith.constant dense<0.000000e+00> : vector<8x256xf32>
    %59 = tpu.matmul %56, %58, %cst_38 {dimension_numbers = #tpu.dot_dimension_numbers<[1], [0], [0], [1], [0, 0, 1, 1], [], []>} : vector<8x512xbf16>, vector<512x256xbf16>, vector<8x256xf32> -> vector<8x256xf32>
    %60 = arith.addf %59, %10 : vector<8x256xf32>
    %61 = math.tanh %60 : vector<8x256xf32>
    %62 = arith.truncf %61 : vector<8x256xf32> to vector<8x256xbf16>
    %c2_i32 = arith.constant 2 : i32
    %63 = arith.index_cast %c2_i32 : i32 to index
    %c0_39 = arith.constant 0 : index
    %c0_40 = arith.constant 0 : index
    %64 = vector.load %arg1[%63, %c0_39, %c0_40] : memref<8x8x256xbf16, #tpu.memory_space<vmem>>, vector<1x8x256xbf16>
    %65 = vector.shape_cast %64 : vector<1x8x256xbf16> to vector<8x256xbf16>
    %66 = arith.extf %65 : vector<8x256xbf16> to vector<8x256xf32>
    %c0_41 = arith.constant 0 : index
    %c0_42 = arith.constant 0 : index
    %67 = vector.load %arg2[%c0_41, %c0_42] : memref<256x256xbf16, #tpu.memory_space<vmem>>, vector<256x256xbf16>
    %cst_43 = arith.constant dense<0.000000e+00> : vector<8x256xf32>
    %68 = tpu.matmul %48, %67, %cst_43 {dimension_numbers = #tpu.dot_dimension_numbers<[1], [0], [0], [1], [0, 0, 1, 1], [], []>} : vector<8x256xbf16>, vector<256x256xbf16>, vector<8x256xf32> -> vector<8x256xf32>
    %69 = arith.addf %68, %66 : vector<8x256xf32>
    %70 = math.tanh %69 : vector<8x256xf32>
    %71 = arith.truncf %70 : vector<8x256xf32> to vector<8x256xbf16>
    %72 = tpu.concatenate %71, %55 in 1 : vector<8x256xbf16>, vector<8x256xbf16> -> vector<8x512xbf16>
    %c0_44 = arith.constant 0 : index
    %c0_45 = arith.constant 0 : index
    %c0_46 = arith.constant 0 : index
    %73 = vector.load %arg3[%c0_44, %c0_45, %c0_46] : memref<2x512x256xbf16, #tpu.memory_space<vmem>>, vector<1x512x256xbf16>
    %74 = vector.shape_cast %73 : vector<1x512x256xbf16> to vector<512x256xbf16>
    %cst_47 = arith.constant dense<0.000000e+00> : vector<8x256xf32>
    %75 = tpu.matmul %72, %74, %cst_47 {dimension_numbers = #tpu.dot_dimension_numbers<[1], [0], [0], [1], [0, 0, 1, 1], [], []>} : vector<8x512xbf16>, vector<512x256xbf16>, vector<8x256xf32> -> vector<8x256xf32>
    %76 = arith.addf %75, %6 : vector<8x256xf32>
    %77 = math.tanh %76 : vector<8x256xf32>
    %78 = arith.truncf %77 : vector<8x256xf32> to vector<8x256xbf16>
    %79 = tpu.concatenate %78, %62 in 1 : vector<8x256xbf16>, vector<8x256xbf16> -> vector<8x512xbf16>
    %c1_48 = arith.constant 1 : index
    %c0_49 = arith.constant 0 : index
    %c0_50 = arith.constant 0 : index
    %80 = vector.load %arg3[%c1_48, %c0_49, %c0_50] : memref<2x512x256xbf16, #tpu.memory_space<vmem>>, vector<1x512x256xbf16>
    %81 = vector.shape_cast %80 : vector<1x512x256xbf16> to vector<512x256xbf16>
    %cst_51 = arith.constant dense<0.000000e+00> : vector<8x256xf32>
    %82 = tpu.matmul %79, %81, %cst_51 {dimension_numbers = #tpu.dot_dimension_numbers<[1], [0], [0], [1], [0, 0, 1, 1], [], []>} : vector<8x512xbf16>, vector<512x256xbf16>, vector<8x256xf32> -> vector<8x256xf32>
    %83 = arith.addf %82, %10 : vector<8x256xf32>
    %84 = math.tanh %83 : vector<8x256xf32>
    %85 = arith.truncf %84 : vector<8x256xf32> to vector<8x256xbf16>
    %c3_i32 = arith.constant 3 : i32
    %86 = arith.index_cast %c3_i32 : i32 to index
    %c0_52 = arith.constant 0 : index
    %c0_53 = arith.constant 0 : index
    %87 = vector.load %arg1[%86, %c0_52, %c0_53] : memref<8x8x256xbf16, #tpu.memory_space<vmem>>, vector<1x8x256xbf16>
    %88 = vector.shape_cast %87 : vector<1x8x256xbf16> to vector<8x256xbf16>
    %89 = arith.extf %88 : vector<8x256xbf16> to vector<8x256xf32>
    %c0_54 = arith.constant 0 : index
    %c0_55 = arith.constant 0 : index
    %90 = vector.load %arg2[%c0_54, %c0_55] : memref<256x256xbf16, #tpu.memory_space<vmem>>, vector<256x256xbf16>
    %cst_56 = arith.constant dense<0.000000e+00> : vector<8x256xf32>
    %91 = tpu.matmul %71, %90, %cst_56 {dimension_numbers = #tpu.dot_dimension_numbers<[1], [0], [0], [1], [0, 0, 1, 1], [], []>} : vector<8x256xbf16>, vector<256x256xbf16>, vector<8x256xf32> -> vector<8x256xf32>
    %92 = arith.addf %91, %89 : vector<8x256xf32>
    %93 = math.tanh %92 : vector<8x256xf32>
    %94 = arith.truncf %93 : vector<8x256xf32> to vector<8x256xbf16>
    %95 = tpu.concatenate %94, %78 in 1 : vector<8x256xbf16>, vector<8x256xbf16> -> vector<8x512xbf16>
    %c0_57 = arith.constant 0 : index
    %c0_58 = arith.constant 0 : index
    %c0_59 = arith.constant 0 : index
    %96 = vector.load %arg3[%c0_57, %c0_58, %c0_59] : memref<2x512x256xbf16, #tpu.memory_space<vmem>>, vector<1x512x256xbf16>
    %97 = vector.shape_cast %96 : vector<1x512x256xbf16> to vector<512x256xbf16>
    %cst_60 = arith.constant dense<0.000000e+00> : vector<8x256xf32>
    %98 = tpu.matmul %95, %97, %cst_60 {dimension_numbers = #tpu.dot_dimension_numbers<[1], [0], [0], [1], [0, 0, 1, 1], [], []>} : vector<8x512xbf16>, vector<512x256xbf16>, vector<8x256xf32> -> vector<8x256xf32>
    %99 = arith.addf %98, %6 : vector<8x256xf32>
    %100 = math.tanh %99 : vector<8x256xf32>
    %101 = arith.truncf %100 : vector<8x256xf32> to vector<8x256xbf16>
    %102 = tpu.concatenate %101, %85 in 1 : vector<8x256xbf16>, vector<8x256xbf16> -> vector<8x512xbf16>
    %c1_61 = arith.constant 1 : index
    %c0_62 = arith.constant 0 : index
    %c0_63 = arith.constant 0 : index
    %103 = vector.load %arg3[%c1_61, %c0_62, %c0_63] : memref<2x512x256xbf16, #tpu.memory_space<vmem>>, vector<1x512x256xbf16>
    %104 = vector.shape_cast %103 : vector<1x512x256xbf16> to vector<512x256xbf16>
    %cst_64 = arith.constant dense<0.000000e+00> : vector<8x256xf32>
    %105 = tpu.matmul %102, %104, %cst_64 {dimension_numbers = #tpu.dot_dimension_numbers<[1], [0], [0], [1], [0, 0, 1, 1], [], []>} : vector<8x512xbf16>, vector<512x256xbf16>, vector<8x256xf32> -> vector<8x256xf32>
    %106 = arith.addf %105, %10 : vector<8x256xf32>
    %107 = math.tanh %106 : vector<8x256xf32>
    %108 = arith.truncf %107 : vector<8x256xf32> to vector<8x256xbf16>
    %c4_i32 = arith.constant 4 : i32
    %109 = arith.index_cast %c4_i32 : i32 to index
    %c0_65 = arith.constant 0 : index
    %c0_66 = arith.constant 0 : index
    %110 = vector.load %arg1[%109, %c0_65, %c0_66] : memref<8x8x256xbf16, #tpu.memory_space<vmem>>, vector<1x8x256xbf16>
    %111 = vector.shape_cast %110 : vector<1x8x256xbf16> to vector<8x256xbf16>
    %112 = arith.extf %111 : vector<8x256xbf16> to vector<8x256xf32>
    %c0_67 = arith.constant 0 : index
    %c0_68 = arith.constant 0 : index
    %113 = vector.load %arg2[%c0_67, %c0_68] : memref<256x256xbf16, #tpu.memory_space<vmem>>, vector<256x256xbf16>
    %cst_69 = arith.constant dense<0.000000e+00> : vector<8x256xf32>
    %114 = tpu.matmul %94, %113, %cst_69 {dimension_numbers = #tpu.dot_dimension_numbers<[1], [0], [0], [1], [0, 0, 1, 1], [], []>} : vector<8x256xbf16>, vector<256x256xbf16>, vector<8x256xf32> -> vector<8x256xf32>
    %115 = arith.addf %114, %112 : vector<8x256xf32>
    %116 = math.tanh %115 : vector<8x256xf32>
    %117 = arith.truncf %116 : vector<8x256xf32> to vector<8x256xbf16>
    %118 = tpu.concatenate %117, %101 in 1 : vector<8x256xbf16>, vector<8x256xbf16> -> vector<8x512xbf16>
    %c0_70 = arith.constant 0 : index
    %c0_71 = arith.constant 0 : index
    %c0_72 = arith.constant 0 : index
    %119 = vector.load %arg3[%c0_70, %c0_71, %c0_72] : memref<2x512x256xbf16, #tpu.memory_space<vmem>>, vector<1x512x256xbf16>
    %120 = vector.shape_cast %119 : vector<1x512x256xbf16> to vector<512x256xbf16>
    %cst_73 = arith.constant dense<0.000000e+00> : vector<8x256xf32>
    %121 = tpu.matmul %118, %120, %cst_73 {dimension_numbers = #tpu.dot_dimension_numbers<[1], [0], [0], [1], [0, 0, 1, 1], [], []>} : vector<8x512xbf16>, vector<512x256xbf16>, vector<8x256xf32> -> vector<8x256xf32>
    %122 = arith.addf %121, %6 : vector<8x256xf32>
    %123 = math.tanh %122 : vector<8x256xf32>
    %124 = arith.truncf %123 : vector<8x256xf32> to vector<8x256xbf16>
    %125 = tpu.concatenate %124, %108 in 1 : vector<8x256xbf16>, vector<8x256xbf16> -> vector<8x512xbf16>
    %c1_74 = arith.constant 1 : index
    %c0_75 = arith.constant 0 : index
    %c0_76 = arith.constant 0 : index
    %126 = vector.load %arg3[%c1_74, %c0_75, %c0_76] : memref<2x512x256xbf16, #tpu.memory_space<vmem>>, vector<1x512x256xbf16>
    %127 = vector.shape_cast %126 : vector<1x512x256xbf16> to vector<512x256xbf16>
    %cst_77 = arith.constant dense<0.000000e+00> : vector<8x256xf32>
    %128 = tpu.matmul %125, %127, %cst_77 {dimension_numbers = #tpu.dot_dimension_numbers<[1], [0], [0], [1], [0, 0, 1, 1], [], []>} : vector<8x512xbf16>, vector<512x256xbf16>, vector<8x256xf32> -> vector<8x256xf32>
    %129 = arith.addf %128, %10 : vector<8x256xf32>
    %130 = math.tanh %129 : vector<8x256xf32>
    %131 = arith.truncf %130 : vector<8x256xf32> to vector<8x256xbf16>
    %c5_i32 = arith.constant 5 : i32
    %132 = arith.index_cast %c5_i32 : i32 to index
    %c0_78 = arith.constant 0 : index
    %c0_79 = arith.constant 0 : index
    %133 = vector.load %arg1[%132, %c0_78, %c0_79] : memref<8x8x256xbf16, #tpu.memory_space<vmem>>, vector<1x8x256xbf16>
    %134 = vector.shape_cast %133 : vector<1x8x256xbf16> to vector<8x256xbf16>
    %135 = arith.extf %134 : vector<8x256xbf16> to vector<8x256xf32>
    %c0_80 = arith.constant 0 : index
    %c0_81 = arith.constant 0 : index
    %136 = vector.load %arg2[%c0_80, %c0_81] : memref<256x256xbf16, #tpu.memory_space<vmem>>, vector<256x256xbf16>
    %cst_82 = arith.constant dense<0.000000e+00> : vector<8x256xf32>
    %137 = tpu.matmul %117, %136, %cst_82 {dimension_numbers = #tpu.dot_dimension_numbers<[1], [0], [0], [1], [0, 0, 1, 1], [], []>} : vector<8x256xbf16>, vector<256x256xbf16>, vector<8x256xf32> -> vector<8x256xf32>
    %138 = arith.addf %137, %135 : vector<8x256xf32>
    %139 = math.tanh %138 : vector<8x256xf32>
    %140 = arith.truncf %139 : vector<8x256xf32> to vector<8x256xbf16>
    %141 = tpu.concatenate %140, %124 in 1 : vector<8x256xbf16>, vector<8x256xbf16> -> vector<8x512xbf16>
    %c0_83 = arith.constant 0 : index
    %c0_84 = arith.constant 0 : index
    %c0_85 = arith.constant 0 : index
    %142 = vector.load %arg3[%c0_83, %c0_84, %c0_85] : memref<2x512x256xbf16, #tpu.memory_space<vmem>>, vector<1x512x256xbf16>
    %143 = vector.shape_cast %142 : vector<1x512x256xbf16> to vector<512x256xbf16>
    %cst_86 = arith.constant dense<0.000000e+00> : vector<8x256xf32>
    %144 = tpu.matmul %141, %143, %cst_86 {dimension_numbers = #tpu.dot_dimension_numbers<[1], [0], [0], [1], [0, 0, 1, 1], [], []>} : vector<8x512xbf16>, vector<512x256xbf16>, vector<8x256xf32> -> vector<8x256xf32>
    %145 = arith.addf %144, %6 : vector<8x256xf32>
    %146 = math.tanh %145 : vector<8x256xf32>
    %147 = arith.truncf %146 : vector<8x256xf32> to vector<8x256xbf16>
    %148 = tpu.concatenate %147, %131 in 1 : vector<8x256xbf16>, vector<8x256xbf16> -> vector<8x512xbf16>
    %c1_87 = arith.constant 1 : index
    %c0_88 = arith.constant 0 : index
    %c0_89 = arith.constant 0 : index
    %149 = vector.load %arg3[%c1_87, %c0_88, %c0_89] : memref<2x512x256xbf16, #tpu.memory_space<vmem>>, vector<1x512x256xbf16>
    %150 = vector.shape_cast %149 : vector<1x512x256xbf16> to vector<512x256xbf16>
    %cst_90 = arith.constant dense<0.000000e+00> : vector<8x256xf32>
    %151 = tpu.matmul %148, %150, %cst_90 {dimension_numbers = #tpu.dot_dimension_numbers<[1], [0], [0], [1], [0, 0, 1, 1], [], []>} : vector<8x512xbf16>, vector<512x256xbf16>, vector<8x256xf32> -> vector<8x256xf32>
    %152 = arith.addf %151, %10 : vector<8x256xf32>
    %153 = math.tanh %152 : vector<8x256xf32>
    %154 = arith.truncf %153 : vector<8x256xf32> to vector<8x256xbf16>
    %c6_i32 = arith.constant 6 : i32
    %155 = arith.index_cast %c6_i32 : i32 to index
    %c0_91 = arith.constant 0 : index
    %c0_92 = arith.constant 0 : index
    %156 = vector.load %arg1[%155, %c0_91, %c0_92] : memref<8x8x256xbf16, #tpu.memory_space<vmem>>, vector<1x8x256xbf16>
    %157 = vector.shape_cast %156 : vector<1x8x256xbf16> to vector<8x256xbf16>
    %158 = arith.extf %157 : vector<8x256xbf16> to vector<8x256xf32>
    %c0_93 = arith.constant 0 : index
    %c0_94 = arith.constant 0 : index
    %159 = vector.load %arg2[%c0_93, %c0_94] : memref<256x256xbf16, #tpu.memory_space<vmem>>, vector<256x256xbf16>
    %cst_95 = arith.constant dense<0.000000e+00> : vector<8x256xf32>
    %160 = tpu.matmul %140, %159, %cst_95 {dimension_numbers = #tpu.dot_dimension_numbers<[1], [0], [0], [1], [0, 0, 1, 1], [], []>} : vector<8x256xbf16>, vector<256x256xbf16>, vector<8x256xf32> -> vector<8x256xf32>
    %161 = arith.addf %160, %158 : vector<8x256xf32>
    %162 = math.tanh %161 : vector<8x256xf32>
    %163 = arith.truncf %162 : vector<8x256xf32> to vector<8x256xbf16>
    %164 = tpu.concatenate %163, %147 in 1 : vector<8x256xbf16>, vector<8x256xbf16> -> vector<8x512xbf16>
    %c0_96 = arith.constant 0 : index
    %c0_97 = arith.constant 0 : index
    %c0_98 = arith.constant 0 : index
    %165 = vector.load %arg3[%c0_96, %c0_97, %c0_98] : memref<2x512x256xbf16, #tpu.memory_space<vmem>>, vector<1x512x256xbf16>
    %166 = vector.shape_cast %165 : vector<1x512x256xbf16> to vector<512x256xbf16>
    %cst_99 = arith.constant dense<0.000000e+00> : vector<8x256xf32>
    %167 = tpu.matmul %164, %166, %cst_99 {dimension_numbers = #tpu.dot_dimension_numbers<[1], [0], [0], [1], [0, 0, 1, 1], [], []>} : vector<8x512xbf16>, vector<512x256xbf16>, vector<8x256xf32> -> vector<8x256xf32>
    %168 = arith.addf %167, %6 : vector<8x256xf32>
    %169 = math.tanh %168 : vector<8x256xf32>
    %170 = arith.truncf %169 : vector<8x256xf32> to vector<8x256xbf16>
    %171 = tpu.concatenate %170, %154 in 1 : vector<8x256xbf16>, vector<8x256xbf16> -> vector<8x512xbf16>
    %c1_100 = arith.constant 1 : index
    %c0_101 = arith.constant 0 : index
    %c0_102 = arith.constant 0 : index
    %172 = vector.load %arg3[%c1_100, %c0_101, %c0_102] : memref<2x512x256xbf16, #tpu.memory_space<vmem>>, vector<1x512x256xbf16>
    %173 = vector.shape_cast %172 : vector<1x512x256xbf16> to vector<512x256xbf16>
    %cst_103 = arith.constant dense<0.000000e+00> : vector<8x256xf32>
    %174 = tpu.matmul %171, %173, %cst_103 {dimension_numbers = #tpu.dot_dimension_numbers<[1], [0], [0], [1], [0, 0, 1, 1], [], []>} : vector<8x512xbf16>, vector<512x256xbf16>, vector<8x256xf32> -> vector<8x256xf32>
    %175 = arith.addf %174, %10 : vector<8x256xf32>
    %176 = math.tanh %175 : vector<8x256xf32>
    %177 = arith.truncf %176 : vector<8x256xf32> to vector<8x256xbf16>
    %c7_i32 = arith.constant 7 : i32
    %178 = arith.index_cast %c7_i32 : i32 to index
    %c0_104 = arith.constant 0 : index
    %c0_105 = arith.constant 0 : index
    %179 = vector.load %arg1[%178, %c0_104, %c0_105] : memref<8x8x256xbf16, #tpu.memory_space<vmem>>, vector<1x8x256xbf16>
    %180 = vector.shape_cast %179 : vector<1x8x256xbf16> to vector<8x256xbf16>
    %181 = arith.extf %180 : vector<8x256xbf16> to vector<8x256xf32>
    %c0_106 = arith.constant 0 : index
    %c0_107 = arith.constant 0 : index
    %182 = vector.load %arg2[%c0_106, %c0_107] : memref<256x256xbf16, #tpu.memory_space<vmem>>, vector<256x256xbf16>
    %cst_108 = arith.constant dense<0.000000e+00> : vector<8x256xf32>
    %183 = tpu.matmul %163, %182, %cst_108 {dimension_numbers = #tpu.dot_dimension_numbers<[1], [0], [0], [1], [0, 0, 1, 1], [], []>} : vector<8x256xbf16>, vector<256x256xbf16>, vector<8x256xf32> -> vector<8x256xf32>
    %184 = arith.addf %183, %181 : vector<8x256xf32>
    %185 = math.tanh %184 : vector<8x256xf32>
    %186 = arith.truncf %185 : vector<8x256xf32> to vector<8x256xbf16>
    %187 = tpu.concatenate %186, %170 in 1 : vector<8x256xbf16>, vector<8x256xbf16> -> vector<8x512xbf16>
    %c0_109 = arith.constant 0 : index
    %c0_110 = arith.constant 0 : index
    %c0_111 = arith.constant 0 : index
    %188 = vector.load %arg3[%c0_109, %c0_110, %c0_111] : memref<2x512x256xbf16, #tpu.memory_space<vmem>>, vector<1x512x256xbf16>
    %189 = vector.shape_cast %188 : vector<1x512x256xbf16> to vector<512x256xbf16>
    %cst_112 = arith.constant dense<0.000000e+00> : vector<8x256xf32>
    %190 = tpu.matmul %187, %189, %cst_112 {dimension_numbers = #tpu.dot_dimension_numbers<[1], [0], [0], [1], [0, 0, 1, 1], [], []>} : vector<8x512xbf16>, vector<512x256xbf16>, vector<8x256xf32> -> vector<8x256xf32>
    %191 = arith.addf %190, %6 : vector<8x256xf32>
    %192 = math.tanh %191 : vector<8x256xf32>
    %193 = arith.truncf %192 : vector<8x256xf32> to vector<8x256xbf16>
    %194 = tpu.concatenate %193, %177 in 1 : vector<8x256xbf16>, vector<8x256xbf16> -> vector<8x512xbf16>
    %c1_113 = arith.constant 1 : index
    %c0_114 = arith.constant 0 : index
    %c0_115 = arith.constant 0 : index
    %195 = vector.load %arg3[%c1_113, %c0_114, %c0_115] : memref<2x512x256xbf16, #tpu.memory_space<vmem>>, vector<1x512x256xbf16>
    %196 = vector.shape_cast %195 : vector<1x512x256xbf16> to vector<512x256xbf16>
    %cst_116 = arith.constant dense<0.000000e+00> : vector<8x256xf32>
    %197 = tpu.matmul %194, %196, %cst_116 {dimension_numbers = #tpu.dot_dimension_numbers<[1], [0], [0], [1], [0, 0, 1, 1], [], []>} : vector<8x512xbf16>, vector<512x256xbf16>, vector<8x256xf32> -> vector<8x256xf32>
    %198 = arith.addf %197, %10 : vector<8x256xf32>
    %199 = math.tanh %198 : vector<8x256xf32>
    %200 = arith.truncf %199 : vector<8x256xf32> to vector<8x256xbf16>
    %c8_i32 = arith.constant 8 : i32
    %c0_117 = arith.constant 0 : index
    %c0_118 = arith.constant 0 : index
    %c0_119 = arith.constant 0 : index
    %201 = vector.load %arg8[%c0_117, %c0_118, %c0_119] : memref<3x8x256xbf16, #tpu.memory_space<vmem>>, vector<1x8x256xbf16>
    %202 = vector.shape_cast %201 : vector<1x8x256xbf16> to vector<8x256xbf16>
    %203 = vector.shape_cast %186 : vector<8x256xbf16> to vector<1x8x256xbf16>
    tpu.vector_store %arg8[%c0_117, %c0_118, %c0_119], %203 {strides = array<i32>} : memref<3x8x256xbf16, #tpu.memory_space<vmem>>, vector<1x8x256xbf16>,
    %c1_120 = arith.constant 1 : index
    %c0_121 = arith.constant 0 : index
    %c0_122 = arith.constant 0 : index
    %204 = vector.load %arg8[%c1_120, %c0_121, %c0_122] : memref<3x8x256xbf16, #tpu.memory_space<vmem>>, vector<1x8x256xbf16>
    %205 = vector.shape_cast %204 : vector<1x8x256xbf16> to vector<8x256xbf16>
    %206 = vector.shape_cast %193 : vector<8x256xbf16> to vector<1x8x256xbf16>
    tpu.vector_store %arg8[%c1_120, %c0_121, %c0_122], %206 {strides = array<i32>} : memref<3x8x256xbf16, #tpu.memory_space<vmem>>, vector<1x8x256xbf16>,
    %c2_123 = arith.constant 2 : index
    %c0_124 = arith.constant 0 : index
    %c0_125 = arith.constant 0 : index
    %207 = vector.load %arg8[%c2_123, %c0_124, %c0_125] : memref<3x8x256xbf16, #tpu.memory_space<vmem>>, vector<1x8x256xbf16>
    %208 = vector.shape_cast %207 : vector<1x8x256xbf16> to vector<8x256xbf16>
    %209 = vector.shape_cast %200 : vector<8x256xbf16> to vector<1x8x256xbf16>
    tpu.vector_store %arg8[%c2_123, %c0_124, %c0_125], %209 {strides = array<i32>} : memref<3x8x256xbf16, #tpu.memory_space<vmem>>, vector<1x8x256xbf16>,
    %c0_i32_126 = arith.constant 0 : i32
    %210 = arith.cmpi eq, %arg0, %c0_i32_126 : i32
    %211 = arith.extui %210 : i1 to i32
    %c0_i32_127 = arith.constant 0 : i32
    %212 = arith.cmpi ne, %211, %c0_i32_127 : i32
    scf.if %212 {
      %c0_128 = arith.constant 0 : index
      %c0_129 = arith.constant 0 : index
      %213 = vector.load %arg5[%c0_128, %c0_129] : memref<256x128xbf16, #tpu.memory_space<vmem>>, vector<256x128xbf16>
      %cst_130 = arith.constant dense<0.000000e+00> : vector<8x128xf32>
      %214 = tpu.matmul %200, %213, %cst_130 {dimension_numbers = #tpu.dot_dimension_numbers<[1], [0], [0], [1], [0, 0, 1, 1], [], []>} : vector<8x256xbf16>, vector<256x128xbf16>, vector<8x128xf32> -> vector<8x128xf32>
      %c0_131 = arith.constant 0 : index
      %c0_132 = arith.constant 0 : index
      %215 = vector.load %arg6[%c0_131, %c0_132] : memref<1x128xf32, #tpu.memory_space<vmem>>, vector<1x128xf32>
      %216 = vector.broadcast %215 : vector<1x128xf32> to vector<8x128xf32>
      %217 = arith.addf %214, %216 : vector<8x128xf32>
      %c0_133 = arith.constant 0 : index
      %c0_134 = arith.constant 0 : index
      %218 = vector.load %arg7[%c0_133, %c0_134] : memref<8x128xf32, #tpu.memory_space<vmem>>, vector<8x128xf32>
      tpu.vector_store %arg7[%c0_133, %c0_134], %217 {strides = array<i32>} : memref<8x128xf32, #tpu.memory_space<vmem>>, vector<8x128xf32>,
    } else {
    }
    return
  }
  func.func @transform_0(%arg0: i32) -> (i32, i32, i32) {
    %c0_i32 = arith.constant 0 : i32
    %c0_i32_0 = arith.constant 0 : i32
    %c0_i32_1 = arith.constant 0 : i32
    return %arg0, %c0_i32, %c0_i32_0 : i32, i32, i32
  }
  func.func @transform_1(%arg0: i32) -> (i32, i32) {
    %c0_i32 = arith.constant 0 : i32
    %c0_i32_0 = arith.constant 0 : i32
    %c0_i32_1 = arith.constant 0 : i32
    return %c0_i32, %c0_i32_0 : i32, i32
  }
  func.func @transform_2(%arg0: i32) -> (i32, i32, i32) {
    %c0_i32 = arith.constant 0 : i32
    %c0_i32_0 = arith.constant 0 : i32
    %c0_i32_1 = arith.constant 0 : i32
    %c0_i32_2 = arith.constant 0 : i32
    return %c0_i32, %c0_i32_0, %c0_i32_1 : i32, i32, i32
  }
  func.func @transform_3(%arg0: i32) -> (i32, i32, i32) {
    %c0_i32 = arith.constant 0 : i32
    %c0_i32_0 = arith.constant 0 : i32
    %c0_i32_1 = arith.constant 0 : i32
    %c0_i32_2 = arith.constant 0 : i32
    return %c0_i32, %c0_i32_0, %c0_i32_1 : i32, i32, i32
  }
  func.func @transform_4(%arg0: i32) -> (i32, i32) {
    %c0_i32 = arith.constant 0 : i32
    %c0_i32_0 = arith.constant 0 : i32
    %c0_i32_1 = arith.constant 0 : i32
    return %c0_i32, %c0_i32_0 : i32, i32
  }
  func.func @transform_5(%arg0: i32) -> (i32, i32) {
    %c0_i32 = arith.constant 0 : i32
    %c0_i32_0 = arith.constant 0 : i32
    %c0_i32_1 = arith.constant 0 : i32
    return %c0_i32, %c0_i32_0 : i32, i32
  }
  func.func @transform_6(%arg0: i32) -> (i32, i32) {
    %c0_i32 = arith.constant 0 : i32
    %c0_i32_0 = arith.constant 0 : i32
    %c0_i32_1 = arith.constant 0 : i32
    return %c0_i32, %c0_i32_0 : i32, i32
  }
}

</mosaic_0001>

<llo_original>
// kernel: tpu_custom_call.1
$region0: #{tpu_custom_call.1}
  #allocation0 [shape = 'u32[]', space=smem, size = 0x4, offset = 0x4, fixed_abs, tag = 'smem constant byte address 0x4 - core index']
  #allocation1 [shape = 'u32[144,128]{1,0:T(1,128)}', space=vmem, size = 0x12000, scoped, tag = 'internal scratch']
  #allocation2 [shape = 'bf16[3,8,256]{2,1,0:T(8,128)(2,1)}', space=vmem, size = 0x3000, scoped, tag = 'scratch operand']
  %s0 = inlined_call_operand.hbm [shape: bf16[8,8,256], index: 0, kind: input, shape index: {}]
  %s1 = inlined_call_operand.hbm [shape: bf16[256,256], index: 1, kind: input, shape index: {}]
  %s2 = inlined_call_operand.hbm [shape: bf16[2,512,256], index: 2, kind: input, shape index: {}]
  %s3 = inlined_call_operand.vmem [shape: f32[2,1,256], index: 3, kind: input, shape index: {}]
  %s4 = inlined_call_operand.hbm [shape: bf16[256,128], index: 4, kind: input, shape index: {}]
  %s5 = inlined_call_operand.vmem [shape: f32[1,128], index: 5, kind: input, shape index: {}]
  %s6 = inlined_call_operand.hbm [shape: f32[8,128], index: 6, kind: output, shape index: {}]
  %s7 = sld [smem:[#allocation0]]
  $region58: #{tpu_custom_call.1} parent=0
    _
  %s9 = ssub.s32 1, %s7
  %s10 = scalar_select 0, %s9, %s7
  $region1: #{tpu_custom_call.1} parent=0
    #allocation3 [shape = 'u8[32768]{0}', space=vmem, size = 0x8000, scoped, tag = 'input window, operand 0, single buffered']
    #allocation4 [shape = 's32[1]{0}', space=sflag, size = 0x4, scoped, tag = 'scoped memory for tpu_custom_call.1']
    #allocation5 [shape = 's32[1]{0}', space=sflag, size = 0x4, scoped, tag = 'scoped memory for tpu_custom_call.1']
    #allocation6 [shape = 'u8[131072]{0}', space=vmem, size = 0x20000, scoped, tag = 'input window, operand 1, single buffered']
    #allocation7 [shape = 's32[1]{0}', space=sflag, size = 0x4, scoped, tag = 'scoped memory for tpu_custom_call.1']
    #allocation8 [shape = 'u8[524288]{0}', space=vmem, size = 0x80000, scoped, tag = 'input window, operand 2, single buffered']
    #allocation9 [shape = 'u8[65536]{0}', space=vmem, size = 0x10000, scoped, tag = 'input window, operand 4, single buffered']
    #allocation10 [shape = 's32[1]{0}', space=sflag, size = 0x4, scoped, tag = 'scoped memory for tpu_custom_call.1']
    #allocation11 [shape = 'u8[4096]{0}', space=vmem, size = 0x1000, scoped, tag = 'output window, operand 0, single buffered']
    %11 = vsyncpa [#allocation4], 0
    %12 = vsyncpa [#allocation7], 0
    %13 = vsyncpa [#allocation10], 0
    %14 = vsyncpa [#allocation5], 0
    // Predicated region
    $region2: #{tpu_custom_call.1} parent=1 // pred_check
      _
    $region3: #{tpu_custom_call.1} parent=1 // pred_check_branch
      %16 = sbr.rel (0) target = $region5
    $region4: #{tpu_custom_call.1} parent=1 // pred_region
      %s18 = ssub.s32 1024, 1024
      %19 = vsyncadd [#allocation4], %s18
      %s20 = sshll.u32 [#allocation3], 4
      %s21 = int_to_ptr.vmem [resolvable:$true] %s20
      %26 = dma.hbm_to_vmem [thread:$0]  %s0, 1024, %s21, [#allocation4], 128, 128, 8
    $region5: #{tpu_custom_call.1} parent=1 // pred_fallthru
      _
    // Predicated region
    $region6: #{tpu_custom_call.1} parent=1 // pred_check
      _
    $region7: #{tpu_custom_call.1} parent=1 // pred_check_branch
      %28 = sbr.rel (0) target = $region9
    $region8: #{tpu_custom_call.1} parent=1 // pred_region
      %s30 = ssub.s32 4096, 4096
      %31 = vsyncadd [#allocation7], %s30
      %s32 = sshll.u32 [#allocation6], 4
      %s33 = int_to_ptr.vmem [resolvable:$true] %s32
      %38 = dma.hbm_to_vmem [thread:$0]  %s1, 4096, %s33, [#allocation7], 128, 128, 8
    $region9: #{tpu_custom_call.1} parent=1 // pred_fallthru
      _
    // Predicated region
    $region10: #{tpu_custom_call.1} parent=1 // pred_check
      _
    $region11: #{tpu_custom_call.1} parent=1 // pred_check_branch
      %40 = sbr.rel (0) target = $region13
    $region12: #{tpu_custom_call.1} parent=1 // pred_region
      %s42 = ssub.s32 16384, 16384
      %43 = vsyncadd [#allocation7], %s42
      %s44 = sshll.u32 [#allocation8], 4
      %s45 = int_to_ptr.vmem [resolvable:$true] %s44
      %50 = dma.hbm_to_vmem [thread:$0]  %s2, 16384, %s45, [#allocation7], 128, 128, 8
    $region13: #{tpu_custom_call.1} parent=1 // pred_fallthru
      _
    // Predicated region
    $region14: #{tpu_custom_call.1} parent=1 // pred_check
      _
    $region15: #{tpu_custom_call.1} parent=1 // pred_check_branch
      %52 = sbr.rel (0) target = $region17
    $region16: #{tpu_custom_call.1} parent=1 // pred_region
      _
    $region17: #{tpu_custom_call.1} parent=1 // pred_fallthru
      _
    // Predicated region
    $region18: #{tpu_custom_call.1} parent=1 // pred_check
      _
    $region19: #{tpu_custom_call.1} parent=1 // pred_check_branch
      %54 = sbr.rel (0) target = $region21
    $region20: #{tpu_custom_call.1} parent=1 // pred_region
      %s56 = ssub.s32 2048, 2048
      %57 = vsyncadd [#allocation10], %s56
      %s58 = sshll.u32 [#allocation9], 4
      %s59 = int_to_ptr.vmem [resolvable:$true] %s58
      %64 = dma.hbm_to_vmem [thread:$0]  %s4, 2048, %s59, [#allocation10], 64, 64, 4
    $region21: #{tpu_custom_call.1} parent=1 // pred_fallthru
      _
    // Predicated region
    $region22: #{tpu_custom_call.1} parent=1 // pred_check
      _
    $region23: #{tpu_custom_call.1} parent=1 // pred_check_branch
      %66 = sbr.rel (0) target = $region25
    $region24: #{tpu_custom_call.1} parent=1 // pred_region
      _
    $region25: #{tpu_custom_call.1} parent=1 // pred_fallthru
      _
    // Predicated region
    $region26: #{tpu_custom_call.1} parent=1 // pred_check
      _
    $region27: #{tpu_custom_call.1} parent=1 // pred_check_branch
      %68 = sbr.rel (0) target = $region29
    $region28: #{tpu_custom_call.1} parent=1 // pred_region
      %69 = dma.done [#allocation4], 1024
    $region29: #{tpu_custom_call.1} parent=1 // pred_fallthru
      _
    // Predicated region
    $region30: #{tpu_custom_call.1} parent=1 // pred_check
      _
    $region31: #{tpu_custom_call.1} parent=1 // pred_check_branch
      %71 = sbr.rel (0) target = $region33
    $region32: #{tpu_custom_call.1} parent=1 // pred_region
      %72 = dma.done [#allocation7], 4096
    $region33: #{tpu_custom_call.1} parent=1 // pred_fallthru
      _
    // Predicated region
    $region34: #{tpu_custom_call.1} parent=1 // pred_check
      _
    $region35: #{tpu_custom_call.1} parent=1 // pred_check_branch
      %74 = sbr.rel (0) target = $region37
    $region36: #{tpu_custom_call.1} parent=1 // pred_region
      %75 = dma.done [#allocation7], 16384
    $region37: #{tpu_custom_call.1} parent=1 // pred_fallthru
      _
    // Predicated region
    $region38: #{tpu_custom_call.1} parent=1 // pred_check
      _
    $region39: #{tpu_custom_call.1} parent=1 // pred_check_branch
      %77 = sbr.rel (0) target = $region41
    $region40: #{tpu_custom_call.1} parent=1 // pred_region
      %78 = dma.done [#allocation10], 2048
    $region41: #{tpu_custom_call.1} parent=1 // pred_fallthru
      _
    %p80 = scmp.eq.s32.totalorder 0, 0
    // Predicated region
    $region42: #{tpu_custom_call.1} parent=1 // pred_check
      %p81 = pneg %p80
    $region43: #{tpu_custom_call.1} parent=1 // pred_check_branch
      %83 = sbr.rel (%p81) target = $region45
    $region44: #{tpu_custom_call.1} parent=1 // pred_region
      %84 = vst [vmem:[#allocation2] sm:$0xff] 0
      %85 = vst [vmem:[#allocation2 + $0x8] sm:$0xff] 0
      %86 = vst [vmem:[#allocation2 + $0x10] sm:$0xff] 0
    $region45: #{tpu_custom_call.1} parent=1 // pred_fallthru
      _
    %v87 = vld [vmem:[%s3] sm:$0x3]
    %v89 = vlaneseq
    %v90 = vshrl.u32 %v89, 7
    %v91 = vsub.s32 0, %v90
    %v92 = vrot.slane %v87, %v91
    %v93 = vlaneseq
    %v94 = vshrl.u32 %v93, 7
    %v95 = vsub.s32 1, %v94
    %v96 = vrot.slane %v87, %v95
    %s99 = scalar_lea.vmem %s3, 2
    %v100 = vld [vmem:[%s99] sm:$0x3]
    %v102 = vlaneseq
    %v103 = vshrl.u32 %v102, 7
    %v104 = vsub.s32 0, %v103
    %v105 = vrot.slane %v100, %v104
    %v106 = vlaneseq
    %v107 = vshrl.u32 %v106, 7
    %v108 = vsub.s32 1, %v107
    %v109 = vrot.slane %v100, %v108
    %v112 = vld [vmem:[#allocation2] sm:$0xff]
    %s113 = scalar_lea.vmem [#allocation2], 8
    %v114 = vld [vmem:[%s113] sm:$0xff]
    %s115 = scalar_lea.vmem [#allocation2], 16
    %v116 = vld [vmem:[%s115] sm:$0xff]
    %v117 = vld [vmem:[#allocation3] sm:$0xff]
    %v118 = vunpack.c.l.bf16 %v117
    %v119 = vunpack.c.h.bf16 %v117
    %v120 = vld [vmem:[#allocation6] sm:$0xff]
    %v121 = vld [vmem:[#allocation6 + $0x8] sm:$0xff]
    %v122 = vld [vmem:[#allocation6 + $0x10] sm:$0xff]
    %v123 = vld [vmem:[#allocation6 + $0x18] sm:$0xff]
    %v124 = vld [vmem:[#allocation6 + $0x20] sm:$0xff]
    %v125 = vld [vmem:[#allocation6 + $0x28] sm:$0xff]
    %v126 = vld [vmem:[#allocation6 + $0x30] sm:$0xff]
    %v127 = vld [vmem:[#allocation6 + $0x38] sm:$0xff]
    %v128 = vld [vmem:[#allocation6 + $0x40] sm:$0xff]
    %v129 = vld [vmem:[#allocation6 + $0x48] sm:$0xff]
    %v130 = vld [vmem:[#allocation6 + $0x50] sm:$0xff]
    %v131 = vld [vmem:[#allocation6 + $0x58] sm:$0xff]
    %v132 = vld [vmem:[#allocation6 + $0x60] sm:$0xff]
    %v133 = vld [vmem:[#allocation6 + $0x68] sm:$0xff]
    %v134 = vld [vmem:[#allocation6 + $0x70] sm:$0xff]
    %v135 = vld [vmem:[#allocation6 + $0x78] sm:$0xff]
    %v136 = vld [vmem:[#allocation6 + $0x80] sm:$0xff]
    %v137 = vld [vmem:[#allocation6 + $0x88] sm:$0xff]
    %v138 = vld [vmem:[#allocation6 + $0x90] sm:$0xff]
    %v139 = vld [vmem:[#allocation6 + $0x98] sm:$0xff]
    %v140 = vld [vmem:[#allocation6 + $0xa0] sm:$0xff]
    %v141 = vld [vmem:[#allocation6 + $0xa8] sm:$0xff]
    %v142 = vld [vmem:[#allocation6 + $0xb0] sm:$0xff]
    %v143 = vld [vmem:[#allocation6 + $0xb8] sm:$0xff]
    %v144 = vld [vmem:[#allocation6 + $0xc0] sm:$0xff]
    %v145 = vld [vmem:[#allocation6 + $0xc8] sm:$0xff]
    %v146 = vld [vmem:[#allocation6 + $0xd0] sm:$0xff]
    %v147 = vld [vmem:[#allocation6 + $0xd8] sm:$0xff]
    %v148 = vld [vmem:[#allocation6 + $0xe0] sm:$0xff]
    %v149 = vld [vmem:[#allocation6 + $0xe8] sm:$0xff]
    %v150 = vld [vmem:[#allocation6 + $0xf0] sm:$0xff]
    %v151 = vld [vmem:[#allocation6 + $0xf8] sm:$0xff]
    %v153 = vunpack.c.l.b16 %v112
    %v154 = vunpack.c.h.b16 %v112
    %v155 = vpack.c.b16 %v153, %v153
    %v156 = vpack.c.b16 %v154, %v154
    %v191 = vunpack.c.l.b16 %v120
    %v192 = vunpack.c.h.b16 %v120
    %v193 = vunpack.c.l.b16 %v121
    %v194 = vunpack.c.h.b16 %v121
    %v195 = vunpack.c.l.b16 %v122
    %v196 = vunpack.c.h.b16 %v122
    %v197 = vunpack.c.l.b16 %v123
    %v198 = vunpack.c.h.b16 %v123
    %v199 = vunpack.c.l.b16 %v124
    %v200 = vunpack.c.h.b16 %v124
    %v201 = vunpack.c.l.b16 %v125
    %v202 = vunpack.c.h.b16 %v125
    %v203 = vunpack.c.l.b16 %v126
    %v204 = vunpack.c.h.b16 %v126
    %v205 = vunpack.c.l.b16 %v127
    %v206 = vunpack.c.h.b16 %v127
    %v207 = vunpack.c.l.b16 %v128
    %v208 = vunpack.c.h.b16 %v128
    %v209 = vunpack.c.l.b16 %v129
    %v210 = vunpack.c.h.b16 %v129
    %v211 = vunpack.c.l.b16 %v130
    %v212 = vunpack.c.h.b16 %v130
    %v213 = vunpack.c.l.b16 %v131
    %v214 = vunpack.c.h.b16 %v131
    %v215 = vunpack.c.l.b16 %v132
    %v216 = vunpack.c.h.b16 %v132
    %v217 = vunpack.c.l.b16 %v133
    %v218 = vunpack.c.h.b16 %v133
    %v219 = vunpack.c.l.b16 %v134
    %v220 = vunpack.c.h.b16 %v134
    %v221 = vunpack.c.l.b16 %v135
    %v222 = vunpack.c.h.b16 %v135
    %v223 = vunpack.c.l.b16 %v136
    %v224 = vunpack.c.h.b16 %v136
    %v225 = vunpack.c.l.b16 %v137
    %v226 = vunpack.c.h.b16 %v137
    %v227 = vunpack.c.l.b16 %v138
    %v228 = vunpack.c.h.b16 %v138
    %v229 = vunpack.c.l.b16 %v139
    %v230 = vunpack.c.h.b16 %v139
    %v231 = vunpack.c.l.b16 %v140
    %v232 = vunpack.c.h.b16 %v140
    %v233 = vunpack.c.l.b16 %v141
    %v234 = vunpack.c.h.b16 %v141
    %v235 = vunpack.c.l.b16 %v142
    %v236 = vunpack.c.h.b16 %v142
    %v237 = vunpack.c.l.b16 %v143
    %v238 = vunpack.c.h.b16 %v143
    %v239 = vunpack.c.l.b16 %v144
    %v240 = vunpack.c.h.b16 %v144
    %v241 = vunpack.c.l.b16 %v145
    %v242 = vunpack.c.h.b16 %v145
    %v243 = vunpack.c.l.b16 %v146
    %v244 = vunpack.c.h.b16 %v146
    %v245 = vunpack.c.l.b16 %v147
    %v246 = vunpack.c.h.b16 %v147
    %v247 = vunpack.c.l.b16 %v148
    %v248 = vunpack.c.h.b16 %v148
    %v249 = vunpack.c.l.b16 %v149
    %v250 = vunpack.c.h.b16 %v149
    %v251 = vunpack.c.l.b16 %v150
    %v252 = vunpack.c.h.b16 %v150
    %v253 = vunpack.c.l.b16 %v151
    %v254 = vunpack.c.h.b16 %v151
    %v255 = vpack.c.b16 %v193, %v191
    %v256 = vpack.c.b16 %v194, %v192
    %v257 = vpack.c.b16 %v197, %v195
    %v258 = vpack.c.b16 %v198, %v196
    %v259 = vpack.c.b16 %v201, %v199
    %v260 = vpack.c.b16 %v202, %v200
    %v261 = vpack.c.b16 %v205, %v203
    %v262 = vpack.c.b16 %v206, %v204
    %v263 = vpack.c.b16 %v209, %v207
    %v264 = vpack.c.b16 %v210, %v208
    %v265 = vpack.c.b16 %v213, %v211
    %v266 = vpack.c.b16 %v214, %v212
    %v267 = vpack.c.b16 %v217, %v215
    %v268 = vpack.c.b16 %v218, %v216
    %v269 = vpack.c.b16 %v221, %v219
    %v270 = vpack.c.b16 %v222, %v220
    %v271 = vpack.c.b16 %v225, %v223
    %v272 = vpack.c.b16 %v226, %v224
    %v273 = vpack.c.b16 %v229, %v227
    %v274 = vpack.c.b16 %v230, %v228
    %v275 = vpack.c.b16 %v233, %v231
    %v276 = vpack.c.b16 %v234, %v232
    %v277 = vpack.c.b16 %v237, %v235
    %v278 = vpack.c.b16 %v238, %v236
    %v279 = vpack.c.b16 %v241, %v239
    %v280 = vpack.c.b16 %v242, %v240
    %v281 = vpack.c.b16 %v245, %v243
    %v282 = vpack.c.b16 %v246, %v244
    %v283 = vpack.c.b16 %v249, %v247
    %v284 = vpack.c.b16 %v250, %v248
    %v285 = vpack.c.b16 %v253, %v251
    %v286 = vpack.c.b16 %v254, %v252
    %319 = vmatprep.subr.bf16.mxu0 %v256
    %320 = vmatpush1.bf16.msra.mxu0 %v255
    %321 = vmatprep.subr.bf16.mxu0 %v258
    %322 = vmatpush1.bf16.msra.mxu0 %v257
    %323 = vmatprep.subr.bf16.mxu0 %v260
    %324 = vmatpush1.bf16.msra.mxu0 %v259
    %325 = vmatprep.subr.bf16.mxu0 %v262
    %326 = vmatpush1.bf16.msra.mxu0 %v261
    %327 = vmatprep.subr.bf16.mxu0 %v264
    %328 = vmatpush1.bf16.msra.mxu0 %v263
    %329 = vmatprep.subr.bf16.mxu0 %v266
    %330 = vmatpush1.bf16.msra.mxu0 %v265
    %331 = vmatprep.subr.bf16.mxu0 %v268
    %332 = vmatpush1.bf16.msra.mxu0 %v267
    %333 = vmatprep.subr.bf16.mxu0 %v270
    %334 = vmatpush1.bf16.msra.mxu0 %v269
    %335 = vmatprep.subr.bf16.mxu0 %v272
    %336 = vmatpush1.bf16.msra.mxu0 %v271
    %337 = vmatprep.subr.bf16.mxu0 %v274
    %338 = vmatpush1.bf16.msra.mxu0 %v273
    %339 = vmatprep.subr.bf16.mxu0 %v276
    %340 = vmatpush1.bf16.msra.mxu0 %v275
    %341 = vmatprep.subr.bf16.mxu0 %v278
    %342 = vmatpush1.bf16.msra.mxu0 %v277
    %343 = vmatprep.subr.bf16.mxu0 %v280
    %344 = vmatpush1.bf16.msra.mxu0 %v279
    %345 = vmatprep.subr.bf16.mxu0 %v282
    %346 = vmatpush1.bf16.msra.mxu0 %v281
    %347 = vmatprep.subr.bf16.mxu0 %v284
    %348 = vmatpush1.bf16.msra.mxu0 %v283
    %349 = vmatprep.subr.bf16.mxu0 %v286
    %350 = vmatpush1.bf16.msra.mxu0 %v285
    %351 = vmatprep.mubr.bf16.mxu0 %v156
    %352 = vmatmul.mubr.bf16.gmra.mrb[0].mxu0 %v155
    %v353 = vpop.f32.mrb[0].mxu0
    %v354 = vadd.f32 %v118, %v353
    %v355 = vpop.f32.mrb[0].mxu0
    %v356 = vadd.f32 %v119, %v355
    %v357 = vpop.f32.mrb[0].mxu0
    %v358 = vpop.f32.mrb[0].mxu0
    %359 = vdwg.mxu0
    %v360 = vtanh.pop %v354
    %v361 = vtanh.pop %v356
    %v362 = vpack.c.bf16 %v360, %v360
    %v363 = vpack.c.bf16 %v361, %v361
    %v365 = vunpack.c.l.b16 %v114
    %v366 = vunpack.c.h.b16 %v114
    %v367 = vpack.c.b16 %v365, %v365
    %v368 = vpack.c.b16 %v366, %v366
    %v371 = vld [vmem:[#allocation8] sm:$0xff]
    %v372 = vld [vmem:[#allocation8 + $0x8] sm:$0xff]
    %v373 = vld [vmem:[#allocation8 + $0x10] sm:$0xff]
    %v374 = vld [vmem:[#allocation8 + $0x18] sm:$0xff]
    %v375 = vld [vmem:[#allocation8 + $0x20] sm:$0xff]
    %v376 = vld [vmem:[#allocation8 + $0x28] sm:$0xff]
    %v377 = vld [vmem:[#allocation8 + $0x30] sm:$0xff]
    %v378 = vld [vmem:[#allocation8 + $0x38] sm:$0xff]
    %v379 = vld [vmem:[#allocation8 + $0x40] sm:$0xff]
    %v380 = vld [vmem:[#allocation8 + $0x48] sm:$0xff]
    %v381 = vld [vmem:[#allocation8 + $0x50] sm:$0xff]
    %v382 = vld [vmem:[#allocation8 + $0x58] sm:$0xff]
    %v383 = vld [vmem:[#allocation8 + $0x60] sm:$0xff]
    %v384 = vld [vmem:[#allocation8 + $0x68] sm:$0xff]
    %v385 = vld [vmem:[#allocation8 + $0x70] sm:$0xff]
    %v386 = vld [vmem:[#allocation8 + $0x78] sm:$0xff]
    %v387 = vld [vmem:[#allocation8 + $0x80] sm:$0xff]
    %v388 = vld [vmem:[#allocation8 + $0x88] sm:$0xff]
    %v389 = vld [vmem:[#allocation8 + $0x90] sm:$0xff]
    %v390 = vld [vmem:[#allocation8 + $0x98] sm:$0xff]
    %v391 = vld [vmem:[#allocation8 + $0xa0] sm:$0xff]
    %v392 = vld [vmem:[#allocation8 + $0xa8] sm:$0xff]
    %v393 = vld [vmem:[#allocation8 + $0xb0] sm:$0xff]
    %v394 = vld [vmem:[#allocation8 + $0xb8] sm:$0xff]
    %v395 = vld [vmem:[#allocation8 + $0xc0] sm:$0xff]
    %v396 = vld [vmem:[#allocation8 + $0xc8] sm:$0xff]
    %v397 = vld [vmem:[#allocation8 + $0xd0] sm:$0xff]
    %v398 = vld [vmem:[#allocation8 + $0xd8] sm:$0xff]
    %v399 = vld [vmem:[#allocation8 + $0xe0] sm:$0xff]
    %v400 = vld [vmem:[#allocation8 + $0xe8] sm:$0xff]
    %v401 = vld [vmem:[#allocation8 + $0xf0] sm:$0xff]
    %v402 = vld [vmem:[#allocation8 + $0xf8] sm:$0xff]
    %v403 = vld [vmem:[#allocation8 + $0x100] sm:$0xff]
    %v404 = vld [vmem:[#allocation8 + $0x108] sm:$0xff]
    %v405 = vld [vmem:[#allocation8 + $0x110] sm:$0xff]
    %v406 = vld [vmem:[#allocation8 + $0x118] sm:$0xff]
    %v407 = vld [vmem:[#allocation8 + $0x120] sm:$0xff]
    %v408 = vld [vmem:[#allocation8 + $0x128] sm:$0xff]
    %v409 = vld [vmem:[#allocation8 + $0x130] sm:$0xff]
    %v410 = vld [vmem:[#allocation8 + $0x138] sm:$0xff]
    %v411 = vld [vmem:[#allocation8 + $0x140] sm:$0xff]
    %v412 = vld [vmem:[#allocation8 + $0x148] sm:$0xff]
    %v413 = vld [vmem:[#allocation8 + $0x150] sm:$0xff]
    %v414 = vld [vmem:[#allocation8 + $0x158] sm:$0xff]
    %v415 = vld [vmem:[#allocation8 + $0x160] sm:$0xff]
    %v416 = vld [vmem:[#allocation8 + $0x168] sm:$0xff]
    %v417 = vld [vmem:[#allocation8 + $0x170] sm:$0xff]
    %v418 = vld [vmem:[#allocation8 + $0x178] sm:$0xff]
    %v419 = vld [vmem:[#allocation8 + $0x180] sm:$0xff]
    %v420 = vld [vmem:[#allocation8 + $0x188] sm:$0xff]
    %v421 = vld [vmem:[#allocation8 + $0x190] sm:$0xff]
    %v422 = vld [vmem:[#allocation8 + $0x198] sm:$0xff]
    %v423 = vld [vmem:[#allocation8 + $0x1a0] sm:$0xff]
    %v424 = vld [vmem:[#allocation8 + $0x1a8] sm:$0xff]
    %v425 = vld [vmem:[#allocation8 + $0x1b0] sm:$0xff]
    %v426 = vld [vmem:[#allocation8 + $0x1b8] sm:$0xff]
    %v427 = vld [vmem:[#allocation8 + $0x1c0] sm:$0xff]
    %v428 = vld [vmem:[#allocation8 + $0x1c8] sm:$0xff]
    %v429 = vld [vmem:[#allocation8 + $0x1d0] sm:$0xff]
    %v430 = vld [vmem:[#allocation8 + $0x1d8] sm:$0xff]
    %v431 = vld [vmem:[#allocation8 + $0x1e0] sm:$0xff]
    %v432 = vld [vmem:[#allocation8 + $0x1e8] sm:$0xff]
    %v433 = vld [vmem:[#allocation8 + $0x1f0] sm:$0xff]
    %v434 = vld [vmem:[#allocation8 + $0x1f8] sm:$0xff]
    %v499 = vunpack.c.l.b16 %v371
    %v500 = vunpack.c.h.b16 %v371
    %v501 = vunpack.c.l.b16 %v372
    %v502 = vunpack.c.h.b16 %v372
    %v503 = vunpack.c.l.b16 %v373
    %v504 = vunpack.c.h.b16 %v373
    %v505 = vunpack.c.l.b16 %v374
    %v506 = vunpack.c.h.b16 %v374
    %v507 = vunpack.c.l.b16 %v375
    %v508 = vunpack.c.h.b16 %v375
    %v509 = vunpack.c.l.b16 %v376
    %v510 = vunpack.c.h.b16 %v376
    %v511 = vunpack.c.l.b16 %v377
    %v512 = vunpack.c.h.b16 %v377
    %v513 = vunpack.c.l.b16 %v378
    %v514 = vunpack.c.h.b16 %v378
    %v515 = vunpack.c.l.b16 %v379
    %v516 = vunpack.c.h.b16 %v379
    %v517 = vunpack.c.l.b16 %v380
    %v518 = vunpack.c.h.b16 %v380
    %v519 = vunpack.c.l.b16 %v381
    %v520 = vunpack.c.h.b16 %v381
    %v521 = vunpack.c.l.b16 %v382
    %v522 = vunpack.c.h.b16 %v382
    %v523 = vunpack.c.l.b16 %v383
    %v524 = vunpack.c.h.b16 %v383
    %v525 = vunpack.c.l.b16 %v384
    %v526 = vunpack.c.h.b16 %v384
    %v527 = vunpack.c.l.b16 %v385
    %v528 = vunpack.c.h.b16 %v385
    %v529 = vunpack.c.l.b16 %v386
    %v530 = vunpack.c.h.b16 %v386
    %v531 = vunpack.c.l.b16 %v387
    %v532 = vunpack.c.h.b16 %v387
    %v533 = vunpack.c.l.b16 %v388
    %v534 = vunpack.c.h.b16 %v388
    %v535 = vunpack.c.l.b16 %v389
    %v536 = vunpack.c.h.b16 %v389
    %v537 = vunpack.c.l.b16 %v390
    %v538 = vunpack.c.h.b16 %v390
    %v539 = vunpack.c.l.b16 %v391
    %v540 = vunpack.c.h.b16 %v391
    %v541 = vunpack.c.l.b16 %v392
    %v542 = vunpack.c.h.b16 %v392
    %v543 = vunpack.c.l.b16 %v393
    %v544 = vunpack.c.h.b16 %v393
    %v545 = vunpack.c.l.b16 %v394
    %v546 = vunpack.c.h.b16 %v394
    %v547 = vunpack.c.l.b16 %v395
    %v548 = vunpack.c.h.b16 %v395
    %v549 = vunpack.c.l.b16 %v396
    %v550 = vunpack.c.h.b16 %v396
    %v551 = vunpack.c.l.b16 %v397
    %v552 = vunpack.c.h.b16 %v397
    %v553 = vunpack.c.l.b16 %v398
    %v554 = vunpack.c.h.b16 %v398
    %v555 = vunpack.c.l.b16 %v399
    %v556 = vunpack.c.h.b16 %v399
    %v557 = vunpack.c.l.b16 %v400
    %v558 = vunpack.c.h.b16 %v400
    %v559 = vunpack.c.l.b16 %v401
    %v560 = vunpack.c.h.b16 %v401
    %v561 = vunpack.c.l.b16 %v402
    %v562 = vunpack.c.h.b16 %v402
    %v563 = vunpack.c.l.b16 %v403
    %v564 = vunpack.c.h.b16 %v403
    %v565 = vunpack.c.l.b16 %v404
    %v566 = vunpack.c.h.b16 %v404
    %v567 = vunpack.c.l.b16 %v405
    %v568 = vunpack.c.h.b16 %v405
    %v569 = vunpack.c.l.b16 %v406
    %v570 = vunpack.c.h.b16 %v406
    %v571 = vunpack.c.l.b16 %v407
    %v572 = vunpack.c.h.b16 %v407
    %v573 = vunpack.c.l.b16 %v408
    %v574 = vunpack.c.h.b16 %v408
    %v575 = vunpack.c.l.b16 %v409
    %v576 = vunpack.c.h.b16 %v409
    %v577 = vunpack.c.l.b16 %v410
    %v578 = vunpack.c.h.b16 %v410
    %v579 = vunpack.c.l.b16 %v411
    %v580 = vunpack.c.h.b16 %v411
    %v581 = vunpack.c.l.b16 %v412
    %v582 = vunpack.c.h.b16 %v412
    %v583 = vunpack.c.l.b16 %v413
    %v584 = vunpack.c.h.b16 %v413
    %v585 = vunpack.c.l.b16 %v414
    %v586 = vunpack.c.h.b16 %v414
    %v587 = vunpack.c.l.b16 %v415
    %v588 = vunpack.c.h.b16 %v415
    %v589 = vunpack.c.l.b16 %v416
    %v590 = vunpack.c.h.b16 %v416
    %v591 = vunpack.c.l.b16 %v417
    %v592 = vunpack.c.h.b16 %v417
    %v593 = vunpack.c.l.b16 %v418
    %v594 = vunpack.c.h.b16 %v418
    %v595 = vunpack.c.l.b16 %v419
    %v596 = vunpack.c.h.b16 %v419
    %v597 = vunpack.c.l.b16 %v420
    %v598 = vunpack.c.h.b16 %v420
    %v599 = vunpack.c.l.b16 %v421
    %v600 = vunpack.c.h.b16 %v421
    %v601 = vunpack.c.l.b16 %v422
    %v602 = vunpack.c.h.b16 %v422
    %v603 = vunpack.c.l.b16 %v423
    %v604 = vunpack.c.h.b16 %v423
    %v605 = vunpack.c.l.b16 %v424
    %v606 = vunpack.c.h.b16 %v424
    %v607 = vunpack.c.l.b16 %v425
    %v608 = vunpack.c.h.b16 %v425
    %v609 = vunpack.c.l.b16 %v426
    %v610 = vunpack.c.h.b16 %v426
    %v611 = vunpack.c.l.b16 %v427
    %v612 = vunpack.c.h.b16 %v427
    %v613 = vunpack.c.l.b16 %v428
    %v614 = vunpack.c.h.b16 %v428
    %v615 = vunpack.c.l.b16 %v429
    %v616 = vunpack.c.h.b16 %v429
    %v617 = vunpack.c.l.b16 %v430
    %v618 = vunpack.c.h.b16 %v430
    %v619 = vunpack.c.l.b16 %v431
    %v620 = vunpack.c.h.b16 %v431
    %v621 = vunpack.c.l.b16 %v432
    %v622 = vunpack.c.h.b16 %v432
    %v623 = vunpack.c.l.b16 %v433
    %v624 = vunpack.c.h.b16 %v433
    %v625 = vunpack.c.l.b16 %v434
    %v626 = vunpack.c.h.b16 %v434
    %v627 = vpack.c.b16 %v501, %v499
    %v628 = vpack.c.b16 %v502, %v500
    %v629 = vpack.c.b16 %v505, %v503
    %v630 = vpack.c.b16 %v506, %v504
    %v631 = vpack.c.b16 %v509, %v507
    %v632 = vpack.c.b16 %v510, %v508
    %v633 = vpack.c.b16 %v513, %v511
    %v634 = vpack.c.b16 %v514, %v512
    %v635 = vpack.c.b16 %v517, %v515
    %v636 = vpack.c.b16 %v518, %v516
    %v637 = vpack.c.b16 %v521, %v519
    %v638 = vpack.c.b16 %v522, %v520
    %v639 = vpack.c.b16 %v525, %v523
    %v640 = vpack.c.b16 %v526, %v524
    %v641 = vpack.c.b16 %v529, %v527
    %v642 = vpack.c.b16 %v530, %v528
    %v643 = vpack.c.b16 %v533, %v531
    %v644 = vpack.c.b16 %v534, %v532
    %v645 = vpack.c.b16 %v537, %v535
    %v646 = vpack.c.b16 %v538, %v536
    %v647 = vpack.c.b16 %v541, %v539
    %v648 = vpack.c.b16 %v542, %v540
    %v649 = vpack.c.b16 %v545, %v543
    %v650 = vpack.c.b16 %v546, %v544
    %v651 = vpack.c.b16 %v549, %v547
    %v652 = vpack.c.b16 %v550, %v548
    %v653 = vpack.c.b16 %v553, %v551
    %v654 = vpack.c.b16 %v554, %v552
    %v655 = vpack.c.b16 %v557, %v555
    %v656 = vpack.c.b16 %v558, %v556
    %v657 = vpack.c.b16 %v561, %v559
    %v658 = vpack.c.b16 %v562, %v560
    %v659 = vpack.c.b16 %v565, %v563
    %v660 = vpack.c.b16 %v566, %v564
    %v661 = vpack.c.b16 %v569, %v567
    %v662 = vpack.c.b16 %v570, %v568
    %v663 = vpack.c.b16 %v573, %v571
    %v664 = vpack.c.b16 %v574, %v572
    %v665 = vpack.c.b16 %v577, %v575
    %v666 = vpack.c.b16 %v578, %v576
    %v667 = vpack.c.b16 %v581, %v579
    %v668 = vpack.c.b16 %v582, %v580
    %v669 = vpack.c.b16 %v585, %v583
    %v670 = vpack.c.b16 %v586, %v584
    %v671 = vpack.c.b16 %v589, %v587
    %v672 = vpack.c.b16 %v590, %v588
    %v673 = vpack.c.b16 %v593, %v591
    %v674 = vpack.c.b16 %v594, %v592
    %v675 = vpack.c.b16 %v597, %v595
    %v676 = vpack.c.b16 %v598, %v596
    %v677 = vpack.c.b16 %v601, %v599
    %v678 = vpack.c.b16 %v602, %v600
    %v679 = vpack.c.b16 %v605, %v603
    %v680 = vpack.c.b16 %v606, %v604
    %v681 = vpack.c.b16 %v609, %v607
    %v682 = vpack.c.b16 %v610, %v608
    %v683 = vpack.c.b16 %v613, %v611
    %v684 = vpack.c.b16 %v614, %v612
    %v685 = vpack.c.b16 %v617, %v615
    %v686 = vpack.c.b16 %v618, %v616
    %v687 = vpack.c.b16 %v621, %v619
    %v688 = vpack.c.b16 %v622, %v620
    %v689 = vpack.c.b16 %v625, %v623
    %v690 = vpack.c.b16 %v626, %v624
    %755 = vmatprep.subr.bf16.mxu0 %v628
    %756 = vmatpush1.bf16.msra.mxu0 %v627
    %757 = vmatprep.subr.bf16.mxu0 %v630
    %758 = vmatpush1.bf16.msra.mxu0 %v629
    %759 = vmatprep.subr.bf16.mxu0 %v632
    %760 = vmatpush1.bf16.msra.mxu0 %v631
    %761 = vmatprep.subr.bf16.mxu0 %v634
    %762 = vmatpush1.bf16.msra.mxu0 %v633
    %763 = vmatprep.subr.bf16.mxu0 %v636
    %764 = vmatpush1.bf16.msra.mxu0 %v635
    %765 = vmatprep.subr.bf16.mxu0 %v638
    %766 = vmatpush1.bf16.msra.mxu0 %v637
    %767 = vmatprep.subr.bf16.mxu0 %v640
    %768 = vmatpush1.bf16.msra.mxu0 %v639
    %769 = vmatprep.subr.bf16.mxu0 %v642
    %770 = vmatpush1.bf16.msra.mxu0 %v641
    %771 = vmatprep.subr.bf16.mxu0 %v644
    %772 = vmatpush1.bf16.msra.mxu0 %v643
    %773 = vmatprep.subr.bf16.mxu0 %v646
    %774 = vmatpush1.bf16.msra.mxu0 %v645
    %775 = vmatprep.subr.bf16.mxu0 %v648
    %776 = vmatpush1.bf16.msra.mxu0 %v647
    %777 = vmatprep.subr.bf16.mxu0 %v650
    %778 = vmatpush1.bf16.msra.mxu0 %v649
    %779 = vmatprep.subr.bf16.mxu0 %v652
    %780 = vmatpush1.bf16.msra.mxu0 %v651
    %781 = vmatprep.subr.bf16.mxu0 %v654
    %782 = vmatpush1.bf16.msra.mxu0 %v653
    %783 = vmatprep.subr.bf16.mxu0 %v656
    %784 = vmatpush1.bf16.msra.mxu0 %v655
    %785 = vmatprep.subr.bf16.mxu0 %v658
    %786 = vmatpush1.bf16.msra.mxu0 %v657
    %787 = vmatprep.mubr.bf16.mxu0 %v363
    %788 = vmatmul.mubr.bf16.gmra.mrb[0].mxu0 %v362
    %v789 = vpop.f32.mrb[0].mxu0
    %v790 = vadd.f32 %v92, %v789
    %v791 = vpop.f32.mrb[0].mxu0
    %v792 = vadd.f32 %v96, %v791
    %v793 = vpop.f32.mrb[0].mxu0
    %v794 = vpop.f32.mrb[0].mxu0
    %795 = vdwg.mxu0
    %796 = vmatprep.subr.bf16.mxu0 %v660
    %797 = vmatpush1.bf16.msra.mxu0 %v659
    %798 = vmatprep.subr.bf16.mxu0 %v662
    %799 = vmatpush1.bf16.msra.mxu0 %v661
    %800 = vmatprep.subr.bf16.mxu0 %v664
    %801 = vmatpush1.bf16.msra.mxu0 %v663
    %802 = vmatprep.subr.bf16.mxu0 %v666
    %803 = vmatpush1.bf16.msra.mxu0 %v665
    %804 = vmatprep.subr.bf16.mxu0 %v668
    %805 = vmatpush1.bf16.msra.mxu0 %v667
    %806 = vmatprep.subr.bf16.mxu0 %v670
    %807 = vmatpush1.bf16.msra.mxu0 %v669
    %808 = vmatprep.subr.bf16.mxu0 %v672
    %809 = vmatpush1.bf16.msra.mxu0 %v671
    %810 = vmatprep.subr.bf16.mxu0 %v674
    %811 = vmatpush1.bf16.msra.mxu0 %v673
    %812 = vmatprep.subr.bf16.mxu0 %v676
    %813 = vmatpush1.bf16.msra.mxu0 %v675
    %814 = vmatprep.subr.bf16.mxu0 %v678
    %815 = vmatpush1.bf16.msra.mxu0 %v677
    %816 = vmatprep.subr.bf16.mxu0 %v680
    %817 = vmatpush1.bf16.msra.mxu0 %v679
    %818 = vmatprep.subr.bf16.mxu0 %v682
    %819 = vmatpush1.bf16.msra.mxu0 %v681
    %820 = vmatprep.subr.bf16.mxu0 %v684
    %821 = vmatpush1.bf16.msra.mxu0 %v683
    %822 = vmatprep.subr.bf16.mxu0 %v686
    %823 = vmatpush1.bf16.msra.mxu0 %v685
    %824 = vmatprep.subr.bf16.mxu0 %v688
    %825 = vmatpush1.bf16.msra.mxu0 %v687
    %826 = vmatprep.subr.bf16.mxu0 %v690
    %827 = vmatpush1.bf16.msra.mxu0 %v689
    %828 = vmatprep.mubr.bf16.mxu0 %v368
    %829 = vmatmul.mubr.bf16.gmra.mrb[0].mxu0 %v367
    %v830 = vpop.f32.mrb[0].mxu0
    %v831 = vadd.f32 %v790, %v830
    %v832 = vpop.f32.mrb[0].mxu0
    %v833 = vadd.f32 %v792, %v832
    %v834 = vpop.f32.mrb[0].mxu0
    %v835 = vpop.f32.mrb[0].mxu0
    %836 = vdwg.mxu0
    %v837 = vtanh.pop %v831
    %v838 = vtanh.pop %v833
    %v839 = vpack.c.bf16 %v837, %v837
    %v840 = vpack.c.bf16 %v838, %v838
    %v842 = vunpack.c.l.b16 %v116
    %v843 = vunpack.c.h.b16 %v116
    %v844 = vpack.c.b16 %v842, %v842
    %v845 = vpack.c.b16 %v843, %v843
    %s848 = scalar_lea.vmem [#allocation8], 512
    %v849 = vld [vmem:[%s848] sm:$0xff]
    %v850 = vld [vmem:[%s848 + $0x8] sm:$0xff]
    %v851 = vld [vmem:[%s848 + $0x10] sm:$0xff]
    %v852 = vld [vmem:[%s848 + $0x18] sm:$0xff]
    %v853 = vld [vmem:[%s848 + $0x20] sm:$0xff]
    %v854 = vld [vmem:[%s848 + $0x28] sm:$0xff]
    %v855 = vld [vmem:[%s848 + $0x30] sm:$0xff]
    %v856 = vld [vmem:[%s848 + $0x38] sm:$0xff]
    %v857 = vld [vmem:[%s848 + $0x40] sm:$0xff]
    %v858 = vld [vmem:[%s848 + $0x48] sm:$0xff]
    %v859 = vld [vmem:[%s848 + $0x50] sm:$0xff]
    %v860 = vld [vmem:[%s848 + $0x58] sm:$0xff]
    %v861 = vld [vmem:[%s848 + $0x60] sm:$0xff]
    %v862 = vld [vmem:[%s848 + $0x68] sm:$0xff]
    %v863 = vld [vmem:[%s848 + $0x70] sm:$0xff]
    %v864 = vld [vmem:[%s848 + $0x78] sm:$0xff]
    %v865 = vld [vmem:[%s848 + $0x80] sm:$0xff]
    %v866 = vld [vmem:[%s848 + $0x88] sm:$0xff]
    %v867 = vld [vmem:[%s848 + $0x90] sm:$0xff]
    %v868 = vld [vmem:[%s848 + $0x98] sm:$0xff]
    %v869 = vld [vmem:[%s848 + $0xa0] sm:$0xff]
    %v870 = vld [vmem:[%s848 + $0xa8] sm:$0xff]
    %v871 = vld [vmem:[%s848 + $0xb0] sm:$0xff]
    %v872 = vld [vmem:[%s848 + $0xb8] sm:$0xff]
    %v873 = vld [vmem:[%s848 + $0xc0] sm:$0xff]
    %v874 = vld [vmem:[%s848 + $0xc8] sm:$0xff]
    %v875 = vld [vmem:[%s848 + $0xd0] sm:$0xff]
    %v876 = vld [vmem:[%s848 + $0xd8] sm:$0xff]
    %v877 = vld [vmem:[%s848 + $0xe0] sm:$0xff]
    %v878 = vld [vmem:[%s848 + $0xe8] sm:$0xff]
    %v879 = vld [vmem:[%s848 + $0xf0] sm:$0xff]
    %v880 = vld [vmem:[%s848 + $0xf8] sm:$0xff]
    %v881 = vld [vmem:[%s848 + $0x100] sm:$0xff]
    %v882 = vld [vmem:[%s848 + $0x108] sm:$0xff]
    %v883 = vld [vmem:[%s848 + $0x110] sm:$0xff]
    %v884 = vld [vmem:[%s848 + $0x118] sm:$0xff]
    %v885 = vld [vmem:[%s848 + $0x120] sm:$0xff]
    %v886 = vld [vmem:[%s848 + $0x128] sm:$0xff]
    %v887 = vld [vmem:[%s848 + $0x130] sm:$0xff]
    %v888 = vld [vmem:[%s848 + $0x138] sm:$0xff]
    %v889 = vld [vmem:[%s848 + $0x140] sm:$0xff]
    %v890 = vld [vmem:[%s848 + $0x148] sm:$0xff]
    %v891 = vld [vmem:[%s848 + $0x150] sm:$0xff]
    %v892 = vld [vmem:[%s848 + $0x158] sm:$0xff]
    %v893 = vld [vmem:[%s848 + $0x160] sm:$0xff]
    %v894 = vld [vmem:[%s848 + $0x168] sm:$0xff]
    %v895 = vld [vmem:[%s848 + $0x170] sm:$0xff]
    %v896 = vld [vmem:[%s848 + $0x178] sm:$0xff]
    %v897 = vld [vmem:[%s848 + $0x180] sm:$0xff]
    %v898 = vld [vmem:[%s848 + $0x188] sm:$0xff]
    %v899 = vld [vmem:[%s848 + $0x190] sm:$0xff]
    %v900 = vld [vmem:[%s848 + $0x198] sm:$0xff]
    %v901 = vld [vmem:[%s848 + $0x1a0] sm:$0xff]
    %v902 = vld [vmem:[%s848 + $0x1a8] sm:$0xff]
    %v903 = vld [vmem:[%s848 + $0x1b0] sm:$0xff]
    %v904 = vld [vmem:[%s848 + $0x1b8] sm:$0xff]
    %v905 = vld [vmem:[%s848 + $0x1c0] sm:$0xff]
    %v906 = vld [vmem:[%s848 + $0x1c8] sm:$0xff]
    %v907 = vld [vmem:[%s848 + $0x1d0] sm:$0xff]
    %v908 = vld [vmem:[%s848 + $0x1d8] sm:$0xff]
    %v909 = vld [vmem:[%s848 + $0x1e0] sm:$0xff]
    %v910 = vld [vmem:[%s848 + $0x1e8] sm:$0xff]
    %v911 = vld [vmem:[%s848 + $0x1f0] sm:$0xff]
    %v912 = vld [vmem:[%s848 + $0x1f8] sm:$0xff]
    %v977 = vunpack.c.l.b16 %v849
    %v978 = vunpack.c.h.b16 %v849
    %v979 = vunpack.c.l.b16 %v850
    %v980 = vunpack.c.h.b16 %v850
    %v981 = vunpack.c.l.b16 %v851
    %v982 = vunpack.c.h.b16 %v851
    %v983 = vunpack.c.l.b16 %v852
    %v984 = vunpack.c.h.b16 %v852
    %v985 = vunpack.c.l.b16 %v853
    %v986 = vunpack.c.h.b16 %v853
    %v987 = vunpack.c.l.b16 %v854
    %v988 = vunpack.c.h.b16 %v854
    %v989 = vunpack.c.l.b16 %v855
    %v990 = vunpack.c.h.b16 %v855
    %v991 = vunpack.c.l.b16 %v856
    %v992 = vunpack.c.h.b16 %v856
    %v993 = vunpack.c.l.b16 %v857
    %v994 = vunpack.c.h.b16 %v857
    %v995 = vunpack.c.l.b16 %v858
    %v996 = vunpack.c.h.b16 %v858
    %v997 = vunpack.c.l.b16 %v859
    %v998 = vunpack.c.h.b16 %v859
    %v999 = vunpack.c.l.b16 %v860
    %v1000 = vunpack.c.h.b16 %v860
    %v1001 = vunpack.c.l.b16 %v861
    %v1002 = vunpack.c.h.b16 %v861
    %v1003 = vunpack.c.l.b16 %v862
    %v1004 = vunpack.c.h.b16 %v862
    %v1005 = vunpack.c.l.b16 %v863
    %v1006 = vunpack.c.h.b16 %v863
    %v1007 = vunpack.c.l.b16 %v864
    %v1008 = vunpack.c.h.b16 %v864
    %v1009 = vunpack.c.l.b16 %v865
    %v1010 = vunpack.c.h.b16 %v865
    %v1011 = vunpack.c.l.b16 %v866
    %v1012 = vunpack.c.h.b16 %v866
    %v1013 = vunpack.c.l.b16 %v867
    %v1014 = vunpack.c.h.b16 %v867
    %v1015 = vunpack.c.l.b16 %v868
    %v1016 = vunpack.c.h.b16 %v868
    %v1017 = vunpack.c.l.b16 %v869
    %v1018 = vunpack.c.h.b16 %v869
    %v1019 = vunpack.c.l.b16 %v870
    %v1020 = vunpack.c.h.b16 %v870
    %v1021 = vunpack.c.l.b16 %v871
    %v1022 = vunpack.c.h.b16 %v871
    %v1023 = vunpack.c.l.b16 %v872
    %v1024 = vunpack.c.h.b16 %v872
    %v1025 = vunpack.c.l.b16 %v873
    %v1026 = vunpack.c.h.b16 %v873
    %v1027 = vunpack.c.l.b16 %v874
    %v1028 = vunpack.c.h.b16 %v874
    %v1029 = vunpack.c.l.b16 %v875
    %v1030 = vunpack.c.h.b16 %v875
    %v1031 = vunpack.c.l.b16 %v876
    %v1032 = vunpack.c.h.b16 %v876
    %v1033 = vunpack.c.l.b16 %v877
    %v1034 = vunpack.c.h.b16 %v877
    %v1035 = vunpack.c.l.b16 %v878
    %v1036 = vunpack.c.h.b16 %v878
    %v1037 = vunpack.c.l.b16 %v879
    %v1038 = vunpack.c.h.b16 %v879
    %v1039 = vunpack.c.l.b16 %v880
    %v1040 = vunpack.c.h.b16 %v880
    %v1041 = vunpack.c.l.b16 %v881
    %v1042 = vunpack.c.h.b16 %v881
    %v1043 = vunpack.c.l.b16 %v882
    %v1044 = vunpack.c.h.b16 %v882
    %v1045 = vunpack.c.l.b16 %v883
    %v1046 = vunpack.c.h.b16 %v883
    %v1047 = vunpack.c.l.b16 %v884
    %v1048 = vunpack.c.h.b16 %v884
    %v1049 = vunpack.c.l.b16 %v885
    %v1050 = vunpack.c.h.b16 %v885
    %v1051 = vunpack.c.l.b16 %v886
    %v1052 = vunpack.c.h.b16 %v886
    %v1053 = vunpack.c.l.b16 %v887
    %v1054 = vunpack.c.h.b16 %v887
    %v1055 = vunpack.c.l.b16 %v888
    %v1056 = vunpack.c.h.b16 %v888
    %v1057 = vunpack.c.l.b16 %v889
    %v1058 = vunpack.c.h.b16 %v889
    %v1059 = vunpack.c.l.b16 %v890
    %v1060 = vunpack.c.h.b16 %v890
    %v1061 = vunpack.c.l.b16 %v891
    %v1062 = vunpack.c.h.b16 %v891
    %v1063 = vunpack.c.l.b16 %v892
    %v1064 = vunpack.c.h.b16 %v892
    %v1065 = vunpack.c.l.b16 %v893
    %v1066 = vunpack.c.h.b16 %v893
    %v1067 = vunpack.c.l.b16 %v894
    %v1068 = vunpack.c.h.b16 %v894
    %v1069 = vunpack.c.l.b16 %v895
    %v1070 = vunpack.c.h.b16 %v895
    %v1071 = vunpack.c.l.b16 %v896
    %v1072 = vunpack.c.h.b16 %v896
    %v1073 = vunpack.c.l.b16 %v897
    %v1074 = vunpack.c.h.b16 %v897
    %v1075 = vunpack.c.l.b16 %v898
    %v1076 = vunpack.c.h.b16 %v898
    %v1077 = vunpack.c.l.b16 %v899
    %v1078 = vunpack.c.h.b16 %v899
    %v1079 = vunpack.c.l.b16 %v900
    %v1080 = vunpack.c.h.b16 %v900
    %v1081 = vunpack.c.l.b16 %v901
    %v1082 = vunpack.c.h.b16 %v901
    %v1083 = vunpack.c.l.b16 %v902
    %v1084 = vunpack.c.h.b16 %v902
    %v1085 = vunpack.c.l.b16 %v903
    %v1086 = vunpack.c.h.b16 %v903
    %v1087 = vunpack.c.l.b16 %v904
    %v1088 = vunpack.c.h.b16 %v904
    %v1089 = vunpack.c.l.b16 %v905
    %v1090 = vunpack.c.h.b16 %v905
    %v1091 = vunpack.c.l.b16 %v906
    %v1092 = vunpack.c.h.b16 %v906
    %v1093 = vunpack.c.l.b16 %v907
    %v1094 = vunpack.c.h.b16 %v907
    %v1095 = vunpack.c.l.b16 %v908
    %v1096 = vunpack.c.h.b16 %v908
    %v1097 = vunpack.c.l.b16 %v909
    %v1098 = vunpack.c.h.b16 %v909
    %v1099 = vunpack.c.l.b16 %v910
    %v1100 = vunpack.c.h.b16 %v910
    %v1101 = vunpack.c.l.b16 %v911
    %v1102 = vunpack.c.h.b16 %v911
    %v1103 = vunpack.c.l.b16 %v912
    %v1104 = vunpack.c.h.b16 %v912
    %v1105 = vpack.c.b16 %v979, %v977
    %v1106 = vpack.c.b16 %v980, %v978
    %v1107 = vpack.c.b16 %v983, %v981
    %v1108 = vpack.c.b16 %v984, %v982
    %v1109 = vpack.c.b16 %v987, %v985
    %v1110 = vpack.c.b16 %v988, %v986
    %v1111 = vpack.c.b16 %v991, %v989
    %v1112 = vpack.c.b16 %v992, %v990
    %v1113 = vpack.c.b16 %v995, %v993
    %v1114 = vpack.c.b16 %v996, %v994
    %v1115 = vpack.c.b16 %v999, %v997
    %v1116 = vpack.c.b16 %v1000, %v998
    %v1117 = vpack.c.b16 %v1003, %v1001
    %v1118 = vpack.c.b16 %v1004, %v1002
    %v1119 = vpack.c.b16 %v1007, %v1005
    %v1120 = vpack.c.b16 %v1008, %v1006
    %v1121 = vpack.c.b16 %v1011, %v1009
    %v1122 = vpack.c.b16 %v1012, %v1010
    %v1123 = vpack.c.b16 %v1015, %v1013
    %v1124 = vpack.c.b16 %v1016, %v1014
    %v1125 = vpack.c.b16 %v1019, %v1017
    %v1126 = vpack.c.b16 %v1020, %v1018
    %v1127 = vpack.c.b16 %v1023, %v1021
    %v1128 = vpack.c.b16 %v1024, %v1022
    %v1129 = vpack.c.b16 %v1027, %v1025
    %v1130 = vpack.c.b16 %v1028, %v1026
    %v1131 = vpack.c.b16 %v1031, %v1029
    %v1132 = vpack.c.b16 %v1032, %v1030
    %v1133 = vpack.c.b16 %v1035, %v1033
    %v1134 = vpack.c.b16 %v1036, %v1034
    %v1135 = vpack.c.b16 %v1039, %v1037
    %v1136 = vpack.c.b16 %v1040, %v1038
    %v1137 = vpack.c.b16 %v1043, %v1041
    %v1138 = vpack.c.b16 %v1044, %v1042
    %v1139 = vpack.c.b16 %v1047, %v1045
    %v1140 = vpack.c.b16 %v1048, %v1046
    %v1141 = vpack.c.b16 %v1051, %v1049
    %v1142 = vpack.c.b16 %v1052, %v1050
    %v1143 = vpack.c.b16 %v1055, %v1053
    %v1144 = vpack.c.b16 %v1056, %v1054
    %v1145 = vpack.c.b16 %v1059, %v1057
    %v1146 = vpack.c.b16 %v1060, %v1058
    %v1147 = vpack.c.b16 %v1063, %v1061
    %v1148 = vpack.c.b16 %v1064, %v1062
    %v1149 = vpack.c.b16 %v1067, %v1065
    %v1150 = vpack.c.b16 %v1068, %v1066
    %v1151 = vpack.c.b16 %v1071, %v1069
    %v1152 = vpack.c.b16 %v1072, %v1070
    %v1153 = vpack.c.b16 %v1075, %v1073
    %v1154 = vpack.c.b16 %v1076, %v1074
    %v1155 = vpack.c.b16 %v1079, %v1077
    %v1156 = vpack.c.b16 %v1080, %v1078
    %v1157 = vpack.c.b16 %v1083, %v1081
    %v1158 = vpack.c.b16 %v1084, %v1082
    %v1159 = vpack.c.b16 %v1087, %v1085
    %v1160 = vpack.c.b16 %v1088, %v1086
    %v1161 = vpack.c.b16 %v1091, %v1089
    %v1162 = vpack.c.b16 %v1092, %v1090
    %v1163 = vpack.c.b16 %v1095, %v1093
    %v1164 = vpack.c.b16 %v1096, %v1094
    %v1165 = vpack.c.b16 %v1099, %v1097
    %v1166 = vpack.c.b16 %v1100, %v1098
    %v1167 = vpack.c.b16 %v1103, %v1101
    %v1168 = vpack.c.b16 %v1104, %v1102
    %1233 = vmatprep.subr.bf16.mxu0 %v1106
    %1234 = vmatpush1.bf16.msra.mxu0 %v1105
    %1235 = vmatprep.subr.bf16.mxu0 %v1108
    %1236 = vmatpush1.bf16.msra.mxu0 %v1107
    %1237 = vmatprep.subr.bf16.mxu0 %v1110
    %1238 = vmatpush1.bf16.msra.mxu0 %v1109
    %1239 = vmatprep.subr.bf16.mxu0 %v1112
    %1240 = vmatpush1.bf16.msra.mxu0 %v1111
    %1241 = vmatprep.subr.bf16.mxu0 %v1114
    %1242 = vmatpush1.bf16.msra.mxu0 %v1113
    %1243 = vmatprep.subr.bf16.mxu0 %v1116
    %1244 = vmatpush1.bf16.msra.mxu0 %v1115
    %1245 = vmatprep.subr.bf16.mxu0 %v1118
    %1246 = vmatpush1.bf16.msra.mxu0 %v1117
    %1247 = vmatprep.subr.bf16.mxu0 %v1120
    %1248 = vmatpush1.bf16.msra.mxu0 %v1119
    %1249 = vmatprep.subr.bf16.mxu0 %v1122
    %1250 = vmatpush1.bf16.msra.mxu0 %v1121
    %1251 = vmatprep.subr.bf16.mxu0 %v1124
    %1252 = vmatpush1.bf16.msra.mxu0 %v1123
    %1253 = vmatprep.subr.bf16.mxu0 %v1126
    %1254 = vmatpush1.bf16.msra.mxu0 %v1125
    %1255 = vmatprep.subr.bf16.mxu0 %v1128
    %1256 = vmatpush1.bf16.msra.mxu0 %v1127
    %1257 = vmatprep.subr.bf16.mxu0 %v1130
    %1258 = vmatpush1.bf16.msra.mxu0 %v1129
    %1259 = vmatprep.subr.bf16.mxu0 %v1132
    %1260 = vmatpush1.bf16.msra.mxu0 %v1131
    %1261 = vmatprep.subr.bf16.mxu0 %v1134
    %1262 = vmatpush1.bf16.msra.mxu0 %v1133
    %1263 = vmatprep.subr.bf16.mxu0 %v1136
    %1264 = vmatpush1.bf16.msra.mxu0 %v1135
    %1265 = vmatprep.mubr.bf16.mxu0 %v840
    %1266 = vmatmul.mubr.bf16.gmra.mrb[0].mxu0 %v839
    %v1267 = vpop.f32.mrb[0].mxu0
    %v1268 = vadd.f32 %v105, %v1267
    %v1269 = vpop.f32.mrb[0].mxu0
    %v1270 = vadd.f32 %v109, %v1269
    %v1271 = vpop.f32.mrb[0].mxu0
    %v1272 = vpop.f32.mrb[0].mxu0
    %1273 = vdwg.mxu0
    %1274 = vmatprep.subr.bf16.mxu0 %v1138
    %1275 = vmatpush1.bf16.msra.mxu0 %v1137
    %1276 = vmatprep.subr.bf16.mxu0 %v1140
    %1277 = vmatpush1.bf16.msra.mxu0 %v1139
    %1278 = vmatprep.subr.bf16.mxu0 %v1142
    %1279 = vmatpush1.bf16.msra.mxu0 %v1141
    %1280 = vmatprep.subr.bf16.mxu0 %v1144
    %1281 = vmatpush1.bf16.msra.mxu0 %v1143
    %1282 = vmatprep.subr.bf16.mxu0 %v1146
    %1283 = vmatpush1.bf16.msra.mxu0 %v1145
    %1284 = vmatprep.subr.bf16.mxu0 %v1148
    %1285 = vmatpush1.bf16.msra.mxu0 %v1147
    %1286 = vmatprep.subr.bf16.mxu0 %v1150
    %1287 = vmatpush1.bf16.msra.mxu0 %v1149
    %1288 = vmatprep.subr.bf16.mxu0 %v1152
    %1289 = vmatpush1.bf16.msra.mxu0 %v1151
    %1290 = vmatprep.subr.bf16.mxu0 %v1154
    %1291 = vmatpush1.bf16.msra.mxu0 %v1153
    %1292 = vmatprep.subr.bf16.mxu0 %v1156
    %1293 = vmatpush1.bf16.msra.mxu0 %v1155
    %1294 = vmatprep.subr.bf16.mxu0 %v1158
    %1295 = vmatpush1.bf16.msra.mxu0 %v1157
    %1296 = vmatprep.subr.bf16.mxu0 %v1160
    %1297 = vmatpush1.bf16.msra.mxu0 %v1159
    %1298 = vmatprep.subr.bf16.mxu0 %v1162
    %1299 = vmatpush1.bf16.msra.mxu0 %v1161
    %1300 = vmatprep.subr.bf16.mxu0 %v1164
    %1301 = vmatpush1.bf16.msra.mxu0 %v1163
    %1302 = vmatprep.subr.bf16.mxu0 %v1166
    %1303 = vmatpush1.bf16.msra.mxu0 %v1165
    %1304 = vmatprep.subr.bf16.mxu0 %v1168
    %1305 = vmatpush1.bf16.msra.mxu0 %v1167
    %1306 = vmatprep.mubr.bf16.mxu0 %v845
    %1307 = vmatmul.mubr.bf16.gmra.mrb[0].mxu0 %v844
    %v1308 = vpop.f32.mrb[0].mxu0
    %v1309 = vadd.f32 %v1268, %v1308
    %v1310 = vpop.f32.mrb[0].mxu0
    %v1311 = vadd.f32 %v1270, %v1310
    %v1312 = vpop.f32.mrb[0].mxu0
    %v1313 = vpop.f32.mrb[0].mxu0
    %1314 = vdwg.mxu0
    %v1315 = vtanh.pop %v1309
    %v1316 = vtanh.pop %v1311
    %v1317 = vpack.c.bf16 %v1315, %v1315
    %v1318 = vpack.c.bf16 %v1316, %v1316
    %s1319 = scalar_lea.vmem [#allocation3], 8
    %v1320 = vld [vmem:[%s1319] sm:$0xff]
    %v1321 = vunpack.c.l.bf16 %v1320
    %v1322 = vunpack.c.h.bf16 %v1320
    %1323 = vmatprep.subr.bf16.mxu0 %v256
    %1324 = vmatpush1.bf16.msra.mxu0 %v255
    %1325 = vmatprep.subr.bf16.mxu0 %v258
    %1326 = vmatpush1.bf16.msra.mxu0 %v257
    %1327 = vmatprep.subr.bf16.mxu0 %v260
    %1328 = vmatpush1.bf16.msra.mxu0 %v259
    %1329 = vmatprep.subr.bf16.mxu0 %v262
    %1330 = vmatpush1.bf16.msra.mxu0 %v261
    %1331 = vmatprep.subr.bf16.mxu0 %v264
    %1332 = vmatpush1.bf16.msra.mxu0 %v263
    %1333 = vmatprep.subr.bf16.mxu0 %v266
    %1334 = vmatpush1.bf16.msra.mxu0 %v265
    %1335 = vmatprep.subr.bf16.mxu0 %v268
    %1336 = vmatpush1.bf16.msra.mxu0 %v267
    %1337 = vmatprep.subr.bf16.mxu0 %v270
    %1338 = vmatpush1.bf16.msra.mxu0 %v269
    %1339 = vmatprep.subr.bf16.mxu0 %v272
    %1340 = vmatpush1.bf16.msra.mxu0 %v271
    %1341 = vmatprep.subr.bf16.mxu0 %v274
    %1342 = vmatpush1.bf16.msra.mxu0 %v273
    %1343 = vmatprep.subr.bf16.mxu0 %v276
    %1344 = vmatpush1.bf16.msra.mxu0 %v275
    %1345 = vmatprep.subr.bf16.mxu0 %v278
    %1346 = vmatpush1.bf16.msra.mxu0 %v277
    %1347 = vmatprep.subr.bf16.mxu0 %v280
    %1348 = vmatpush1.bf16.msra.mxu0 %v279
    %1349 = vmatprep.subr.bf16.mxu0 %v282
    %1350 = vmatpush1.bf16.msra.mxu0 %v281
    %1351 = vmatprep.subr.bf16.mxu0 %v284
    %1352 = vmatpush1.bf16.msra.mxu0 %v283
    %1353 = vmatprep.subr.bf16.mxu0 %v286
    %1354 = vmatpush1.bf16.msra.mxu0 %v285
    %1355 = vmatprep.mubr.bf16.mxu0 %v363
    %1356 = vmatmul.mubr.bf16.gmra.mrb[0].mxu0 %v362
    %v1357 = vpop.f32.mrb[0].mxu0
    %v1358 = vadd.f32 %v1321, %v1357
    %v1359 = vpop.f32.mrb[0].mxu0
    %v1360 = vadd.f32 %v1322, %v1359
    %v1361 = vpop.f32.mrb[0].mxu0
    %v1362 = vpop.f32.mrb[0].mxu0
    %1363 = vdwg.mxu0
    %v1364 = vtanh.pop %v1358
    %v1365 = vtanh.pop %v1360
    %v1366 = vpack.c.bf16 %v1364, %v1364
    %v1367 = vpack.c.bf16 %v1365, %v1365
    %1368 = vmatprep.subr.bf16.mxu0 %v628
    %1369 = vmatpush1.bf16.msra.mxu0 %v627
    %1370 = vmatprep.subr.bf16.mxu0 %v630
    %1371 = vmatpush1.bf16.msra.mxu0 %v629
    %1372 = vmatprep.subr.bf16.mxu0 %v632
    %1373 = vmatpush1.bf16.msra.mxu0 %v631
    %1374 = vmatprep.subr.bf16.mxu0 %v634
    %1375 = vmatpush1.bf16.msra.mxu0 %v633
    %1376 = vmatprep.subr.bf16.mxu0 %v636
    %1377 = vmatpush1.bf16.msra.mxu0 %v635
    %1378 = vmatprep.subr.bf16.mxu0 %v638
    %1379 = vmatpush1.bf16.msra.mxu0 %v637
    %1380 = vmatprep.subr.bf16.mxu0 %v640
    %1381 = vmatpush1.bf16.msra.mxu0 %v639
    %1382 = vmatprep.subr.bf16.mxu0 %v642
    %1383 = vmatpush1.bf16.msra.mxu0 %v641
    %1384 = vmatprep.subr.bf16.mxu0 %v644
    %1385 = vmatpush1.bf16.msra.mxu0 %v643
    %1386 = vmatprep.subr.bf16.mxu0 %v646
    %1387 = vmatpush1.bf16.msra.mxu0 %v645
    %1388 = vmatprep.subr.bf16.mxu0 %v648
    %1389 = vmatpush1.bf16.msra.mxu0 %v647
    %1390 = vmatprep.subr.bf16.mxu0 %v650
    %1391 = vmatpush1.bf16.msra.mxu0 %v649
    %1392 = vmatprep.subr.bf16.mxu0 %v652
    %1393 = vmatpush1.bf16.msra.mxu0 %v651
    %1394 = vmatprep.subr.bf16.mxu0 %v654
    %1395 = vmatpush1.bf16.msra.mxu0 %v653
    %1396 = vmatprep.subr.bf16.mxu0 %v656
    %1397 = vmatpush1.bf16.msra.mxu0 %v655
    %1398 = vmatprep.subr.bf16.mxu0 %v658
    %1399 = vmatpush1.bf16.msra.mxu0 %v657
    %1400 = vmatprep.mubr.bf16.mxu0 %v1367
    %1401 = vmatmul.mubr.bf16.gmra.mrb[0].mxu0 %v1366
    %v1402 = vpop.f32.mrb[0].mxu0
    %v1403 = vadd.f32 %v92, %v1402
    %v1404 = vpop.f32.mrb[0].mxu0
    %v1405 = vadd.f32 %v96, %v1404
    %v1406 = vpop.f32.mrb[0].mxu0
    %v1407 = vpop.f32.mrb[0].mxu0
    %1408 = vdwg.mxu0
    %1409 = vmatprep.subr.bf16.mxu0 %v660
    %1410 = vmatpush1.bf16.msra.mxu0 %v659
    %1411 = vmatprep.subr.bf16.mxu0 %v662
    %1412 = vmatpush1.bf16.msra.mxu0 %v661
    %1413 = vmatprep.subr.bf16.mxu0 %v664
    %1414 = vmatpush1.bf16.msra.mxu0 %v663
    %1415 = vmatprep.subr.bf16.mxu0 %v666
    %1416 = vmatpush1.bf16.msra.mxu0 %v665
    %1417 = vmatprep.subr.bf16.mxu0 %v668
    %1418 = vmatpush1.bf16.msra.mxu0 %v667
    %1419 = vmatprep.subr.bf16.mxu0 %v670
    %1420 = vmatpush1.bf16.msra.mxu0 %v669
    %1421 = vmatprep.subr.bf16.mxu0 %v672
    %1422 = vmatpush1.bf16.msra.mxu0 %v671
    %1423 = vmatprep.subr.bf16.mxu0 %v674
    %1424 = vmatpush1.bf16.msra.mxu0 %v673
    %1425 = vmatprep.subr.bf16.mxu0 %v676
    %1426 = vmatpush1.bf16.msra.mxu0 %v675
    %1427 = vmatprep.subr.bf16.mxu0 %v678
    %1428 = vmatpush1.bf16.msra.mxu0 %v677
    %1429 = vmatprep.subr.bf16.mxu0 %v680
    %1430 = vmatpush1.bf16.msra.mxu0 %v679
    %1431 = vmatprep.subr.bf16.mxu0 %v682
    %1432 = vmatpush1.bf16.msra.mxu0 %v681
    %1433 = vmatprep.subr.bf16.mxu0 %v684
    %1434 = vmatpush1.bf16.msra.mxu0 %v683
    %1435 = vmatprep.subr.bf16.mxu0 %v686
    %1436 = vmatpush1.bf16.msra.mxu0 %v685
    %1437 = vmatprep.subr.bf16.mxu0 %v688
    %1438 = vmatpush1.bf16.msra.mxu0 %v687
    %1439 = vmatprep.subr.bf16.mxu0 %v690
    %1440 = vmatpush1.bf16.msra.mxu0 %v689
    %1441 = vmatprep.mubr.bf16.mxu0 %v840
    %1442 = vmatmul.mubr.bf16.gmra.mrb[0].mxu0 %v839
    %v1443 = vpop.f32.mrb[0].mxu0
    %v1444 = vadd.f32 %v1403, %v1443
    %v1445 = vpop.f32.mrb[0].mxu0
    %v1446 = vadd.f32 %v1405, %v1445
    %v1447 = vpop.f32.mrb[0].mxu0
    %v1448 = vpop.f32.mrb[0].mxu0
    %1449 = vdwg.mxu0
    %v1450 = vtanh.pop %v1444
    %v1451 = vtanh.pop %v1446
    %v1452 = vpack.c.bf16 %v1450, %v1450
    %v1453 = vpack.c.bf16 %v1451, %v1451
    %1454 = vmatprep.subr.bf16.mxu0 %v1106
    %1455 = vmatpush1.bf16.msra.mxu0 %v1105
    %1456 = vmatprep.subr.bf16.mxu0 %v1108
    %1457 = vmatpush1.bf16.msra.mxu0 %v1107
    %1458 = vmatprep.subr.bf16.mxu0 %v1110
    %1459 = vmatpush1.bf16.msra.mxu0 %v1109
    %1460 = vmatprep.subr.bf16.mxu0 %v1112
    %1461 = vmatpush1.bf16.msra.mxu0 %v1111
    %1462 = vmatprep.subr.bf16.mxu0 %v1114
    %1463 = vmatpush1.bf16.msra.mxu0 %v1113
    %1464 = vmatprep.subr.bf16.mxu0 %v1116
    %1465 = vmatpush1.bf16.msra.mxu0 %v1115
    %1466 = vmatprep.subr.bf16.mxu0 %v1118
    %1467 = vmatpush1.bf16.msra.mxu0 %v1117
    %1468 = vmatprep.subr.bf16.mxu0 %v1120
    %1469 = vmatpush1.bf16.msra.mxu0 %v1119
    %1470 = vmatprep.subr.bf16.mxu0 %v1122
    %1471 = vmatpush1.bf16.msra.mxu0 %v1121
    %1472 = vmatprep.subr.bf16.mxu0 %v1124
    %1473 = vmatpush1.bf16.msra.mxu0 %v1123
    %1474 = vmatprep.subr.bf16.mxu0 %v1126
    %1475 = vmatpush1.bf16.msra.mxu0 %v1125
    %1476 = vmatprep.subr.bf16.mxu0 %v1128
    %1477 = vmatpush1.bf16.msra.mxu0 %v1127
    %1478 = vmatprep.subr.bf16.mxu0 %v1130
    %1479 = vmatpush1.bf16.msra.mxu0 %v1129
    %1480 = vmatprep.subr.bf16.mxu0 %v1132
    %1481 = vmatpush1.bf16.msra.mxu0 %v1131
    %1482 = vmatprep.subr.bf16.mxu0 %v1134
    %1483 = vmatpush1.bf16.msra.mxu0 %v1133
    %1484 = vmatprep.subr.bf16.mxu0 %v1136
    %1485 = vmatpush1.bf16.msra.mxu0 %v1135
    %1486 = vmatprep.mubr.bf16.mxu0 %v1453
    %1487 = vmatmul.mubr.bf16.gmra.mrb[0].mxu0 %v1452
    %v1488 = vpop.f32.mrb[0].mxu0
    %v1489 = vadd.f32 %v105, %v1488
    %v1490 = vpop.f32.mrb[0].mxu0
    %v1491 = vadd.f32 %v109, %v1490
    %v1492 = vpop.f32.mrb[0].mxu0
    %v1493 = vpop.f32.mrb[0].mxu0
    %1494 = vdwg.mxu0
    %1495 = vmatprep.subr.bf16.mxu0 %v1138
    %1496 = vmatpush1.bf16.msra.mxu0 %v1137
    %1497 = vmatprep.subr.bf16.mxu0 %v1140
    %1498 = vmatpush1.bf16.msra.mxu0 %v1139
    %1499 = vmatprep.subr.bf16.mxu0 %v1142
    %1500 = vmatpush1.bf16.msra.mxu0 %v1141
    %1501 = vmatprep.subr.bf16.mxu0 %v1144
    %1502 = vmatpush1.bf16.msra.mxu0 %v1143
    %1503 = vmatprep.subr.bf16.mxu0 %v1146
    %1504 = vmatpush1.bf16.msra.mxu0 %v1145
    %1505 = vmatprep.subr.bf16.mxu0 %v1148
    %1506 = vmatpush1.bf16.msra.mxu0 %v1147
    %1507 = vmatprep.subr.bf16.mxu0 %v1150
    %1508 = vmatpush1.bf16.msra.mxu0 %v1149
    %1509 = vmatprep.subr.bf16.mxu0 %v1152
    %1510 = vmatpush1.bf16.msra.mxu0 %v1151
    %1511 = vmatprep.subr.bf16.mxu0 %v1154
    %1512 = vmatpush1.bf16.msra.mxu0 %v1153
    %1513 = vmatprep.subr.bf16.mxu0 %v1156
    %1514 = vmatpush1.bf16.msra.mxu0 %v1155
    %1515 = vmatprep.subr.bf16.mxu0 %v1158
    %1516 = vmatpush1.bf16.msra.mxu0 %v1157
    %1517 = vmatprep.subr.bf16.mxu0 %v1160
    %1518 = vmatpush1.bf16.msra.mxu0 %v1159
    %1519 = vmatprep.subr.bf16.mxu0 %v1162
    %1520 = vmatpush1.bf16.msra.mxu0 %v1161
    %1521 = vmatprep.subr.bf16.mxu0 %v1164
    %1522 = vmatpush1.bf16.msra.mxu0 %v1163
    %1523 = vmatprep.subr.bf16.mxu0 %v1166
    %1524 = vmatpush1.bf16.msra.mxu0 %v1165
    %1525 = vmatprep.subr.bf16.mxu0 %v1168
    %1526 = vmatpush1.bf16.msra.mxu0 %v1167
    %1527 = vmatprep.mubr.bf16.mxu0 %v1318
    %1528 = vmatmul.mubr.bf16.gmra.mrb[0].mxu0 %v1317
    %v1529 = vpop.f32.mrb[0].mxu0
    %v1530 = vadd.f32 %v1489, %v1529
    %v1531 = vpop.f32.mrb[0].mxu0
    %v1532 = vadd.f32 %v1491, %v1531
    %v1533 = vpop.f32.mrb[0].mxu0
    %v1534 = vpop.f32.mrb[0].mxu0
    %1535 = vdwg.mxu0
    %v1536 = vtanh.pop %v1530
    %v1537 = vtanh.pop %v1532
    %v1538 = vpack.c.bf16 %v1536, %v1536
    %v1539 = vpack.c.bf16 %v1537, %v1537
    %s1540 = scalar_lea.vmem [#allocation3], 16
    %v1541 = vld [vmem:[%s1540] sm:$0xff]
    %v1542 = vunpack.c.l.bf16 %v1541
    %v1543 = vunpack.c.h.bf16 %v1541
    %1544 = vmatprep.subr.bf16.mxu0 %v256
    %1545 = vmatpush1.bf16.msra.mxu0 %v255
    %1546 = vmatprep.subr.bf16.mxu0 %v258
    %1547 = vmatpush1.bf16.msra.mxu0 %v257
    %1548 = vmatprep.subr.bf16.mxu0 %v260
    %1549 = vmatpush1.bf16.msra.mxu0 %v259
    %1550 = vmatprep.subr.bf16.mxu0 %v262
    %1551 = vmatpush1.bf16.msra.mxu0 %v261
    %1552 = vmatprep.subr.bf16.mxu0 %v264
    %1553 = vmatpush1.bf16.msra.mxu0 %v263
    %1554 = vmatprep.subr.bf16.mxu0 %v266
    %1555 = vmatpush1.bf16.msra.mxu0 %v265
    %1556 = vmatprep.subr.bf16.mxu0 %v268
    %1557 = vmatpush1.bf16.msra.mxu0 %v267
    %1558 = vmatprep.subr.bf16.mxu0 %v270
    %1559 = vmatpush1.bf16.msra.mxu0 %v269
    %1560 = vmatprep.subr.bf16.mxu0 %v272
    %1561 = vmatpush1.bf16.msra.mxu0 %v271
    %1562 = vmatprep.subr.bf16.mxu0 %v274
    %1563 = vmatpush1.bf16.msra.mxu0 %v273
    %1564 = vmatprep.subr.bf16.mxu0 %v276
    %1565 = vmatpush1.bf16.msra.mxu0 %v275
    %1566 = vmatprep.subr.bf16.mxu0 %v278
    %1567 = vmatpush1.bf16.msra.mxu0 %v277
    %1568 = vmatprep.subr.bf16.mxu0 %v280
    %1569 = vmatpush1.bf16.msra.mxu0 %v279
    %1570 = vmatprep.subr.bf16.mxu0 %v282
    %1571 = vmatpush1.bf16.msra.mxu0 %v281
    %1572 = vmatprep.subr.bf16.mxu0 %v284
    %1573 = vmatpush1.bf16.msra.mxu0 %v283
    %1574 = vmatprep.subr.bf16.mxu0 %v286
    %1575 = vmatpush1.bf16.msra.mxu0 %v285
    %1576 = vmatprep.mubr.bf16.mxu0 %v1367
    %1577 = vmatmul.mubr.bf16.gmra.mrb[0].mxu0 %v1366
    %v1578 = vpop.f32.mrb[0].mxu0
    %v1579 = vadd.f32 %v1542, %v1578
    %v1580 = vpop.f32.mrb[0].mxu0
    %v1581 = vadd.f32 %v1543, %v1580
    %v1582 = vpop.f32.mrb[0].mxu0
    %v1583 = vpop.f32.mrb[0].mxu0
    %1584 = vdwg.mxu0
    %v1585 = vtanh.pop %v1579
    %v1586 = vtanh.pop %v1581
    %v1587 = vpack.c.bf16 %v1585, %v1585
    %v1588 = vpack.c.bf16 %v1586, %v1586
    %1589 = vmatprep.subr.bf16.mxu0 %v628
    %1590 = vmatpush1.bf16.msra.mxu0 %v627
    %1591 = vmatprep.subr.bf16.mxu0 %v630
    %1592 = vmatpush1.bf16.msra.mxu0 %v629
    %1593 = vmatprep.subr.bf16.mxu0 %v632
    %1594 = vmatpush1.bf16.msra.mxu0 %v631
    %1595 = vmatprep.subr.bf16.mxu0 %v634
    %1596 = vmatpush1.bf16.msra.mxu0 %v633
    %1597 = vmatprep.subr.bf16.mxu0 %v636
    %1598 = vmatpush1.bf16.msra.mxu0 %v635
    %1599 = vmatprep.subr.bf16.mxu0 %v638
    %1600 = vmatpush1.bf16.msra.mxu0 %v637
    %1601 = vmatprep.subr.bf16.mxu0 %v640
    %1602 = vmatpush1.bf16.msra.mxu0 %v639
    %1603 = vmatprep.subr.bf16.mxu0 %v642
    %1604 = vmatpush1.bf16.msra.mxu0 %v641
    %1605 = vmatprep.subr.bf16.mxu0 %v644
    %1606 = vmatpush1.bf16.msra.mxu0 %v643
    %1607 = vmatprep.subr.bf16.mxu0 %v646
    %1608 = vmatpush1.bf16.msra.mxu0 %v645
    %1609 = vmatprep.subr.bf16.mxu0 %v648
    %1610 = vmatpush1.bf16.msra.mxu0 %v647
    %1611 = vmatprep.subr.bf16.mxu0 %v650
    %1612 = vmatpush1.bf16.msra.mxu0 %v649
    %1613 = vmatprep.subr.bf16.mxu0 %v652
    %1614 = vmatpush1.bf16.msra.mxu0 %v651
    %1615 = vmatprep.subr.bf16.mxu0 %v654
    %1616 = vmatpush1.bf16.msra.mxu0 %v653
    %1617 = vmatprep.subr.bf16.mxu0 %v656
    %1618 = vmatpush1.bf16.msra.mxu0 %v655
    %1619 = vmatprep.subr.bf16.mxu0 %v658
    %1620 = vmatpush1.bf16.msra.mxu0 %v657
    %1621 = vmatprep.mubr.bf16.mxu0 %v1588
    %1622 = vmatmul.mubr.bf16.gmra.mrb[0].mxu0 %v1587
    %v1623 = vpop.f32.mrb[0].mxu0
    %v1624 = vadd.f32 %v92, %v1623
    %v1625 = vpop.f32.mrb[0].mxu0
    %v1626 = vadd.f32 %v96, %v1625
    %v1627 = vpop.f32.mrb[0].mxu0
    %v1628 = vpop.f32.mrb[0].mxu0
    %1629 = vdwg.mxu0
    %1630 = vmatprep.subr.bf16.mxu0 %v660
    %1631 = vmatpush1.bf16.msra.mxu0 %v659
    %1632 = vmatprep.subr.bf16.mxu0 %v662
    %1633 = vmatpush1.bf16.msra.mxu0 %v661
    %1634 = vmatprep.subr.bf16.mxu0 %v664
    %1635 = vmatpush1.bf16.msra.mxu0 %v663
    %1636 = vmatprep.subr.bf16.mxu0 %v666
    %1637 = vmatpush1.bf16.msra.mxu0 %v665
    %1638 = vmatprep.subr.bf16.mxu0 %v668
    %1639 = vmatpush1.bf16.msra.mxu0 %v667
    %1640 = vmatprep.subr.bf16.mxu0 %v670
    %1641 = vmatpush1.bf16.msra.mxu0 %v669
    %1642 = vmatprep.subr.bf16.mxu0 %v672
    %1643 = vmatpush1.bf16.msra.mxu0 %v671
    %1644 = vmatprep.subr.bf16.mxu0 %v674
    %1645 = vmatpush1.bf16.msra.mxu0 %v673
    %1646 = vmatprep.subr.bf16.mxu0 %v676
    %1647 = vmatpush1.bf16.msra.mxu0 %v675
    %1648 = vmatprep.subr.bf16.mxu0 %v678
    %1649 = vmatpush1.bf16.msra.mxu0 %v677
    %1650 = vmatprep.subr.bf16.mxu0 %v680
    %1651 = vmatpush1.bf16.msra.mxu0 %v679
    %1652 = vmatprep.subr.bf16.mxu0 %v682
    %1653 = vmatpush1.bf16.msra.mxu0 %v681
    %1654 = vmatprep.subr.bf16.mxu0 %v684
    %1655 = vmatpush1.bf16.msra.mxu0 %v683
    %1656 = vmatprep.subr.bf16.mxu0 %v686
    %1657 = vmatpush1.bf16.msra.mxu0 %v685
    %1658 = vmatprep.subr.bf16.mxu0 %v688
    %1659 = vmatpush1.bf16.msra.mxu0 %v687
    %1660 = vmatprep.subr.bf16.mxu0 %v690
    %1661 = vmatpush1.bf16.msra.mxu0 %v689
    %1662 = vmatprep.mubr.bf16.mxu0 %v1453
    %1663 = vmatmul.mubr.bf16.gmra.mrb[0].mxu0 %v1452
    %v1664 = vpop.f32.mrb[0].mxu0
    %v1665 = vadd.f32 %v1624, %v1664
    %v1666 = vpop.f32.mrb[0].mxu0
    %v1667 = vadd.f32 %v1626, %v1666
    %v1668 = vpop.f32.mrb[0].mxu0
    %v1669 = vpop.f32.mrb[0].mxu0
    %1670 = vdwg.mxu0
    %v1671 = vtanh.pop %v1665
    %v1672 = vtanh.pop %v1667
    %v1673 = vpack.c.bf16 %v1671, %v1671
    %v1674 = vpack.c.bf16 %v1672, %v1672
    %1675 = vmatprep.subr.bf16.mxu0 %v1106
    %1676 = vmatpush1.bf16.msra.mxu0 %v1105
    %1677 = vmatprep.subr.bf16.mxu0 %v1108
    %1678 = vmatpush1.bf16.msra.mxu0 %v1107
    %1679 = vmatprep.subr.bf16.mxu0 %v1110
    %1680 = vmatpush1.bf16.msra.mxu0 %v1109
    %1681 = vmatprep.subr.bf16.mxu0 %v1112
    %1682 = vmatpush1.bf16.msra.mxu0 %v1111
    %1683 = vmatprep.subr.bf16.mxu0 %v1114
    %1684 = vmatpush1.bf16.msra.mxu0 %v1113
    %1685 = vmatprep.subr.bf16.mxu0 %v1116
    %1686 = vmatpush1.bf16.msra.mxu0 %v1115
    %1687 = vmatprep.subr.bf16.mxu0 %v1118
    %1688 = vmatpush1.bf16.msra.mxu0 %v1117
    %1689 = vmatprep.subr.bf16.mxu0 %v1120
    %1690 = vmatpush1.bf16.msra.mxu0 %v1119
    %1691 = vmatprep.subr.bf16.mxu0 %v1122
    %1692 = vmatpush1.bf16.msra.mxu0 %v1121
    %1693 = vmatprep.subr.bf16.mxu0 %v1124
    %1694 = vmatpush1.bf16.msra.mxu0 %v1123
    %1695 = vmatprep.subr.bf16.mxu0 %v1126
    %1696 = vmatpush1.bf16.msra.mxu0 %v1125
    %1697 = vmatprep.subr.bf16.mxu0 %v1128
    %1698 = vmatpush1.bf16.msra.mxu0 %v1127
    %1699 = vmatprep.subr.bf16.mxu0 %v1130
    %1700 = vmatpush1.bf16.msra.mxu0 %v1129
    %1701 = vmatprep.subr.bf16.mxu0 %v1132
    %1702 = vmatpush1.bf16.msra.mxu0 %v1131
    %1703 = vmatprep.subr.bf16.mxu0 %v1134
    %1704 = vmatpush1.bf16.msra.mxu0 %v1133
    %1705 = vmatprep.subr.bf16.mxu0 %v1136
    %1706 = vmatpush1.bf16.msra.mxu0 %v1135
    %1707 = vmatprep.mubr.bf16.mxu0 %v1674
    %1708 = vmatmul.mubr.bf16.gmra.mrb[0].mxu0 %v1673
    %v1709 = vpop.f32.mrb[0].mxu0
    %v1710 = vadd.f32 %v105, %v1709
    %v1711 = vpop.f32.mrb[0].mxu0
    %v1712 = vadd.f32 %v109, %v1711
    %v1713 = vpop.f32.mrb[0].mxu0
    %v1714 = vpop.f32.mrb[0].mxu0
    %1715 = vdwg.mxu0
    %1716 = vmatprep.subr.bf16.mxu0 %v1138
    %1717 = vmatpush1.bf16.msra.mxu0 %v1137
    %1718 = vmatprep.subr.bf16.mxu0 %v1140
    %1719 = vmatpush1.bf16.msra.mxu0 %v1139
    %1720 = vmatprep.subr.bf16.mxu0 %v1142
    %1721 = vmatpush1.bf16.msra.mxu0 %v1141
    %1722 = vmatprep.subr.bf16.mxu0 %v1144
    %1723 = vmatpush1.bf16.msra.mxu0 %v1143
    %1724 = vmatprep.subr.bf16.mxu0 %v1146
    %1725 = vmatpush1.bf16.msra.mxu0 %v1145
    %1726 = vmatprep.subr.bf16.mxu0 %v1148
    %1727 = vmatpush1.bf16.msra.mxu0 %v1147
    %1728 = vmatprep.subr.bf16.mxu0 %v1150
    %1729 = vmatpush1.bf16.msra.mxu0 %v1149
    %1730 = vmatprep.subr.bf16.mxu0 %v1152
    %1731 = vmatpush1.bf16.msra.mxu0 %v1151
    %1732 = vmatprep.subr.bf16.mxu0 %v1154
    %1733 = vmatpush1.bf16.msra.mxu0 %v1153
    %1734 = vmatprep.subr.bf16.mxu0 %v1156
    %1735 = vmatpush1.bf16.msra.mxu0 %v1155
    %1736 = vmatprep.subr.bf16.mxu0 %v1158
    %1737 = vmatpush1.bf16.msra.mxu0 %v1157
    %1738 = vmatprep.subr.bf16.mxu0 %v1160
    %1739 = vmatpush1.bf16.msra.mxu0 %v1159
    %1740 = vmatprep.subr.bf16.mxu0 %v1162
    %1741 = vmatpush1.bf16.msra.mxu0 %v1161
    %1742 = vmatprep.subr.bf16.mxu0 %v1164
    %1743 = vmatpush1.bf16.msra.mxu0 %v1163
    %1744 = vmatprep.subr.bf16.mxu0 %v1166
    %1745 = vmatpush1.bf16.msra.mxu0 %v1165
    %1746 = vmatprep.subr.bf16.mxu0 %v1168
    %1747 = vmatpush1.bf16.msra.mxu0 %v1167
    %1748 = vmatprep.mubr.bf16.mxu0 %v1539
    %1749 = vmatmul.mubr.bf16.gmra.mrb[0].mxu0 %v1538
    %v1750 = vpop.f32.mrb[0].mxu0
    %v1751 = vadd.f32 %v1710, %v1750
    %v1752 = vpop.f32.mrb[0].mxu0
    %v1753 = vadd.f32 %v1712, %v1752
    %v1754 = vpop.f32.mrb[0].mxu0
    %v1755 = vpop.f32.mrb[0].mxu0
    %1756 = vdwg.mxu0
    %v1757 = vtanh.pop %v1751
    %v1758 = vtanh.pop %v1753
    %v1759 = vpack.c.bf16 %v1757, %v1757
    %v1760 = vpack.c.bf16 %v1758, %v1758
    %s1761 = scalar_lea.vmem [#allocation3], 24
    %v1762 = vld [vmem:[%s1761] sm:$0xff]
    %v1763 = vunpack.c.l.bf16 %v1762
    %v1764 = vunpack.c.h.bf16 %v1762
    %1765 = vmatprep.subr.bf16.mxu0 %v256
    %1766 = vmatpush1.bf16.msra.mxu0 %v255
    %1767 = vmatprep.subr.bf16.mxu0 %v258
    %1768 = vmatpush1.bf16.msra.mxu0 %v257
    %1769 = vmatprep.subr.bf16.mxu0 %v260
    %1770 = vmatpush1.bf16.msra.mxu0 %v259
    %1771 = vmatprep.subr.bf16.mxu0 %v262
    %1772 = vmatpush1.bf16.msra.mxu0 %v261
    %1773 = vmatprep.subr.bf16.mxu0 %v264
    %1774 = vmatpush1.bf16.msra.mxu0 %v263
    %1775 = vmatprep.subr.bf16.mxu0 %v266
    %1776 = vmatpush1.bf16.msra.mxu0 %v265
    %1777 = vmatprep.subr.bf16.mxu0 %v268
    %1778 = vmatpush1.bf16.msra.mxu0 %v267
    %1779 = vmatprep.subr.bf16.mxu0 %v270
    %1780 = vmatpush1.bf16.msra.mxu0 %v269
    %1781 = vmatprep.subr.bf16.mxu0 %v272
    %1782 = vmatpush1.bf16.msra.mxu0 %v271
    %1783 = vmatprep.subr.bf16.mxu0 %v274
    %1784 = vmatpush1.bf16.msra.mxu0 %v273
    %1785 = vmatprep.subr.bf16.mxu0 %v276
    %1786 = vmatpush1.bf16.msra.mxu0 %v275
    %1787 = vmatprep.subr.bf16.mxu0 %v278
    %1788 = vmatpush1.bf16.msra.mxu0 %v277
    %1789 = vmatprep.subr.bf16.mxu0 %v280
    %1790 = vmatpush1.bf16.msra.mxu0 %v279
    %1791 = vmatprep.subr.bf16.mxu0 %v282
    %1792 = vmatpush1.bf16.msra.mxu0 %v281
    %1793 = vmatprep.subr.bf16.mxu0 %v284
    %1794 = vmatpush1.bf16.msra.mxu0 %v283
    %1795 = vmatprep.subr.bf16.mxu0 %v286
    %1796 = vmatpush1.bf16.msra.mxu0 %v285
    %1797 = vmatprep.mubr.bf16.mxu0 %v1588
    %1798 = vmatmul.mubr.bf16.gmra.mrb[0].mxu0 %v1587
    %v1799 = vpop.f32.mrb[0].mxu0
    %v1800 = vadd.f32 %v1763, %v1799
    %v1801 = vpop.f32.mrb[0].mxu0
    %v1802 = vadd.f32 %v1764, %v1801
    %v1803 = vpop.f32.mrb[0].mxu0
    %v1804 = vpop.f32.mrb[0].mxu0
    %1805 = vdwg.mxu0
    %v1806 = vtanh.pop %v1800
    %v1807 = vtanh.pop %v1802
    %v1808 = vpack.c.bf16 %v1806, %v1806
    %v1809 = vpack.c.bf16 %v1807, %v1807
    %1810 = vmatprep.subr.bf16.mxu0 %v628
    %1811 = vmatpush1.bf16.msra.mxu0 %v627
    %1812 = vmatprep.subr.bf16.mxu0 %v630
    %1813 = vmatpush1.bf16.msra.mxu0 %v629
    %1814 = vmatprep.subr.bf16.mxu0 %v632
    %1815 = vmatpush1.bf16.msra.mxu0 %v631
    %1816 = vmatprep.subr.bf16.mxu0 %v634
    %1817 = vmatpush1.bf16.msra.mxu0 %v633
    %1818 = vmatprep.subr.bf16.mxu0 %v636
    %1819 = vmatpush1.bf16.msra.mxu0 %v635
    %1820 = vmatprep.subr.bf16.mxu0 %v638
    %1821 = vmatpush1.bf16.msra.mxu0 %v637
    %1822 = vmatprep.subr.bf16.mxu0 %v640
    %1823 = vmatpush1.bf16.msra.mxu0 %v639
    %1824 = vmatprep.subr.bf16.mxu0 %v642
    %1825 = vmatpush1.bf16.msra.mxu0 %v641
    %1826 = vmatprep.subr.bf16.mxu0 %v644
    %1827 = vmatpush1.bf16.msra.mxu0 %v643
    %1828 = vmatprep.subr.bf16.mxu0 %v646
    %1829 = vmatpush1.bf16.msra.mxu0 %v645
    %1830 = vmatprep.subr.bf16.mxu0 %v648
    %1831 = vmatpush1.bf16.msra.mxu0 %v647
    %1832 = vmatprep.subr.bf16.mxu0 %v650
    %1833 = vmatpush1.bf16.msra.mxu0 %v649
    %1834 = vmatprep.subr.bf16.mxu0 %v652
    %1835 = vmatpush1.bf16.msra.mxu0 %v651
    %1836 = vmatprep.subr.bf16.mxu0 %v654
    %1837 = vmatpush1.bf16.msra.mxu0 %v653
    %1838 = vmatprep.subr.bf16.mxu0 %v656
    %1839 = vmatpush1.bf16.msra.mxu0 %v655
    %1840 = vmatprep.subr.bf16.mxu0 %v658
    %1841 = vmatpush1.bf16.msra.mxu0 %v657
    %1842 = vmatprep.mubr.bf16.mxu0 %v1809
    %1843 = vmatmul.mubr.bf16.gmra.mrb[0].mxu0 %v1808
    %v1844 = vpop.f32.mrb[0].mxu0
    %v1845 = vadd.f32 %v92, %v1844
    %v1846 = vpop.f32.mrb[0].mxu0
    %v1847 = vadd.f32 %v96, %v1846
    %v1848 = vpop.f32.mrb[0].mxu0
    %v1849 = vpop.f32.mrb[0].mxu0
    %1850 = vdwg.mxu0
    %1851 = vmatprep.subr.bf16.mxu0 %v660
    %1852 = vmatpush1.bf16.msra.mxu0 %v659
    %1853 = vmatprep.subr.bf16.mxu0 %v662
    %1854 = vmatpush1.bf16.msra.mxu0 %v661
    %1855 = vmatprep.subr.bf16.mxu0 %v664
    %1856 = vmatpush1.bf16.msra.mxu0 %v663
    %1857 = vmatprep.subr.bf16.mxu0 %v666
    %1858 = vmatpush1.bf16.msra.mxu0 %v665
    %1859 = vmatprep.subr.bf16.mxu0 %v668
    %1860 = vmatpush1.bf16.msra.mxu0 %v667
    %1861 = vmatprep.subr.bf16.mxu0 %v670
    %1862 = vmatpush1.bf16.msra.mxu0 %v669
    %1863 = vmatprep.subr.bf16.mxu0 %v672
    %1864 = vmatpush1.bf16.msra.mxu0 %v671
    %1865 = vmatprep.subr.bf16.mxu0 %v674
    %1866 = vmatpush1.bf16.msra.mxu0 %v673
    %1867 = vmatprep.subr.bf16.mxu0 %v676
    %1868 = vmatpush1.bf16.msra.mxu0 %v675
    %1869 = vmatprep.subr.bf16.mxu0 %v678
    %1870 = vmatpush1.bf16.msra.mxu0 %v677
    %1871 = vmatprep.subr.bf16.mxu0 %v680
    %1872 = vmatpush1.bf16.msra.mxu0 %v679
    %1873 = vmatprep.subr.bf16.mxu0 %v682
    %1874 = vmatpush1.bf16.msra.mxu0 %v681
    %1875 = vmatprep.subr.bf16.mxu0 %v684
    %1876 = vmatpush1.bf16.msra.mxu0 %v683
    %1877 = vmatprep.subr.bf16.mxu0 %v686
    %1878 = vmatpush1.bf16.msra.mxu0 %v685
    %1879 = vmatprep.subr.bf16.mxu0 %v688
    %1880 = vmatpush1.bf16.msra.mxu0 %v687
    %1881 = vmatprep.subr.bf16.mxu0 %v690
    %1882 = vmatpush1.bf16.msra.mxu0 %v689
    %1883 = vmatprep.mubr.bf16.mxu0 %v1674
    %1884 = vmatmul.mubr.bf16.gmra.mrb[0].mxu0 %v1673
    %v1885 = vpop.f32.mrb[0].mxu0
    %v1886 = vadd.f32 %v1845, %v1885
    %v1887 = vpop.f32.mrb[0].mxu0
    %v1888 = vadd.f32 %v1847, %v1887
    %v1889 = vpop.f32.mrb[0].mxu0
    %v1890 = vpop.f32.mrb[0].mxu0
    %1891 = vdwg.mxu0
    %v1892 = vtanh.pop %v1886
    %v1893 = vtanh.pop %v1888
    %v1894 = vpack.c.bf16 %v1892, %v1892
    %v1895 = vpack.c.bf16 %v1893, %v1893
    %1896 = vmatprep.subr.bf16.mxu0 %v1106
    %1897 = vmatpush1.bf16.msra.mxu0 %v1105
    %1898 = vmatprep.subr.bf16.mxu0 %v1108
    %1899 = vmatpush1.bf16.msra.mxu0 %v1107
    %1900 = vmatprep.subr.bf16.mxu0 %v1110
    %1901 = vmatpush1.bf16.msra.mxu0 %v1109
    %1902 = vmatprep.subr.bf16.mxu0 %v1112
    %1903 = vmatpush1.bf16.msra.mxu0 %v1111
    %1904 = vmatprep.subr.bf16.mxu0 %v1114
    %1905 = vmatpush1.bf16.msra.mxu0 %v1113
    %1906 = vmatprep.subr.bf16.mxu0 %v1116
    %1907 = vmatpush1.bf16.msra.mxu0 %v1115
    %1908 = vmatprep.subr.bf16.mxu0 %v1118
    %1909 = vmatpush1.bf16.msra.mxu0 %v1117
    %1910 = vmatprep.subr.bf16.mxu0 %v1120
    %1911 = vmatpush1.bf16.msra.mxu0 %v1119
    %1912 = vmatprep.subr.bf16.mxu0 %v1122
    %1913 = vmatpush1.bf16.msra.mxu0 %v1121
    %1914 = vmatprep.subr.bf16.mxu0 %v1124
    %1915 = vmatpush1.bf16.msra.mxu0 %v1123
    %1916 = vmatprep.subr.bf16.mxu0 %v1126
    %1917 = vmatpush1.bf16.msra.mxu0 %v1125
    %1918 = vmatprep.subr.bf16.mxu0 %v1128
    %1919 = vmatpush1.bf16.msra.mxu0 %v1127
    %1920 = vmatprep.subr.bf16.mxu0 %v1130
    %1921 = vmatpush1.bf16.msra.mxu0 %v1129
    %1922 = vmatprep.subr.bf16.mxu0 %v1132
    %1923 = vmatpush1.bf16.msra.mxu0 %v1131
    %1924 = vmatprep.subr.bf16.mxu0 %v1134
    %1925 = vmatpush1.bf16.msra.mxu0 %v1133
    %1926 = vmatprep.subr.bf16.mxu0 %v1136
    %1927 = vmatpush1.bf16.msra.mxu0 %v1135
    %1928 = vmatprep.mubr.bf16.mxu0 %v1895
    %1929 = vmatmul.mubr.bf16.gmra.mrb[0].mxu0 %v1894
    %v1930 = vpop.f32.mrb[0].mxu0
    %v1931 = vadd.f32 %v105, %v1930
    %v1932 = vpop.f32.mrb[0].mxu0
    %v1933 = vadd.f32 %v109, %v1932
    %v1934 = vpop.f32.mrb[0].mxu0
    %v1935 = vpop.f32.mrb[0].mxu0
    %1936 = vdwg.mxu0
    %1937 = vmatprep.subr.bf16.mxu0 %v1138
    %1938 = vmatpush1.bf16.msra.mxu0 %v1137
    %1939 = vmatprep.subr.bf16.mxu0 %v1140
    %1940 = vmatpush1.bf16.msra.mxu0 %v1139
    %1941 = vmatprep.subr.bf16.mxu0 %v1142
    %1942 = vmatpush1.bf16.msra.mxu0 %v1141
    %1943 = vmatprep.subr.bf16.mxu0 %v1144
    %1944 = vmatpush1.bf16.msra.mxu0 %v1143
    %1945 = vmatprep.subr.bf16.mxu0 %v1146
    %1946 = vmatpush1.bf16.msra.mxu0 %v1145
    %1947 = vmatprep.subr.bf16.mxu0 %v1148
    %1948 = vmatpush1.bf16.msra.mxu0 %v1147
    %1949 = vmatprep.subr.bf16.mxu0 %v1150
    %1950 = vmatpush1.bf16.msra.mxu0 %v1149
    %1951 = vmatprep.subr.bf16.mxu0 %v1152
    %1952 = vmatpush1.bf16.msra.mxu0 %v1151
    %1953 = vmatprep.subr.bf16.mxu0 %v1154
    %1954 = vmatpush1.bf16.msra.mxu0 %v1153
    %1955 = vmatprep.subr.bf16.mxu0 %v1156
    %1956 = vmatpush1.bf16.msra.mxu0 %v1155
    %1957 = vmatprep.subr.bf16.mxu0 %v1158
    %1958 = vmatpush1.bf16.msra.mxu0 %v1157
    %1959 = vmatprep.subr.bf16.mxu0 %v1160
    %1960 = vmatpush1.bf16.msra.mxu0 %v1159
    %1961 = vmatprep.subr.bf16.mxu0 %v1162
    %1962 = vmatpush1.bf16.msra.mxu0 %v1161
    %1963 = vmatprep.subr.bf16.mxu0 %v1164
    %1964 = vmatpush1.bf16.msra.mxu0 %v1163
    %1965 = vmatprep.subr.bf16.mxu0 %v1166
    %1966 = vmatpush1.bf16.msra.mxu0 %v1165
    %1967 = vmatprep.subr.bf16.mxu0 %v1168
    %1968 = vmatpush1.bf16.msra.mxu0 %v1167
    %1969 = vmatprep.mubr.bf16.mxu0 %v1760
    %1970 = vmatmul.mubr.bf16.gmra.mrb[0].mxu0 %v1759
    %v1971 = vpop.f32.mrb[0].mxu0
    %v1972 = vadd.f32 %v1931, %v1971
    %v1973 = vpop.f32.mrb[0].mxu0
    %v1974 = vadd.f32 %v1933, %v1973
    %v1975 = vpop.f32.mrb[0].mxu0
    %v1976 = vpop.f32.mrb[0].mxu0
    %1977 = vdwg.mxu0
    %v1978 = vtanh.pop %v1972
    %v1979 = vtanh.pop %v1974
    %v1980 = vpack.c.bf16 %v1978, %v1978
    %v1981 = vpack.c.bf16 %v1979, %v1979
    %s1982 = scalar_lea.vmem [#allocation3], 32
    %v1983 = vld [vmem:[%s1982] sm:$0xff]
    %v1984 = vunpack.c.l.bf16 %v1983
    %v1985 = vunpack.c.h.bf16 %v1983
    %1986 = vmatprep.subr.bf16.mxu0 %v256
    %1987 = vmatpush1.bf16.msra.mxu0 %v255
    %1988 = vmatprep.subr.bf16.mxu0 %v258
    %1989 = vmatpush1.bf16.msra.mxu0 %v257
    %1990 = vmatprep.subr.bf16.mxu0 %v260
    %1991 = vmatpush1.bf16.msra.mxu0 %v259
    %1992 = vmatprep.subr.bf16.mxu0 %v262
    %1993 = vmatpush1.bf16.msra.mxu0 %v261
    %1994 = vmatprep.subr.bf16.mxu0 %v264
    %1995 = vmatpush1.bf16.msra.mxu0 %v263
    %1996 = vmatprep.subr.bf16.mxu0 %v266
    %1997 = vmatpush1.bf16.msra.mxu0 %v265
    %1998 = vmatprep.subr.bf16.mxu0 %v268
    %1999 = vmatpush1.bf16.msra.mxu0 %v267
    %2000 = vmatprep.subr.bf16.mxu0 %v270
    %2001 = vmatpush1.bf16.msra.mxu0 %v269
    %2002 = vmatprep.subr.bf16.mxu0 %v272
    %2003 = vmatpush1.bf16.msra.mxu0 %v271
    %2004 = vmatprep.subr.bf16.mxu0 %v274
    %2005 = vmatpush1.bf16.msra.mxu0 %v273
    %2006 = vmatprep.subr.bf16.mxu0 %v276
    %2007 = vmatpush1.bf16.msra.mxu0 %v275
    %2008 = vmatprep.subr.bf16.mxu0 %v278
    %2009 = vmatpush1.bf16.msra.mxu0 %v277
    %2010 = vmatprep.subr.bf16.mxu0 %v280
    %2011 = vmatpush1.bf16.msra.mxu0 %v279
    %2012 = vmatprep.subr.bf16.mxu0 %v282
    %2013 = vmatpush1.bf16.msra.mxu0 %v281
    %2014 = vmatprep.subr.bf16.mxu0 %v284
    %2015 = vmatpush1.bf16.msra.mxu0 %v283
    %2016 = vmatprep.subr.bf16.mxu0 %v286
    %2017 = vmatpush1.bf16.msra.mxu0 %v285
    %2018 = vmatprep.mubr.bf16.mxu0 %v1809
    %2019 = vmatmul.mubr.bf16.gmra.mrb[0].mxu0 %v1808
    %v2020 = vpop.f32.mrb[0].mxu0
    %v2021 = vadd.f32 %v1984, %v2020
    %v2022 = vpop.f32.mrb[0].mxu0
    %v2023 = vadd.f32 %v1985, %v2022
    %v2024 = vpop.f32.mrb[0].mxu0
    %v2025 = vpop.f32.mrb[0].mxu0
    %2026 = vdwg.mxu0
    %v2027 = vtanh.pop %v2021
    %v2028 = vtanh.pop %v2023
    %v2029 = vpack.c.bf16 %v2027, %v2027
    %v2030 = vpack.c.bf16 %v2028, %v2028
    %2031 = vmatprep.subr.bf16.mxu0 %v628
    %2032 = vmatpush1.bf16.msra.mxu0 %v627
    %2033 = vmatprep.subr.bf16.mxu0 %v630
    %2034 = vmatpush1.bf16.msra.mxu0 %v629
    %2035 = vmatprep.subr.bf16.mxu0 %v632
    %2036 = vmatpush1.bf16.msra.mxu0 %v631
    %2037 = vmatprep.subr.bf16.mxu0 %v634
    %2038 = vmatpush1.bf16.msra.mxu0 %v633
    %2039 = vmatprep.subr.bf16.mxu0 %v636
    %2040 = vmatpush1.bf16.msra.mxu0 %v635
    %2041 = vmatprep.subr.bf16.mxu0 %v638
    %2042 = vmatpush1.bf16.msra.mxu0 %v637
    %2043 = vmatprep.subr.bf16.mxu0 %v640
    %2044 = vmatpush1.bf16.msra.mxu0 %v639
    %2045 = vmatprep.subr.bf16.mxu0 %v642
    %2046 = vmatpush1.bf16.msra.mxu0 %v641
    %2047 = vmatprep.subr.bf16.mxu0 %v644
    %2048 = vmatpush1.bf16.msra.mxu0 %v643
    %2049 = vmatprep.subr.bf16.mxu0 %v646
    %2050 = vmatpush1.bf16.msra.mxu0 %v645
    %2051 = vmatprep.subr.bf16.mxu0 %v648
    %2052 = vmatpush1.bf16.msra.mxu0 %v647
    %2053 = vmatprep.subr.bf16.mxu0 %v650
    %2054 = vmatpush1.bf16.msra.mxu0 %v649
    %2055 = vmatprep.subr.bf16.mxu0 %v652
    %2056 = vmatpush1.bf16.msra.mxu0 %v651
    %2057 = vmatprep.subr.bf16.mxu0 %v654
    %2058 = vmatpush1.bf16.msra.mxu0 %v653
    %2059 = vmatprep.subr.bf16.mxu0 %v656
    %2060 = vmatpush1.bf16.msra.mxu0 %v655
    %2061 = vmatprep.subr.bf16.mxu0 %v658
    %2062 = vmatpush1.bf16.msra.mxu0 %v657
    %2063 = vmatprep.mubr.bf16.mxu0 %v2030
    %2064 = vmatmul.mubr.bf16.gmra.mrb[0].mxu0 %v2029
    %v2065 = vpop.f32.mrb[0].mxu0
    %v2066 = vadd.f32 %v92, %v2065
    %v2067 = vpop.f32.mrb[0].mxu0
    %v2068 = vadd.f32 %v96, %v2067
    %v2069 = vpop.f32.mrb[0].mxu0
    %v2070 = vpop.f32.mrb[0].mxu0
    %2071 = vdwg.mxu0
    %2072 = vmatprep.subr.bf16.mxu0 %v660
    %2073 = vmatpush1.bf16.msra.mxu0 %v659
    %2074 = vmatprep.subr.bf16.mxu0 %v662
    %2075 = vmatpush1.bf16.msra.mxu0 %v661
    %2076 = vmatprep.subr.bf16.mxu0 %v664
    %2077 = vmatpush1.bf16.msra.mxu0 %v663
    %2078 = vmatprep.subr.bf16.mxu0 %v666
    %2079 = vmatpush1.bf16.msra.mxu0 %v665
    %2080 = vmatprep.subr.bf16.mxu0 %v668
    %2081 = vmatpush1.bf16.msra.mxu0 %v667
    %2082 = vmatprep.subr.bf16.mxu0 %v670
    %2083 = vmatpush1.bf16.msra.mxu0 %v669
    %2084 = vmatprep.subr.bf16.mxu0 %v672
    %2085 = vmatpush1.bf16.msra.mxu0 %v671
    %2086 = vmatprep.subr.bf16.mxu0 %v674
    %2087 = vmatpush1.bf16.msra.mxu0 %v673
    %2088 = vmatprep.subr.bf16.mxu0 %v676
    %2089 = vmatpush1.bf16.msra.mxu0 %v675
    %2090 = vmatprep.subr.bf16.mxu0 %v678
    %2091 = vmatpush1.bf16.msra.mxu0 %v677
    %2092 = vmatprep.subr.bf16.mxu0 %v680
    %2093 = vmatpush1.bf16.msra.mxu0 %v679
    %2094 = vmatprep.subr.bf16.mxu0 %v682
    %2095 = vmatpush1.bf16.msra.mxu0 %v681
    %2096 = vmatprep.subr.bf16.mxu0 %v684
    %2097 = vmatpush1.bf16.msra.mxu0 %v683
    %2098 = vmatprep.subr.bf16.mxu0 %v686
    %2099 = vmatpush1.bf16.msra.mxu0 %v685
    %2100 = vmatprep.subr.bf16.mxu0 %v688
    %2101 = vmatpush1.bf16.msra.mxu0 %v687
    %2102 = vmatprep.subr.bf16.mxu0 %v690
    %2103 = vmatpush1.bf16.msra.mxu0 %v689
    %2104 = vmatprep.mubr.bf16.mxu0 %v1895
    %2105 = vmatmul.mubr.bf16.gmra.mrb[0].mxu0 %v1894
    %v2106 = vpop.f32.mrb[0].mxu0
    %v2107 = vadd.f32 %v2066, %v2106
    %v2108 = vpop.f32.mrb[0].mxu0
    %v2109 = vadd.f32 %v2068, %v2108
    %v2110 = vpop.f32.mrb[0].mxu0
    %v2111 = vpop.f32.mrb[0].mxu0
    %2112 = vdwg.mxu0
    %v2113 = vtanh.pop %v2107
    %v2114 = vtanh.pop %v2109
    %v2115 = vpack.c.bf16 %v2113, %v2113
    %v2116 = vpack.c.bf16 %v2114, %v2114
    %2117 = vmatprep.subr.bf16.mxu0 %v1106
    %2118 = vmatpush1.bf16.msra.mxu0 %v1105
    %2119 = vmatprep.subr.bf16.mxu0 %v1108
    %2120 = vmatpush1.bf16.msra.mxu0 %v1107
    %2121 = vmatprep.subr.bf16.mxu0 %v1110
    %2122 = vmatpush1.bf16.msra.mxu0 %v1109
    %2123 = vmatprep.subr.bf16.mxu0 %v1112
    %2124 = vmatpush1.bf16.msra.mxu0 %v1111
    %2125 = vmatprep.subr.bf16.mxu0 %v1114
    %2126 = vmatpush1.bf16.msra.mxu0 %v1113
    %2127 = vmatprep.subr.bf16.mxu0 %v1116
    %2128 = vmatpush1.bf16.msra.mxu0 %v1115
    %2129 = vmatprep.subr.bf16.mxu0 %v1118
    %2130 = vmatpush1.bf16.msra.mxu0 %v1117
    %2131 = vmatprep.subr.bf16.mxu0 %v1120
    %2132 = vmatpush1.bf16.msra.mxu0 %v1119
    %2133 = vmatprep.subr.bf16.mxu0 %v1122
    %2134 = vmatpush1.bf16.msra.mxu0 %v1121
    %2135 = vmatprep.subr.bf16.mxu0 %v1124
    %2136 = vmatpush1.bf16.msra.mxu0 %v1123
    %2137 = vmatprep.subr.bf16.mxu0 %v1126
    %2138 = vmatpush1.bf16.msra.mxu0 %v1125
    %2139 = vmatprep.subr.bf16.mxu0 %v1128
    %2140 = vmatpush1.bf16.msra.mxu0 %v1127
    %2141 = vmatprep.subr.bf16.mxu0 %v1130
    %2142 = vmatpush1.bf16.msra.mxu0 %v1129
    %2143 = vmatprep.subr.bf16.mxu0 %v1132
    %2144 = vmatpush1.bf16.msra.mxu0 %v1131
    %2145 = vmatprep.subr.bf16.mxu0 %v1134
    %2146 = vmatpush1.bf16.msra.mxu0 %v1133
    %2147 = vmatprep.subr.bf16.mxu0 %v1136
    %2148 = vmatpush1.bf16.msra.mxu0 %v1135
    %2149 = vmatprep.mubr.bf16.mxu0 %v2116
    %2150 = vmatmul.mubr.bf16.gmra.mrb[0].mxu0 %v2115
    %v2151 = vpop.f32.mrb[0].mxu0
    %v2152 = vadd.f32 %v105, %v2151
    %v2153 = vpop.f32.mrb[0].mxu0
    %v2154 = vadd.f32 %v109, %v2153
    %v2155 = vpop.f32.mrb[0].mxu0
    %v2156 = vpop.f32.mrb[0].mxu0
    %2157 = vdwg.mxu0
    %2158 = vmatprep.subr.bf16.mxu0 %v1138
    %2159 = vmatpush1.bf16.msra.mxu0 %v1137
    %2160 = vmatprep.subr.bf16.mxu0 %v1140
    %2161 = vmatpush1.bf16.msra.mxu0 %v1139
    %2162 = vmatprep.subr.bf16.mxu0 %v1142
    %2163 = vmatpush1.bf16.msra.mxu0 %v1141
    %2164 = vmatprep.subr.bf16.mxu0 %v1144
    %2165 = vmatpush1.bf16.msra.mxu0 %v1143
    %2166 = vmatprep.subr.bf16.mxu0 %v1146
    %2167 = vmatpush1.bf16.msra.mxu0 %v1145
    %2168 = vmatprep.subr.bf16.mxu0 %v1148
    %2169 = vmatpush1.bf16.msra.mxu0 %v1147
    %2170 = vmatprep.subr.bf16.mxu0 %v1150
    %2171 = vmatpush1.bf16.msra.mxu0 %v1149
    %2172 = vmatprep.subr.bf16.mxu0 %v1152
    %2173 = vmatpush1.bf16.msra.mxu0 %v1151
    %2174 = vmatprep.subr.bf16.mxu0 %v1154
    %2175 = vmatpush1.bf16.msra.mxu0 %v1153
    %2176 = vmatprep.subr.bf16.mxu0 %v1156
    %2177 = vmatpush1.bf16.msra.mxu0 %v1155
    %2178 = vmatprep.subr.bf16.mxu0 %v1158
    %2179 = vmatpush1.bf16.msra.mxu0 %v1157
    %2180 = vmatprep.subr.bf16.mxu0 %v1160
    %2181 = vmatpush1.bf16.msra.mxu0 %v1159
    %2182 = vmatprep.subr.bf16.mxu0 %v1162
    %2183 = vmatpush1.bf16.msra.mxu0 %v1161
    %2184 = vmatprep.subr.bf16.mxu0 %v1164
    %2185 = vmatpush1.bf16.msra.mxu0 %v1163
    %2186 = vmatprep.subr.bf16.mxu0 %v1166
    %2187 = vmatpush1.bf16.msra.mxu0 %v1165
    %2188 = vmatprep.subr.bf16.mxu0 %v1168
    %2189 = vmatpush1.bf16.msra.mxu0 %v1167
    %2190 = vmatprep.mubr.bf16.mxu0 %v1981
    %2191 = vmatmul.mubr.bf16.gmra.mrb[0].mxu0 %v1980
    %v2192 = vpop.f32.mrb[0].mxu0
    %v2193 = vadd.f32 %v2152, %v2192
    %v2194 = vpop.f32.mrb[0].mxu0
    %v2195 = vadd.f32 %v2154, %v2194
    %v2196 = vpop.f32.mrb[0].mxu0
    %v2197 = vpop.f32.mrb[0].mxu0
    %2198 = vdwg.mxu0
    %v2199 = vtanh.pop %v2193
    %v2200 = vtanh.pop %v2195
    %v2201 = vpack.c.bf16 %v2199, %v2199
    %v2202 = vpack.c.bf16 %v2200, %v2200
    %s2203 = scalar_lea.vmem [#allocation3], 40
    %v2204 = vld [vmem:[%s2203] sm:$0xff]
    %v2205 = vunpack.c.l.bf16 %v2204
    %v2206 = vunpack.c.h.bf16 %v2204
    %2207 = vmatprep.subr.bf16.mxu0 %v256
    %2208 = vmatpush1.bf16.msra.mxu0 %v255
    %2209 = vmatprep.subr.bf16.mxu0 %v258
    %2210 = vmatpush1.bf16.msra.mxu0 %v257
    %2211 = vmatprep.subr.bf16.mxu0 %v260
    %2212 = vmatpush1.bf16.msra.mxu0 %v259
    %2213 = vmatprep.subr.bf16.mxu0 %v262
    %2214 = vmatpush1.bf16.msra.mxu0 %v261
    %2215 = vmatprep.subr.bf16.mxu0 %v264
    %2216 = vmatpush1.bf16.msra.mxu0 %v263
    %2217 = vmatprep.subr.bf16.mxu0 %v266
    %2218 = vmatpush1.bf16.msra.mxu0 %v265
    %2219 = vmatprep.subr.bf16.mxu0 %v268
    %2220 = vmatpush1.bf16.msra.mxu0 %v267
    %2221 = vmatprep.subr.bf16.mxu0 %v270
    %2222 = vmatpush1.bf16.msra.mxu0 %v269
    %2223 = vmatprep.subr.bf16.mxu0 %v272
    %2224 = vmatpush1.bf16.msra.mxu0 %v271
    %2225 = vmatprep.subr.bf16.mxu0 %v274
    %2226 = vmatpush1.bf16.msra.mxu0 %v273
    %2227 = vmatprep.subr.bf16.mxu0 %v276
    %2228 = vmatpush1.bf16.msra.mxu0 %v275
    %2229 = vmatprep.subr.bf16.mxu0 %v278
    %2230 = vmatpush1.bf16.msra.mxu0 %v277
    %2231 = vmatprep.subr.bf16.mxu0 %v280
    %2232 = vmatpush1.bf16.msra.mxu0 %v279
    %2233 = vmatprep.subr.bf16.mxu0 %v282
    %2234 = vmatpush1.bf16.msra.mxu0 %v281
    %2235 = vmatprep.subr.bf16.mxu0 %v284
    %2236 = vmatpush1.bf16.msra.mxu0 %v283
    %2237 = vmatprep.subr.bf16.mxu0 %v286
    %2238 = vmatpush1.bf16.msra.mxu0 %v285
    %2239 = vmatprep.mubr.bf16.mxu0 %v2030
    %2240 = vmatmul.mubr.bf16.gmra.mrb[0].mxu0 %v2029
    %v2241 = vpop.f32.mrb[0].mxu0
    %v2242 = vadd.f32 %v2205, %v2241
    %v2243 = vpop.f32.mrb[0].mxu0
    %v2244 = vadd.f32 %v2206, %v2243
    %v2245 = vpop.f32.mrb[0].mxu0
    %v2246 = vpop.f32.mrb[0].mxu0
    %2247 = vdwg.mxu0
    %v2248 = vtanh.pop %v2242
    %v2249 = vtanh.pop %v2244
    %v2250 = vpack.c.bf16 %v2248, %v2248
    %v2251 = vpack.c.bf16 %v2249, %v2249
    %2252 = vmatprep.subr.bf16.mxu0 %v628
    %2253 = vmatpush1.bf16.msra.mxu0 %v627
    %2254 = vmatprep.subr.bf16.mxu0 %v630
    %2255 = vmatpush1.bf16.msra.mxu0 %v629
    %2256 = vmatprep.subr.bf16.mxu0 %v632
    %2257 = vmatpush1.bf16.msra.mxu0 %v631
    %2258 = vmatprep.subr.bf16.mxu0 %v634
    %2259 = vmatpush1.bf16.msra.mxu0 %v633
    %2260 = vmatprep.subr.bf16.mxu0 %v636
    %2261 = vmatpush1.bf16.msra.mxu0 %v635
    %2262 = vmatprep.subr.bf16.mxu0 %v638
    %2263 = vmatpush1.bf16.msra.mxu0 %v637
    %2264 = vmatprep.subr.bf16.mxu0 %v640
    %2265 = vmatpush1.bf16.msra.mxu0 %v639
    %2266 = vmatprep.subr.bf16.mxu0 %v642
    %2267 = vmatpush1.bf16.msra.mxu0 %v641
    %2268 = vmatprep.subr.bf16.mxu0 %v644
    %2269 = vmatpush1.bf16.msra.mxu0 %v643
    %2270 = vmatprep.subr.bf16.mxu0 %v646
    %2271 = vmatpush1.bf16.msra.mxu0 %v645
    %2272 = vmatprep.subr.bf16.mxu0 %v648
    %2273 = vmatpush1.bf16.msra.mxu0 %v647
    %2274 = vmatprep.subr.bf16.mxu0 %v650
    %2275 = vmatpush1.bf16.msra.mxu0 %v649
    %2276 = vmatprep.subr.bf16.mxu0 %v652
    %2277 = vmatpush1.bf16.msra.mxu0 %v651
    %2278 = vmatprep.subr.bf16.mxu0 %v654
    %2279 = vmatpush1.bf16.msra.mxu0 %v653
    %2280 = vmatprep.subr.bf16.mxu0 %v656
    %2281 = vmatpush1.bf16.msra.mxu0 %v655
    %2282 = vmatprep.subr.bf16.mxu0 %v658
    %2283 = vmatpush1.bf16.msra.mxu0 %v657
    %2284 = vmatprep.mubr.bf16.mxu0 %v2251
    %2285 = vmatmul.mubr.bf16.gmra.mrb[0].mxu0 %v2250
    %v2286 = vpop.f32.mrb[0].mxu0
    %v2287 = vadd.f32 %v92, %v2286
    %v2288 = vpop.f32.mrb[0].mxu0
    %v2289 = vadd.f32 %v96, %v2288
    %v2290 = vpop.f32.mrb[0].mxu0
    %v2291 = vpop.f32.mrb[0].mxu0
    %2292 = vdwg.mxu0
    %2293 = vmatprep.subr.bf16.mxu0 %v660
    %2294 = vmatpush1.bf16.msra.mxu0 %v659
    %2295 = vmatprep.subr.bf16.mxu0 %v662
    %2296 = vmatpush1.bf16.msra.mxu0 %v661
    %2297 = vmatprep.subr.bf16.mxu0 %v664
    %2298 = vmatpush1.bf16.msra.mxu0 %v663
    %2299 = vmatprep.subr.bf16.mxu0 %v666
    %2300 = vmatpush1.bf16.msra.mxu0 %v665
    %2301 = vmatprep.subr.bf16.mxu0 %v668
    %2302 = vmatpush1.bf16.msra.mxu0 %v667
    %2303 = vmatprep.subr.bf16.mxu0 %v670
    %2304 = vmatpush1.bf16.msra.mxu0 %v669
    %2305 = vmatprep.subr.bf16.mxu0 %v672
    %2306 = vmatpush1.bf16.msra.mxu0 %v671
    %2307 = vmatprep.subr.bf16.mxu0 %v674
    %2308 = vmatpush1.bf16.msra.mxu0 %v673
    %2309 = vmatprep.subr.bf16.mxu0 %v676
    %2310 = vmatpush1.bf16.msra.mxu0 %v675
    %2311 = vmatprep.subr.bf16.mxu0 %v678
    %2312 = vmatpush1.bf16.msra.mxu0 %v677
    %2313 = vmatprep.subr.bf16.mxu0 %v680
    %2314 = vmatpush1.bf16.msra.mxu0 %v679
    %2315 = vmatprep.subr.bf16.mxu0 %v682
    %2316 = vmatpush1.bf16.msra.mxu0 %v681
    %2317 = vmatprep.subr.bf16.mxu0 %v684
    %2318 = vmatpush1.bf16.msra.mxu0 %v683
    %2319 = vmatprep.subr.bf16.mxu0 %v686
    %2320 = vmatpush1.bf16.msra.mxu0 %v685
    %2321 = vmatprep.subr.bf16.mxu0 %v688
    %2322 = vmatpush1.bf16.msra.mxu0 %v687
    %2323 = vmatprep.subr.bf16.mxu0 %v690
    %2324 = vmatpush1.bf16.msra.mxu0 %v689
    %2325 = vmatprep.mubr.bf16.mxu0 %v2116
    %2326 = vmatmul.mubr.bf16.gmra.mrb[0].mxu0 %v2115
    %v2327 = vpop.f32.mrb[0].mxu0
    %v2328 = vadd.f32 %v2287, %v2327
    %v2329 = vpop.f32.mrb[0].mxu0
    %v2330 = vadd.f32 %v2289, %v2329
    %v2331 = vpop.f32.mrb[0].mxu0
    %v2332 = vpop.f32.mrb[0].mxu0
    %2333 = vdwg.mxu0
    %v2334 = vtanh.pop %v2328
    %v2335 = vtanh.pop %v2330
    %v2336 = vpack.c.bf16 %v2334, %v2334
    %v2337 = vpack.c.bf16 %v2335, %v2335
    %2338 = vmatprep.subr.bf16.mxu0 %v1106
    %2339 = vmatpush1.bf16.msra.mxu0 %v1105
    %2340 = vmatprep.subr.bf16.mxu0 %v1108
    %2341 = vmatpush1.bf16.msra.mxu0 %v1107
    %2342 = vmatprep.subr.bf16.mxu0 %v1110
    %2343 = vmatpush1.bf16.msra.mxu0 %v1109
    %2344 = vmatprep.subr.bf16.mxu0 %v1112
    %2345 = vmatpush1.bf16.msra.mxu0 %v1111
    %2346 = vmatprep.subr.bf16.mxu0 %v1114
    %2347 = vmatpush1.bf16.msra.mxu0 %v1113
    %2348 = vmatprep.subr.bf16.mxu0 %v1116
    %2349 = vmatpush1.bf16.msra.mxu0 %v1115
    %2350 = vmatprep.subr.bf16.mxu0 %v1118
    %2351 = vmatpush1.bf16.msra.mxu0 %v1117
    %2352 = vmatprep.subr.bf16.mxu0 %v1120
    %2353 = vmatpush1.bf16.msra.mxu0 %v1119
    %2354 = vmatprep.subr.bf16.mxu0 %v1122
    %2355 = vmatpush1.bf16.msra.mxu0 %v1121
    %2356 = vmatprep.subr.bf16.mxu0 %v1124
    %2357 = vmatpush1.bf16.msra.mxu0 %v1123
    %2358 = vmatprep.subr.bf16.mxu0 %v1126
    %2359 = vmatpush1.bf16.msra.mxu0 %v1125
    %2360 = vmatprep.subr.bf16.mxu0 %v1128
    %2361 = vmatpush1.bf16.msra.mxu0 %v1127
    %2362 = vmatprep.subr.bf16.mxu0 %v1130
    %2363 = vmatpush1.bf16.msra.mxu0 %v1129
    %2364 = vmatprep.subr.bf16.mxu0 %v1132
    %2365 = vmatpush1.bf16.msra.mxu0 %v1131
    %2366 = vmatprep.subr.bf16.mxu0 %v1134
    %2367 = vmatpush1.bf16.msra.mxu0 %v1133
    %2368 = vmatprep.subr.bf16.mxu0 %v1136
    %2369 = vmatpush1.bf16.msra.mxu0 %v1135
    %2370 = vmatprep.mubr.bf16.mxu0 %v2337
    %2371 = vmatmul.mubr.bf16.gmra.mrb[0].mxu0 %v2336
    %v2372 = vpop.f32.mrb[0].mxu0
    %v2373 = vadd.f32 %v105, %v2372
    %v2374 = vpop.f32.mrb[0].mxu0
    %v2375 = vadd.f32 %v109, %v2374
    %v2376 = vpop.f32.mrb[0].mxu0
    %v2377 = vpop.f32.mrb[0].mxu0
    %2378 = vdwg.mxu0
    %2379 = vmatprep.subr.bf16.mxu0 %v1138
    %2380 = vmatpush1.bf16.msra.mxu0 %v1137
    %2381 = vmatprep.subr.bf16.mxu0 %v1140
    %2382 = vmatpush1.bf16.msra.mxu0 %v1139
    %2383 = vmatprep.subr.bf16.mxu0 %v1142
    %2384 = vmatpush1.bf16.msra.mxu0 %v1141
    %2385 = vmatprep.subr.bf16.mxu0 %v1144
    %2386 = vmatpush1.bf16.msra.mxu0 %v1143
    %2387 = vmatprep.subr.bf16.mxu0 %v1146
    %2388 = vmatpush1.bf16.msra.mxu0 %v1145
    %2389 = vmatprep.subr.bf16.mxu0 %v1148
    %2390 = vmatpush1.bf16.msra.mxu0 %v1147
    %2391 = vmatprep.subr.bf16.mxu0 %v1150
    %2392 = vmatpush1.bf16.msra.mxu0 %v1149
    %2393 = vmatprep.subr.bf16.mxu0 %v1152
    %2394 = vmatpush1.bf16.msra.mxu0 %v1151
    %2395 = vmatprep.subr.bf16.mxu0 %v1154
    %2396 = vmatpush1.bf16.msra.mxu0 %v1153
    %2397 = vmatprep.subr.bf16.mxu0 %v1156
    %2398 = vmatpush1.bf16.msra.mxu0 %v1155
    %2399 = vmatprep.subr.bf16.mxu0 %v1158
    %2400 = vmatpush1.bf16.msra.mxu0 %v1157
    %2401 = vmatprep.subr.bf16.mxu0 %v1160
    %2402 = vmatpush1.bf16.msra.mxu0 %v1159
    %2403 = vmatprep.subr.bf16.mxu0 %v1162
    %2404 = vmatpush1.bf16.msra.mxu0 %v1161
    %2405 = vmatprep.subr.bf16.mxu0 %v1164
    %2406 = vmatpush1.bf16.msra.mxu0 %v1163
    %2407 = vmatprep.subr.bf16.mxu0 %v1166
    %2408 = vmatpush1.bf16.msra.mxu0 %v1165
    %2409 = vmatprep.subr.bf16.mxu0 %v1168
    %2410 = vmatpush1.bf16.msra.mxu0 %v1167
    %2411 = vmatprep.mubr.bf16.mxu0 %v2202
    %2412 = vmatmul.mubr.bf16.gmra.mrb[0].mxu0 %v2201
    %v2413 = vpop.f32.mrb[0].mxu0
    %v2414 = vadd.f32 %v2373, %v2413
    %v2415 = vpop.f32.mrb[0].mxu0
    %v2416 = vadd.f32 %v2375, %v2415
    %v2417 = vpop.f32.mrb[0].mxu0
    %v2418 = vpop.f32.mrb[0].mxu0
    %2419 = vdwg.mxu0
    %v2420 = vtanh.pop %v2414
    %v2421 = vtanh.pop %v2416
    %v2422 = vpack.c.bf16 %v2420, %v2420
    %v2423 = vpack.c.bf16 %v2421, %v2421
    %s2424 = scalar_lea.vmem [#allocation3], 48
    %v2425 = vld [vmem:[%s2424] sm:$0xff]
    %v2426 = vunpack.c.l.bf16 %v2425
    %v2427 = vunpack.c.h.bf16 %v2425
    %2428 = vmatprep.subr.bf16.mxu0 %v256
    %2429 = vmatpush1.bf16.msra.mxu0 %v255
    %2430 = vmatprep.subr.bf16.mxu0 %v258
    %2431 = vmatpush1.bf16.msra.mxu0 %v257
    %2432 = vmatprep.subr.bf16.mxu0 %v260
    %2433 = vmatpush1.bf16.msra.mxu0 %v259
    %2434 = vmatprep.subr.bf16.mxu0 %v262
    %2435 = vmatpush1.bf16.msra.mxu0 %v261
    %2436 = vmatprep.subr.bf16.mxu0 %v264
    %2437 = vmatpush1.bf16.msra.mxu0 %v263
    %2438 = vmatprep.subr.bf16.mxu0 %v266
    %2439 = vmatpush1.bf16.msra.mxu0 %v265
    %2440 = vmatprep.subr.bf16.mxu0 %v268
    %2441 = vmatpush1.bf16.msra.mxu0 %v267
    %2442 = vmatprep.subr.bf16.mxu0 %v270
    %2443 = vmatpush1.bf16.msra.mxu0 %v269
    %2444 = vmatprep.subr.bf16.mxu0 %v272
    %2445 = vmatpush1.bf16.msra.mxu0 %v271
    %2446 = vmatprep.subr.bf16.mxu0 %v274
    %2447 = vmatpush1.bf16.msra.mxu0 %v273
    %2448 = vmatprep.subr.bf16.mxu0 %v276
    %2449 = vmatpush1.bf16.msra.mxu0 %v275
    %2450 = vmatprep.subr.bf16.mxu0 %v278
    %2451 = vmatpush1.bf16.msra.mxu0 %v277
    %2452 = vmatprep.subr.bf16.mxu0 %v280
    %2453 = vmatpush1.bf16.msra.mxu0 %v279
    %2454 = vmatprep.subr.bf16.mxu0 %v282
    %2455 = vmatpush1.bf16.msra.mxu0 %v281
    %2456 = vmatprep.subr.bf16.mxu0 %v284
    %2457 = vmatpush1.bf16.msra.mxu0 %v283
    %2458 = vmatprep.subr.bf16.mxu0 %v286
    %2459 = vmatpush1.bf16.msra.mxu0 %v285
    %2460 = vmatprep.mubr.bf16.mxu0 %v2251
    %2461 = vmatmul.mubr.bf16.gmra.mrb[0].mxu0 %v2250
    %v2462 = vpop.f32.mrb[0].mxu0
    %v2463 = vadd.f32 %v2426, %v2462
    %v2464 = vpop.f32.mrb[0].mxu0
    %v2465 = vadd.f32 %v2427, %v2464
    %v2466 = vpop.f32.mrb[0].mxu0
    %v2467 = vpop.f32.mrb[0].mxu0
    %2468 = vdwg.mxu0
    %v2469 = vtanh.pop %v2463
    %v2470 = vtanh.pop %v2465
    %v2471 = vpack.c.bf16 %v2469, %v2469
    %v2472 = vpack.c.bf16 %v2470, %v2470
    %2473 = vmatprep.subr.bf16.mxu0 %v628
    %2474 = vmatpush1.bf16.msra.mxu0 %v627
    %2475 = vmatprep.subr.bf16.mxu0 %v630
    %2476 = vmatpush1.bf16.msra.mxu0 %v629
    %2477 = vmatprep.subr.bf16.mxu0 %v632
    %2478 = vmatpush1.bf16.msra.mxu0 %v631
    %2479 = vmatprep.subr.bf16.mxu0 %v634
    %2480 = vmatpush1.bf16.msra.mxu0 %v633
    %2481 = vmatprep.subr.bf16.mxu0 %v636
    %2482 = vmatpush1.bf16.msra.mxu0 %v635
    %2483 = vmatprep.subr.bf16.mxu0 %v638
    %2484 = vmatpush1.bf16.msra.mxu0 %v637
    %2485 = vmatprep.subr.bf16.mxu0 %v640
    %2486 = vmatpush1.bf16.msra.mxu0 %v639
    %2487 = vmatprep.subr.bf16.mxu0 %v642
    %2488 = vmatpush1.bf16.msra.mxu0 %v641
    %2489 = vmatprep.subr.bf16.mxu0 %v644
    %2490 = vmatpush1.bf16.msra.mxu0 %v643
    %2491 = vmatprep.subr.bf16.mxu0 %v646
    %2492 = vmatpush1.bf16.msra.mxu0 %v645
    %2493 = vmatprep.subr.bf16.mxu0 %v648
    %2494 = vmatpush1.bf16.msra.mxu0 %v647
    %2495 = vmatprep.subr.bf16.mxu0 %v650
    %2496 = vmatpush1.bf16.msra.mxu0 %v649
    %2497 = vmatprep.subr.bf16.mxu0 %v652
    %2498 = vmatpush1.bf16.msra.mxu0 %v651
    %2499 = vmatprep.subr.bf16.mxu0 %v654
    %2500 = vmatpush1.bf16.msra.mxu0 %v653
    %2501 = vmatprep.subr.bf16.mxu0 %v656
    %2502 = vmatpush1.bf16.msra.mxu0 %v655
    %2503 = vmatprep.subr.bf16.mxu0 %v658
    %2504 = vmatpush1.bf16.msra.mxu0 %v657
    %2505 = vmatprep.mubr.bf16.mxu0 %v2472
    %2506 = vmatmul.mubr.bf16.gmra.mrb[0].mxu0 %v2471
    %v2507 = vpop.f32.mrb[0].mxu0
    %v2508 = vadd.f32 %v92, %v2507
    %v2509 = vpop.f32.mrb[0].mxu0
    %v2510 = vadd.f32 %v96, %v2509
    %v2511 = vpop.f32.mrb[0].mxu0
    %v2512 = vpop.f32.mrb[0].mxu0
    %2513 = vdwg.mxu0
    %2514 = vmatprep.subr.bf16.mxu0 %v660
    %2515 = vmatpush1.bf16.msra.mxu0 %v659
    %2516 = vmatprep.subr.bf16.mxu0 %v662
    %2517 = vmatpush1.bf16.msra.mxu0 %v661
    %2518 = vmatprep.subr.bf16.mxu0 %v664
    %2519 = vmatpush1.bf16.msra.mxu0 %v663
    %2520 = vmatprep.subr.bf16.mxu0 %v666
    %2521 = vmatpush1.bf16.msra.mxu0 %v665
    %2522 = vmatprep.subr.bf16.mxu0 %v668
    %2523 = vmatpush1.bf16.msra.mxu0 %v667
    %2524 = vmatprep.subr.bf16.mxu0 %v670
    %2525 = vmatpush1.bf16.msra.mxu0 %v669
    %2526 = vmatprep.subr.bf16.mxu0 %v672
    %2527 = vmatpush1.bf16.msra.mxu0 %v671
    %2528 = vmatprep.subr.bf16.mxu0 %v674
    %2529 = vmatpush1.bf16.msra.mxu0 %v673
    %2530 = vmatprep.subr.bf16.mxu0 %v676
    %2531 = vmatpush1.bf16.msra.mxu0 %v675
    %2532 = vmatprep.subr.bf16.mxu0 %v678
    %2533 = vmatpush1.bf16.msra.mxu0 %v677
    %2534 = vmatprep.subr.bf16.mxu0 %v680
    %2535 = vmatpush1.bf16.msra.mxu0 %v679
    %2536 = vmatprep.subr.bf16.mxu0 %v682
    %2537 = vmatpush1.bf16.msra.mxu0 %v681
    %2538 = vmatprep.subr.bf16.mxu0 %v684
    %2539 = vmatpush1.bf16.msra.mxu0 %v683
    %2540 = vmatprep.subr.bf16.mxu0 %v686
    %2541 = vmatpush1.bf16.msra.mxu0 %v685
    %2542 = vmatprep.subr.bf16.mxu0 %v688
    %2543 = vmatpush1.bf16.msra.mxu0 %v687
    %2544 = vmatprep.subr.bf16.mxu0 %v690
    %2545 = vmatpush1.bf16.msra.mxu0 %v689
    %2546 = vmatprep.mubr.bf16.mxu0 %v2337
    %2547 = vmatmul.mubr.bf16.gmra.mrb[0].mxu0 %v2336
    %v2548 = vpop.f32.mrb[0].mxu0
    %v2549 = vadd.f32 %v2508, %v2548
    %v2550 = vpop.f32.mrb[0].mxu0
    %v2551 = vadd.f32 %v2510, %v2550
    %v2552 = vpop.f32.mrb[0].mxu0
    %v2553 = vpop.f32.mrb[0].mxu0
    %2554 = vdwg.mxu0
    %v2555 = vtanh.pop %v2549
    %v2556 = vtanh.pop %v2551
    %v2557 = vpack.c.bf16 %v2555, %v2555
    %v2558 = vpack.c.bf16 %v2556, %v2556
    %2559 = vmatprep.subr.bf16.mxu0 %v1106
    %2560 = vmatpush1.bf16.msra.mxu0 %v1105
    %2561 = vmatprep.subr.bf16.mxu0 %v1108
    %2562 = vmatpush1.bf16.msra.mxu0 %v1107
    %2563 = vmatprep.subr.bf16.mxu0 %v1110
    %2564 = vmatpush1.bf16.msra.mxu0 %v1109
    %2565 = vmatprep.subr.bf16.mxu0 %v1112
    %2566 = vmatpush1.bf16.msra.mxu0 %v1111
    %2567 = vmatprep.subr.bf16.mxu0 %v1114
    %2568 = vmatpush1.bf16.msra.mxu0 %v1113
    %2569 = vmatprep.subr.bf16.mxu0 %v1116
    %2570 = vmatpush1.bf16.msra.mxu0 %v1115
    %2571 = vmatprep.subr.bf16.mxu0 %v1118
    %2572 = vmatpush1.bf16.msra.mxu0 %v1117
    %2573 = vmatprep.subr.bf16.mxu0 %v1120
    %2574 = vmatpush1.bf16.msra.mxu0 %v1119
    %2575 = vmatprep.subr.bf16.mxu0 %v1122
    %2576 = vmatpush1.bf16.msra.mxu0 %v1121
    %2577 = vmatprep.subr.bf16.mxu0 %v1124
    %2578 = vmatpush1.bf16.msra.mxu0 %v1123
    %2579 = vmatprep.subr.bf16.mxu0 %v1126
    %2580 = vmatpush1.bf16.msra.mxu0 %v1125
    %2581 = vmatprep.subr.bf16.mxu0 %v1128
    %2582 = vmatpush1.bf16.msra.mxu0 %v1127
    %2583 = vmatprep.subr.bf16.mxu0 %v1130
    %2584 = vmatpush1.bf16.msra.mxu0 %v1129
    %2585 = vmatprep.subr.bf16.mxu0 %v1132
    %2586 = vmatpush1.bf16.msra.mxu0 %v1131
    %2587 = vmatprep.subr.bf16.mxu0 %v1134
    %2588 = vmatpush1.bf16.msra.mxu0 %v1133
    %2589 = vmatprep.subr.bf16.mxu0 %v1136
    %2590 = vmatpush1.bf16.msra.mxu0 %v1135
    %2591 = vmatprep.mubr.bf16.mxu0 %v2558
    %2592 = vmatmul.mubr.bf16.gmra.mrb[0].mxu0 %v2557
    %v2593 = vpop.f32.mrb[0].mxu0
    %v2594 = vadd.f32 %v105, %v2593
    %v2595 = vpop.f32.mrb[0].mxu0
    %v2596 = vadd.f32 %v109, %v2595
    %v2597 = vpop.f32.mrb[0].mxu0
    %v2598 = vpop.f32.mrb[0].mxu0
    %2599 = vdwg.mxu0
    %2600 = vmatprep.subr.bf16.mxu0 %v1138
    %2601 = vmatpush1.bf16.msra.mxu0 %v1137
    %2602 = vmatprep.subr.bf16.mxu0 %v1140
    %2603 = vmatpush1.bf16.msra.mxu0 %v1139
    %2604 = vmatprep.subr.bf16.mxu0 %v1142
    %2605 = vmatpush1.bf16.msra.mxu0 %v1141
    %2606 = vmatprep.subr.bf16.mxu0 %v1144
    %2607 = vmatpush1.bf16.msra.mxu0 %v1143
    %2608 = vmatprep.subr.bf16.mxu0 %v1146
    %2609 = vmatpush1.bf16.msra.mxu0 %v1145
    %2610 = vmatprep.subr.bf16.mxu0 %v1148
    %2611 = vmatpush1.bf16.msra.mxu0 %v1147
    %2612 = vmatprep.subr.bf16.mxu0 %v1150
    %2613 = vmatpush1.bf16.msra.mxu0 %v1149
    %2614 = vmatprep.subr.bf16.mxu0 %v1152
    %2615 = vmatpush1.bf16.msra.mxu0 %v1151
    %2616 = vmatprep.subr.bf16.mxu0 %v1154
    %2617 = vmatpush1.bf16.msra.mxu0 %v1153
    %2618 = vmatprep.subr.bf16.mxu0 %v1156
    %2619 = vmatpush1.bf16.msra.mxu0 %v1155
    %2620 = vmatprep.subr.bf16.mxu0 %v1158
    %2621 = vmatpush1.bf16.msra.mxu0 %v1157
    %2622 = vmatprep.subr.bf16.mxu0 %v1160
    %2623 = vmatpush1.bf16.msra.mxu0 %v1159
    %2624 = vmatprep.subr.bf16.mxu0 %v1162
    %2625 = vmatpush1.bf16.msra.mxu0 %v1161
    %2626 = vmatprep.subr.bf16.mxu0 %v1164
    %2627 = vmatpush1.bf16.msra.mxu0 %v1163
    %2628 = vmatprep.subr.bf16.mxu0 %v1166
    %2629 = vmatpush1.bf16.msra.mxu0 %v1165
    %2630 = vmatprep.subr.bf16.mxu0 %v1168
    %2631 = vmatpush1.bf16.msra.mxu0 %v1167
    %2632 = vmatprep.mubr.bf16.mxu0 %v2423
    %2633 = vmatmul.mubr.bf16.gmra.mrb[0].mxu0 %v2422
    %v2634 = vpop.f32.mrb[0].mxu0
    %v2635 = vadd.f32 %v2594, %v2634
    %v2636 = vpop.f32.mrb[0].mxu0
    %v2637 = vadd.f32 %v2596, %v2636
    %v2638 = vpop.f32.mrb[0].mxu0
    %v2639 = vpop.f32.mrb[0].mxu0
    %2640 = vdwg.mxu0
    %v2641 = vtanh.pop %v2635
    %v2642 = vtanh.pop %v2637
    %v2643 = vpack.c.bf16 %v2641, %v2641
    %v2644 = vpack.c.bf16 %v2642, %v2642
    %s2645 = scalar_lea.vmem [#allocation3], 56
    %v2646 = vld [vmem:[%s2645] sm:$0xff]
    %v2647 = vunpack.c.l.bf16 %v2646
    %v2648 = vunpack.c.h.bf16 %v2646
    %2649 = vmatprep.subr.bf16.mxu0 %v256
    %2650 = vmatpush1.bf16.msra.mxu0 %v255
    %2651 = vmatprep.subr.bf16.mxu0 %v258
    %2652 = vmatpush1.bf16.msra.mxu0 %v257
    %2653 = vmatprep.subr.bf16.mxu0 %v260
    %2654 = vmatpush1.bf16.msra.mxu0 %v259
    %2655 = vmatprep.subr.bf16.mxu0 %v262
    %2656 = vmatpush1.bf16.msra.mxu0 %v261
    %2657 = vmatprep.subr.bf16.mxu0 %v264
    %2658 = vmatpush1.bf16.msra.mxu0 %v263
    %2659 = vmatprep.subr.bf16.mxu0 %v266
    %2660 = vmatpush1.bf16.msra.mxu0 %v265
    %2661 = vmatprep.subr.bf16.mxu0 %v268
    %2662 = vmatpush1.bf16.msra.mxu0 %v267
    %2663 = vmatprep.subr.bf16.mxu0 %v270
    %2664 = vmatpush1.bf16.msra.mxu0 %v269
    %2665 = vmatprep.subr.bf16.mxu0 %v272
    %2666 = vmatpush1.bf16.msra.mxu0 %v271
    %2667 = vmatprep.subr.bf16.mxu0 %v274
    %2668 = vmatpush1.bf16.msra.mxu0 %v273
    %2669 = vmatprep.subr.bf16.mxu0 %v276
    %2670 = vmatpush1.bf16.msra.mxu0 %v275
    %2671 = vmatprep.subr.bf16.mxu0 %v278
    %2672 = vmatpush1.bf16.msra.mxu0 %v277
    %2673 = vmatprep.subr.bf16.mxu0 %v280
    %2674 = vmatpush1.bf16.msra.mxu0 %v279
    %2675 = vmatprep.subr.bf16.mxu0 %v282
    %2676 = vmatpush1.bf16.msra.mxu0 %v281
    %2677 = vmatprep.subr.bf16.mxu0 %v284
    %2678 = vmatpush1.bf16.msra.mxu0 %v283
    %2679 = vmatprep.subr.bf16.mxu0 %v286
    %2680 = vmatpush1.bf16.msra.mxu0 %v285
    %2681 = vmatprep.mubr.bf16.mxu0 %v2472
    %2682 = vmatmul.mubr.bf16.gmra.mrb[0].mxu0 %v2471
    %v2683 = vpop.f32.mrb[0].mxu0
    %v2684 = vadd.f32 %v2647, %v2683
    %v2685 = vpop.f32.mrb[0].mxu0
    %v2686 = vadd.f32 %v2648, %v2685
    %v2687 = vpop.f32.mrb[0].mxu0
    %v2688 = vpop.f32.mrb[0].mxu0
    %2689 = vdwg.mxu0
    %v2690 = vtanh.pop %v2684
    %v2691 = vtanh.pop %v2686
    %v2692 = vpack.c.bf16 %v2690, %v2690
    %v2693 = vpack.c.bf16 %v2691, %v2691
    %2694 = vmatprep.subr.bf16.mxu0 %v628
    %2695 = vmatpush1.bf16.msra.mxu0 %v627
    %2696 = vmatprep.subr.bf16.mxu0 %v630
    %2697 = vmatpush1.bf16.msra.mxu0 %v629
    %2698 = vmatprep.subr.bf16.mxu0 %v632
    %2699 = vmatpush1.bf16.msra.mxu0 %v631
    %2700 = vmatprep.subr.bf16.mxu0 %v634
    %2701 = vmatpush1.bf16.msra.mxu0 %v633
    %2702 = vmatprep.subr.bf16.mxu0 %v636
    %2703 = vmatpush1.bf16.msra.mxu0 %v635
    %2704 = vmatprep.subr.bf16.mxu0 %v638
    %2705 = vmatpush1.bf16.msra.mxu0 %v637
    %2706 = vmatprep.subr.bf16.mxu0 %v640
    %2707 = vmatpush1.bf16.msra.mxu0 %v639
    %2708 = vmatprep.subr.bf16.mxu0 %v642
    %2709 = vmatpush1.bf16.msra.mxu0 %v641
    %2710 = vmatprep.subr.bf16.mxu0 %v644
    %2711 = vmatpush1.bf16.msra.mxu0 %v643
    %2712 = vmatprep.subr.bf16.mxu0 %v646
    %2713 = vmatpush1.bf16.msra.mxu0 %v645
    %2714 = vmatprep.subr.bf16.mxu0 %v648
    %2715 = vmatpush1.bf16.msra.mxu0 %v647
    %2716 = vmatprep.subr.bf16.mxu0 %v650
    %2717 = vmatpush1.bf16.msra.mxu0 %v649
    %2718 = vmatprep.subr.bf16.mxu0 %v652
    %2719 = vmatpush1.bf16.msra.mxu0 %v651
    %2720 = vmatprep.subr.bf16.mxu0 %v654
    %2721 = vmatpush1.bf16.msra.mxu0 %v653
    %2722 = vmatprep.subr.bf16.mxu0 %v656
    %2723 = vmatpush1.bf16.msra.mxu0 %v655
    %2724 = vmatprep.subr.bf16.mxu0 %v658
    %2725 = vmatpush1.bf16.msra.mxu0 %v657
    %2726 = vmatprep.mubr.bf16.mxu0 %v2693
    %2727 = vmatmul.mubr.bf16.gmra.mrb[0].mxu0 %v2692
    %v2728 = vpop.f32.mrb[0].mxu0
    %v2729 = vadd.f32 %v92, %v2728
    %v2730 = vpop.f32.mrb[0].mxu0
    %v2731 = vadd.f32 %v96, %v2730
    %v2732 = vpop.f32.mrb[0].mxu0
    %v2733 = vpop.f32.mrb[0].mxu0
    %2734 = vdwg.mxu0
    %2735 = vmatprep.subr.bf16.mxu0 %v660
    %2736 = vmatpush1.bf16.msra.mxu0 %v659
    %2737 = vmatprep.subr.bf16.mxu0 %v662
    %2738 = vmatpush1.bf16.msra.mxu0 %v661
    %2739 = vmatprep.subr.bf16.mxu0 %v664
    %2740 = vmatpush1.bf16.msra.mxu0 %v663
    %2741 = vmatprep.subr.bf16.mxu0 %v666
    %2742 = vmatpush1.bf16.msra.mxu0 %v665
    %2743 = vmatprep.subr.bf16.mxu0 %v668
    %2744 = vmatpush1.bf16.msra.mxu0 %v667
    %2745 = vmatprep.subr.bf16.mxu0 %v670
    %2746 = vmatpush1.bf16.msra.mxu0 %v669
    %2747 = vmatprep.subr.bf16.mxu0 %v672
    %2748 = vmatpush1.bf16.msra.mxu0 %v671
    %2749 = vmatprep.subr.bf16.mxu0 %v674
    %2750 = vmatpush1.bf16.msra.mxu0 %v673
    %2751 = vmatprep.subr.bf16.mxu0 %v676
    %2752 = vmatpush1.bf16.msra.mxu0 %v675
    %2753 = vmatprep.subr.bf16.mxu0 %v678
    %2754 = vmatpush1.bf16.msra.mxu0 %v677
    %2755 = vmatprep.subr.bf16.mxu0 %v680
    %2756 = vmatpush1.bf16.msra.mxu0 %v679
    %2757 = vmatprep.subr.bf16.mxu0 %v682
    %2758 = vmatpush1.bf16.msra.mxu0 %v681
    %2759 = vmatprep.subr.bf16.mxu0 %v684
    %2760 = vmatpush1.bf16.msra.mxu0 %v683
    %2761 = vmatprep.subr.bf16.mxu0 %v686
    %2762 = vmatpush1.bf16.msra.mxu0 %v685
    %2763 = vmatprep.subr.bf16.mxu0 %v688
    %2764 = vmatpush1.bf16.msra.mxu0 %v687
    %2765 = vmatprep.subr.bf16.mxu0 %v690
    %2766 = vmatpush1.bf16.msra.mxu0 %v689
    %2767 = vmatprep.mubr.bf16.mxu0 %v2558
    %2768 = vmatmul.mubr.bf16.gmra.mrb[0].mxu0 %v2557
    %v2769 = vpop.f32.mrb[0].mxu0
    %v2770 = vadd.f32 %v2729, %v2769
    %v2771 = vpop.f32.mrb[0].mxu0
    %v2772 = vadd.f32 %v2731, %v2771
    %v2773 = vpop.f32.mrb[0].mxu0
    %v2774 = vpop.f32.mrb[0].mxu0
    %2775 = vdwg.mxu0
    %v2776 = vtanh.pop %v2770
    %v2777 = vtanh.pop %v2772
    %v2778 = vpack.c.bf16 %v2776, %v2776
    %v2779 = vpack.c.bf16 %v2777, %v2777
    %2780 = vmatprep.subr.bf16.mxu0 %v1106
    %2781 = vmatpush1.bf16.msra.mxu0 %v1105
    %2782 = vmatprep.subr.bf16.mxu0 %v1108
    %2783 = vmatpush1.bf16.msra.mxu0 %v1107
    %2784 = vmatprep.subr.bf16.mxu0 %v1110
    %2785 = vmatpush1.bf16.msra.mxu0 %v1109
    %2786 = vmatprep.subr.bf16.mxu0 %v1112
    %2787 = vmatpush1.bf16.msra.mxu0 %v1111
    %2788 = vmatprep.subr.bf16.mxu0 %v1114
    %2789 = vmatpush1.bf16.msra.mxu0 %v1113
    %2790 = vmatprep.subr.bf16.mxu0 %v1116
    %2791 = vmatpush1.bf16.msra.mxu0 %v1115
    %2792 = vmatprep.subr.bf16.mxu0 %v1118
    %2793 = vmatpush1.bf16.msra.mxu0 %v1117
    %2794 = vmatprep.subr.bf16.mxu0 %v1120
    %2795 = vmatpush1.bf16.msra.mxu0 %v1119
    %2796 = vmatprep.subr.bf16.mxu0 %v1122
    %2797 = vmatpush1.bf16.msra.mxu0 %v1121
    %2798 = vmatprep.subr.bf16.mxu0 %v1124
    %2799 = vmatpush1.bf16.msra.mxu0 %v1123
    %2800 = vmatprep.subr.bf16.mxu0 %v1126
    %2801 = vmatpush1.bf16.msra.mxu0 %v1125
    %2802 = vmatprep.subr.bf16.mxu0 %v1128
    %2803 = vmatpush1.bf16.msra.mxu0 %v1127
    %2804 = vmatprep.subr.bf16.mxu0 %v1130
    %2805 = vmatpush1.bf16.msra.mxu0 %v1129
    %2806 = vmatprep.subr.bf16.mxu0 %v1132
    %2807 = vmatpush1.bf16.msra.mxu0 %v1131
    %2808 = vmatprep.subr.bf16.mxu0 %v1134
    %2809 = vmatpush1.bf16.msra.mxu0 %v1133
    %2810 = vmatprep.subr.bf16.mxu0 %v1136
    %2811 = vmatpush1.bf16.msra.mxu0 %v1135
    %2812 = vmatprep.mubr.bf16.mxu0 %v2779
    %2813 = vmatmul.mubr.bf16.gmra.mrb[0].mxu0 %v2778
    %v2814 = vpop.f32.mrb[0].mxu0
    %v2815 = vadd.f32 %v105, %v2814
    %v2816 = vpop.f32.mrb[0].mxu0
    %v2817 = vadd.f32 %v109, %v2816
    %v2818 = vpop.f32.mrb[0].mxu0
    %v2819 = vpop.f32.mrb[0].mxu0
    %2820 = vdwg.mxu0
    %2821 = vmatprep.subr.bf16.mxu0 %v1138
    %2822 = vmatpush1.bf16.msra.mxu0 %v1137
    %2823 = vmatprep.subr.bf16.mxu0 %v1140
    %2824 = vmatpush1.bf16.msra.mxu0 %v1139
    %2825 = vmatprep.subr.bf16.mxu0 %v1142
    %2826 = vmatpush1.bf16.msra.mxu0 %v1141
    %2827 = vmatprep.subr.bf16.mxu0 %v1144
    %2828 = vmatpush1.bf16.msra.mxu0 %v1143
    %2829 = vmatprep.subr.bf16.mxu0 %v1146
    %2830 = vmatpush1.bf16.msra.mxu0 %v1145
    %2831 = vmatprep.subr.bf16.mxu0 %v1148
    %2832 = vmatpush1.bf16.msra.mxu0 %v1147
    %2833 = vmatprep.subr.bf16.mxu0 %v1150
    %2834 = vmatpush1.bf16.msra.mxu0 %v1149
    %2835 = vmatprep.subr.bf16.mxu0 %v1152
    %2836 = vmatpush1.bf16.msra.mxu0 %v1151
    %2837 = vmatprep.subr.bf16.mxu0 %v1154
    %2838 = vmatpush1.bf16.msra.mxu0 %v1153
    %2839 = vmatprep.subr.bf16.mxu0 %v1156
    %2840 = vmatpush1.bf16.msra.mxu0 %v1155
    %2841 = vmatprep.subr.bf16.mxu0 %v1158
    %2842 = vmatpush1.bf16.msra.mxu0 %v1157
    %2843 = vmatprep.subr.bf16.mxu0 %v1160
    %2844 = vmatpush1.bf16.msra.mxu0 %v1159
    %2845 = vmatprep.subr.bf16.mxu0 %v1162
    %2846 = vmatpush1.bf16.msra.mxu0 %v1161
    %2847 = vmatprep.subr.bf16.mxu0 %v1164
    %2848 = vmatpush1.bf16.msra.mxu0 %v1163
    %2849 = vmatprep.subr.bf16.mxu0 %v1166
    %2850 = vmatpush1.bf16.msra.mxu0 %v1165
    %2851 = vmatprep.subr.bf16.mxu0 %v1168
    %2852 = vmatpush1.bf16.msra.mxu0 %v1167
    %2853 = vmatprep.mubr.bf16.mxu0 %v2644
    %2854 = vmatmul.mubr.bf16.gmra.mrb[0].mxu0 %v2643
    %v2855 = vpop.f32.mrb[0].mxu0
    %v2856 = vadd.f32 %v2815, %v2855
    %v2857 = vpop.f32.mrb[0].mxu0
    %v2858 = vadd.f32 %v2817, %v2857
    %v2859 = vpop.f32.mrb[0].mxu0
    %v2860 = vpop.f32.mrb[0].mxu0
    %2861 = vdwg.mxu0
    %v2862 = vtanh.pop %v2856
    %v2863 = vtanh.pop %v2858
    %v2864 = vpack.c.bf16 %v2862, %v2862
    %v2865 = vpack.c.bf16 %v2863, %v2863
    %v2868 = vunpack.c.l.b16 %v2692
    %v2869 = vunpack.c.l.b16 %v2693
    %v2870 = vpack.c.b16 %v2869, %v2868
    %2872 = vst [vmem:[#allocation2] sm:$0xff] %v2870
    %v2875 = vunpack.c.l.b16 %v2778
    %v2876 = vunpack.c.l.b16 %v2779
    %v2877 = vpack.c.b16 %v2876, %v2875
    %2879 = vst [vmem:[%s113] sm:$0xff] %v2877
    %v2882 = vunpack.c.l.b16 %v2864
    %v2883 = vunpack.c.l.b16 %v2865
    %v2884 = vpack.c.b16 %v2883, %v2882
    %2886 = vst [vmem:[%s115] sm:$0xff] %v2884
    // Predicated region
    $region46: #{tpu_custom_call.1} parent=1 // pred_check
      %p2887 = pneg %p80
    $region47: #{tpu_custom_call.1} parent=1 // pred_check_branch
      %2889 = sbr.rel (%p2887) target = $region49
    $region48: #{tpu_custom_call.1} parent=1 // pred_region
      %v2890 = vld [vmem:[#allocation9] sm:$0xf]
      %v2891 = vld [vmem:[#allocation9 + $0x4] sm:$0xf]
      %v2892 = vld [vmem:[#allocation9 + $0x8] sm:$0xf]
      %v2893 = vld [vmem:[#allocation9 + $0xc] sm:$0xf]
      %v2894 = vld [vmem:[#allocation9 + $0x10] sm:$0xf]
      %v2895 = vld [vmem:[#allocation9 + $0x14] sm:$0xf]
      %v2896 = vld [vmem:[#allocation9 + $0x18] sm:$0xf]
      %v2897 = vld [vmem:[#allocation9 + $0x1c] sm:$0xf]
      %v2898 = vld [vmem:[#allocation9 + $0x20] sm:$0xf]
      %v2899 = vld [vmem:[#allocation9 + $0x24] sm:$0xf]
      %v2900 = vld [vmem:[#allocation9 + $0x28] sm:$0xf]
      %v2901 = vld [vmem:[#allocation9 + $0x2c] sm:$0xf]
      %v2902 = vld [vmem:[#allocation9 + $0x30] sm:$0xf]
      %v2903 = vld [vmem:[#allocation9 + $0x34] sm:$0xf]
      %v2904 = vld [vmem:[#allocation9 + $0x38] sm:$0xf]
      %v2905 = vld [vmem:[#allocation9 + $0x3c] sm:$0xf]
      %v2906 = vld [vmem:[#allocation9 + $0x40] sm:$0xf]
      %v2907 = vld [vmem:[#allocation9 + $0x44] sm:$0xf]
      %v2908 = vld [vmem:[#allocation9 + $0x48] sm:$0xf]
      %v2909 = vld [vmem:[#allocation9 + $0x4c] sm:$0xf]
      %v2910 = vld [vmem:[#allocation9 + $0x50] sm:$0xf]
      %v2911 = vld [vmem:[#allocation9 + $0x54] sm:$0xf]
      %v2912 = vld [vmem:[#allocation9 + $0x58] sm:$0xf]
      %v2913 = vld [vmem:[#allocation9 + $0x5c] sm:$0xf]
      %v2914 = vld [vmem:[#allocation9 + $0x60] sm:$0xf]
      %v2915 = vld [vmem:[#allocation9 + $0x64] sm:$0xf]
      %v2916 = vld [vmem:[#allocation9 + $0x68] sm:$0xf]
      %v2917 = vld [vmem:[#allocation9 + $0x6c] sm:$0xf]
      %v2918 = vld [vmem:[#allocation9 + $0x70] sm:$0xf]
      %v2919 = vld [vmem:[#allocation9 + $0x74] sm:$0xf]
      %v2920 = vld [vmem:[#allocation9 + $0x78] sm:$0xf]
      %v2921 = vld [vmem:[#allocation9 + $0x7c] sm:$0xf]
      %v2922 = vld [vmem:[%s5] sm:$0x1]
      %v2924 = vlaneseq
      %v2925 = vshrl.u32 %v2924, 7
      %v2926 = vsub.s32 0, %v2925
      %v2927 = vrot.slane %v2922, %v2926
      %v2961 = vunpack.c.l.b16 %v2890
      %v2962 = vunpack.c.l.b16 %v2891
      %v2963 = vunpack.c.l.b16 %v2892
      %v2964 = vunpack.c.l.b16 %v2893
      %v2965 = vunpack.c.l.b16 %v2894
      %v2966 = vunpack.c.l.b16 %v2895
      %v2967 = vunpack.c.l.b16 %v2896
      %v2968 = vunpack.c.l.b16 %v2897
      %v2969 = vunpack.c.l.b16 %v2898
      %v2970 = vunpack.c.l.b16 %v2899
      %v2971 = vunpack.c.l.b16 %v2900
      %v2972 = vunpack.c.l.b16 %v2901
      %v2973 = vunpack.c.l.b16 %v2902
      %v2974 = vunpack.c.l.b16 %v2903
      %v2975 = vunpack.c.l.b16 %v2904
      %v2976 = vunpack.c.l.b16 %v2905
      %v2977 = vunpack.c.l.b16 %v2906
      %v2978 = vunpack.c.l.b16 %v2907
      %v2979 = vunpack.c.l.b16 %v2908
      %v2980 = vunpack.c.l.b16 %v2909
      %v2981 = vunpack.c.l.b16 %v2910
      %v2982 = vunpack.c.l.b16 %v2911
      %v2983 = vunpack.c.l.b16 %v2912
      %v2984 = vunpack.c.l.b16 %v2913
      %v2985 = vunpack.c.l.b16 %v2914
      %v2986 = vunpack.c.l.b16 %v2915
      %v2987 = vunpack.c.l.b16 %v2916
      %v2988 = vunpack.c.l.b16 %v2917
      %v2989 = vunpack.c.l.b16 %v2918
      %v2990 = vunpack.c.l.b16 %v2919
      %v2991 = vunpack.c.l.b16 %v2920
      %v2992 = vunpack.c.l.b16 %v2921
      %v2993 = vpack.c.b16 %v2962, %v2961
      %v2994 = vpack.c.b16 %v2964, %v2963
      %v2995 = vpack.c.b16 %v2966, %v2965
      %v2996 = vpack.c.b16 %v2968, %v2967
      %v2997 = vpack.c.b16 %v2970, %v2969
      %v2998 = vpack.c.b16 %v2972, %v2971
      %v2999 = vpack.c.b16 %v2974, %v2973
      %v3000 = vpack.c.b16 %v2976, %v2975
      %v3001 = vpack.c.b16 %v2978, %v2977
      %v3002 = vpack.c.b16 %v2980, %v2979
      %v3003 = vpack.c.b16 %v2982, %v2981
      %v3004 = vpack.c.b16 %v2984, %v2983
      %v3005 = vpack.c.b16 %v2986, %v2985
      %v3006 = vpack.c.b16 %v2988, %v2987
      %v3007 = vpack.c.b16 %v2990, %v2989
      %v3008 = vpack.c.b16 %v2992, %v2991
      %3025 = vmatprep.subr.bf16.mxu0 0
      %3026 = vmatpush1.bf16.msra.mxu0 %v2993
      %3027 = vmatprep.subr.bf16.mxu0 0
      %3028 = vmatpush1.bf16.msra.mxu0 %v2994
      %3029 = vmatprep.subr.bf16.mxu0 0
      %3030 = vmatpush1.bf16.msra.mxu0 %v2995
      %3031 = vmatprep.subr.bf16.mxu0 0
      %3032 = vmatpush1.bf16.msra.mxu0 %v2996
      %3033 = vmatprep.subr.bf16.mxu0 0
      %3034 = vmatpush1.bf16.msra.mxu0 %v2997
      %3035 = vmatprep.subr.bf16.mxu0 0
      %3036 = vmatpush1.bf16.msra.mxu0 %v2998
      %3037 = vmatprep.subr.bf16.mxu0 0
      %3038 = vmatpush1.bf16.msra.mxu0 %v2999
      %3039 = vmatprep.subr.bf16.mxu0 0
      %3040 = vmatpush1.bf16.msra.mxu0 %v3000
      %3041 = vmatprep.subr.bf16.mxu0 0
      %3042 = vmatpush1.bf16.msra.mxu0 %v3001
      %3043 = vmatprep.subr.bf16.mxu0 0
      %3044 = vmatpush1.bf16.msra.mxu0 %v3002
      %3045 = vmatprep.subr.bf16.mxu0 0
      %3046 = vmatpush1.bf16.msra.mxu0 %v3003
      %3047 = vmatprep.subr.bf16.mxu0 0
      %3048 = vmatpush1.bf16.msra.mxu0 %v3004
      %3049 = vmatprep.subr.bf16.mxu0 0
      %3050 = vmatpush1.bf16.msra.mxu0 %v3005
      %3051 = vmatprep.subr.bf16.mxu0 0
      %3052 = vmatpush1.bf16.msra.mxu0 %v3006
      %3053 = vmatprep.subr.bf16.mxu0 0
      %3054 = vmatpush1.bf16.msra.mxu0 %v3007
      %3055 = vmatprep.subr.bf16.mxu0 0
      %3056 = vmatpush1.bf16.msra.mxu0 %v3008
      %3057 = vmatprep.mubr.bf16.mxu0 %v2865
      %3058 = vmatmul.mubr.bf16.gmra.mrb[0].mxu0 %v2864
      %v3059 = vpop.f32.mrb[0].mxu0
      %v3060 = vadd.f32 %v2927, %v3059
      %v3061 = vpop.f32.mrb[0].mxu0
      %v3062 = vpop.f32.mrb[0].mxu0
      %v3063 = vpop.f32.mrb[0].mxu0
      %3064 = vdwg.mxu0
      %3065 = vst [vmem:[#allocation11] sm:$0xff] %v3060
    $region49: #{tpu_custom_call.1} parent=1 // pred_fallthru
      _
    // Predicated region
    $region50: #{tpu_custom_call.1} parent=1 // pred_check
      _
    $region51: #{tpu_custom_call.1} parent=1 // pred_check_branch
      %3067 = sbr.rel (0) target = $region53
    $region52: #{tpu_custom_call.1} parent=1 // pred_region
      %s3069 = ssub.s32 128, 128
      %3070 = vsyncadd [#allocation5], %s3069
      %s3072 = sshll.u32 [#allocation11], 4
      %s3073 = int_to_ptr.vmem [resolvable:$true] %s3072
      %3075 = dma.vmem_to_hbm [thread:$0]  %s3073, 128, %s6, [#allocation5]
    $region53: #{tpu_custom_call.1} parent=1 // pred_fallthru
      _
    // Predicated region
    $region54: #{tpu_custom_call.1} parent=1 // pred_check
      _
    $region55: #{tpu_custom_call.1} parent=1 // pred_check_branch
      %3077 = sbr.rel (0) target = $region57
    $region56: #{tpu_custom_call.1} parent=1 // pred_region
      %3078 = dma.done [#allocation5], 128
    $region57: #{tpu_custom_call.1} parent=1 // pred_fallthru
      _
    %3079 = vsyncpa [#allocation4], 1
    %3080 = vsyncpa [#allocation7], 1
    %3081 = vsyncpa [#allocation10], 1
    %3082 = vsyncpa [#allocation5], 1

</llo_original>
